<compile_context>
chip_gen: v7x
topology: tpu7x:2x2x1
jax: 0.10.0
libtpu: 0.0.40
codegen_flags: <defaults>
</compile_context>

<pallas_src>
import functools
import math

import jax
import jax.numpy as jnp
from jax import lax
from jax.experimental import pallas as pl
from jax.experimental.pallas import tpu as pltpu

# ----------------------------- model dims -----------------------------------
INPUT_DIM = 4
HIDDEN_DIM = 32            # embed_dim, divisible by NUM_HEADS
LATENT_DIM = 16
OUTPUT_DIM = 8
NUM_HEADS = 8
HEAD_DIM = HIDDEN_DIM // NUM_HEADS
BATCH = 2
SEQ = 8
DEC_DIMS = [LATENT_DIM, 512, 512, 256, 128, 64, 32, 16, OUTPUT_DIM]
N_DEC = len(DEC_DIMS) - 1

VMEM_SPEC = pl.BlockSpec(memory_space=pltpu.MemorySpace.VMEM)
ANY_SPEC = pl.BlockSpec(memory_space=pl.ANY)


# ----------------------------- fused kernel ----------------------------------
def fused_vae_kernel(x_ref,
                     wih0_ref, whh0_ref, b0_ref,
                     wihh1_ref, b1_ref,
                     wqkv_ref, bqkv_ref, wo_ref, bo_ref,
                     gsum_ref, gbcast_ref,
                     wmulv_ref, bmulv_ref,
                     eps_ref,
                     *rest,
                     B, S, H, L, num_heads, n_dec):
    # ---- unpack varargs: remaining inputs, outputs, scratch ------------------
    dec_b = rest[:n_dec]                           # decoder biases (VMEM, f32)
    dec_w_hbm = rest[n_dec:2 * n_dec]              # decoder weights (HBM, bf16)
    theta_ref, mu_ref, lv_ref = rest[2 * n_dec:2 * n_dec + 3]
    gx0_ref = rest[2 * n_dec + 3]                  # (S*B, 4H) f32 scratch
    dec_w_buf = rest[2 * n_dec + 4:3 * n_dec + 4]  # bf16 VMEM buffers
    dec_sem = rest[3 * n_dec + 4]                  # DMA semaphores (n_dec,)

    # ---- kick off decoder-weight DMAs; they hide behind the serial LSTM -----
    for i in range(n_dec):
        pltpu.make_async_copy(dec_w_hbm[i], dec_w_buf[i], dec_sem.at[i]).start()

    H4 = 4 * H
    nh = num_heads

    # ------------------------------ 2-layer LSTM ------------------------------
    # Hoisted layer-0 input matmul (bias folded once), stored to scratch so the
    # unrolled loop only does sublane-offset loads per step.
    gx0_ref[...] = (jnp.dot(x_ref[...], wih0_ref[...],
                            preferred_element_type=jnp.float32) + b0_ref[...])

    whh0 = whh0_ref[...]
    wihh1 = wihh1_ref[...]     # concat([wih1; whh1]) -> (2H, 4H)
    b1 = b1_ref[...]

    # Lane mask selecting the tanh gate block [2H, 3H); hoisted out of the loop.
    lane = lax.broadcasted_iota(jnp.int32, (B, H4), 1)
    tanh_lane = jnp.logical_and(lane >= 2 * H, lane < 3 * H)

    def lstm_cell(g, c):
        # One EUP pass for all four gates: sigmoid(x) == 0.5*tanh(x/2) + 0.5.
        t = jnp.tanh(jnp.where(tanh_lane, g, 0.5 * g))
        acts = jnp.where(tanh_lane, t, 0.5 * t + 0.5)
        i_g = acts[:, 0:H]
        f_g = acts[:, H:2 * H]
        g_g = acts[:, 2 * H:3 * H]
        o_g = acts[:, 3 * H:4 * H]
        c_new = f_g * c + i_g * g_g
        h_new = o_g * jnp.tanh(c_new)
        return h_new, c_new

    zeros = jnp.zeros((B, H), jnp.float32)
    h0, c0, h1, c1 = zeros, zeros, zeros, zeros

    # Statically unrolled; both layers fused into one S-trip loop (cross-layer
    # ILP, no sequence round-trip).  Layer 1 uses a single fused matmul on
    # concat([h0_new, h1]) per step.
    for t in range(S):
        g0 = gx0_ref[t * B:(t + 1) * B, :] + jnp.dot(
            h0, whh0, preferred_element_type=jnp.float32)
        h0, c0 = lstm_cell(g0, c0)
        g1 = jnp.dot(jnp.concatenate([h0, h1], axis=1), wihh1,
                     preferred_element_type=jnp.float32) + b1
        h1, c1 = lstm_cell(g1, c1)

    # ---------------- MultiheadAttention over the 2 tokens (h0, h1) -----------
    # Fused QKV projection per token (packed in_proj layout).
    wqkv = wqkv_ref[...]
    bqkv = bqkv_ref[...]
    qkv0 = jnp.dot(h0, wqkv, preferred_element_type=jnp.float32) + bqkv  # (B,3H)
    qkv1 = jnp.dot(h1, wqkv, preferred_element_type=jnp.float32) + bqkv
    q0, k0, v0 = qkv0[:, 0:H], qkv0[:, H:2 * H], qkv0[:, 2 * H:3 * H]
    q1, k1, v1 = qkv1[:, 0:H], qkv1[:, H:2 * H], qkv1[:, 2 * H:3 * H]

    # Per-head scores via one lane-dense (B,4H)@(4H,4nh) push with a static
    # block-diagonal head-summing matrix (scale 1/sqrt(head_dim) folded in).
    qk = jnp.concatenate([q0 * k0, q0 * k1, q1 * k0, q1 * k1], axis=1)  # (B,4H)
    s = jnp.dot(qk, gsum_ref[...], preferred_element_type=jnp.float32)
    s00, s01 = s[:, 0:nh], s[:, nh:2 * nh]
    s10, s11 = s[:, 2 * nh:3 * nh], s[:, 3 * nh:4 * nh]

    # Softmax over the 2-key sequence, full-vreg VPU math (one recip per query).
    m0 = jnp.maximum(s00, s01)
    e00, e01 = jnp.exp(s00 - m0), jnp.exp(s01 - m0)
    m1 = jnp.maximum(s10, s11)
    e10, e11 = jnp.exp(s10 - m1), jnp.exp(s11 - m1)
    inv0 = 1.0 / (e00 + e01)
    inv1 = 1.0 / (e10 + e11)
    wl = jnp.concatenate([e00 * inv0, e01 * inv0,
                          e10 * inv1, e11 * inv1], axis=1)          # (B,4nh)

    # Broadcast per-head weights back to per-dim with one matmul (G^T).
    Wl = jnp.dot(wl, gbcast_ref[...], preferred_element_type=jnp.float32)  # (B,4H)
    a0 = Wl[:, 0:H] * v0 + Wl[:, H:2 * H] * v1        # attention out, token 0
    a1 = Wl[:, 2 * H:3 * H] * v0 + Wl[:, 3 * H:4 * H] * v1

    # Output projection.  TODO(synk): dropout=0.1 of nn.MultiheadAttention is
    # assumed to be eval-mode identity.
    wo = wo_ref[...]
    bo = bo_ref[...]
    o0 = jnp.dot(a0, wo, preferred_element_type=jnp.float32) + bo
    o1 = jnp.dot(a1, wo, preferred_element_type=jnp.float32) + bo

    # att_output.permute(1,0,2).reshape(B,-1) == concat on the feature axis.
    att = jnp.concatenate([o0, o1], axis=1)            # (B, 2H)

    # --------------------- latent heads + reparameterization ------------------
    # mu and logvar heads fused into one (2H, 2L) matmul + lane split.
    ml = (jnp.dot(att, wmulv_ref[...], preferred_element_type=jnp.float32)
          + bmulv_ref[...])
    mu = ml[:, 0:L]
    lv = ml[:, L:2 * L]
    # TODO(synk): torch.randn_like(std) is replaced by a host-supplied normal
    # sample (same distributional semantics).
    z = mu + eps_ref[...] * jnp.exp(0.5 * lv)
    mu_ref[...] = mu
    lv_ref[...] = lv

    # ------------------------------- decoder MLP ------------------------------
    xa = z
    for i in range(n_dec):
        # Wait only now: the bf16 weight DMA has been in flight since entry.
        pltpu.make_async_copy(dec_w_hbm[i], dec_w_buf[i], dec_sem.at[i]).wait()
        xa = (jnp.dot(xa.astype(jnp.bfloat16), dec_w_buf[i][...],
                      preferred_element_type=jnp.float32) + dec_b[i][...])
        if i < n_dec - 1:
            xa = jnp.maximum(xa, 0.0)
    theta_ref[...] = xa


# ----------------------------- wrapper ----------------------------------------
def lstm_vae_instance_forward(x, eps, params):
    """Full forward pass: (theta_hat, mu, logvar)."""
    B, S, I = x.shape
    # batch_first (B,S,I) -> time-major flat (S*B, I) so the layer-0 input
    # matmul can be hoisted; row t*B+b == x[b, t, :].
    x2d = jnp.transpose(x, (1, 0, 2)).reshape(S * B, I)

    lstm = params["lstm"]
    mha = params["mha"]
    lat = params["latent"]
    dec_ws = [w for w, _ in params["decoder"]]     # bf16
    dec_bs = [b for _, b in params["decoder"]]     # f32

    kern = functools.partial(
        fused_vae_kernel, B=B, S=S, H=HIDDEN_DIM, L=LATENT_DIM,
        num_heads=NUM_HEADS, n_dec=N_DEC)

    out_shape = (jax.ShapeDtypeStruct((B, OUTPUT_DIM), jnp.float32),
                 jax.ShapeDtypeStruct((B, LATENT_DIM), jnp.float32),
                 jax.ShapeDtypeStruct((B, LATENT_DIM), jnp.float32))

    theta, mu, logvar = pl.pallas_call(
        kern,
        out_shape=out_shape,
        in_specs=([VMEM_SPEC] * 15            # x + lstm(5) + mha(6) + latent(2) + eps
                  + [VMEM_SPEC] * N_DEC       # decoder biases
                  + [ANY_SPEC] * N_DEC),      # decoder weights stay in HBM
        out_specs=(VMEM_SPEC, VMEM_SPEC, VMEM_SPEC),
        scratch_shapes=([pltpu.VMEM((S * B, 4 * HIDDEN_DIM), jnp.float32)]
                        + [pltpu.VMEM(w.shape, jnp.bfloat16) for w in dec_ws]
                        + [pltpu.SemaphoreType.DMA((N_DEC,))]),
    )(x2d,
      lstm["wih0"], lstm["whh0"], lstm["b0"],
      lstm["wihh1"], lstm["b1"],
      mha["wqkv"], mha["bqkv"], mha["wo"], mha["bo"],
      mha["gsum"], mha["gbcast"],
      lat["wmulv"], lat["bmulv"],
      eps,
      *dec_bs, *dec_ws)
    return theta, mu, logvar


# ----------------------------- params -----------------------------------------
def _linear_init(key, fan_in, fan_out, w_dtype=jnp.float32):
    kw, kb = jax.random.split(key)
    bound = 1.0 / math.sqrt(fan_in)
    w = jax.random.uniform(kw, (fan_in, fan_out), jnp.float32, -bound, bound)
    b = jax.random.uniform(kb, (1, fan_out), jnp.float32, -bound, bound)
    return w.astype(w_dtype), b


def _head_mix_matrices():
    """Static block-diagonal head-sum matrix G (4H,4nh) and its transpose."""
    d = jnp.arange(4 * HIDDEN_DIM)[:, None]
    j = jnp.arange(4 * NUM_HEADS)[None, :]
    same_pair = (d // HIDDEN_DIM) == (j // NUM_HEADS)
    same_head = ((d % HIDDEN_DIM) // HEAD_DIM) == (j % NUM_HEADS)
    gsum = (same_pair & same_head).astype(jnp.float32)     # (4H, 4nh)
    return gsum, gsum.T                                    # gbcast: (4nh, 4H)


def init_params(key):
    keys = jax.random.split(key, 32)
    H, I = HIDDEN_DIM, INPUT_DIM
    # LSTM (weights stored as (in, 4H); gate order i,f,g,o; b = b_ih + b_hh).
    # Layer-1 input & recurrent weights pre-concatenated for the fused matmul.
    wih0, bih0 = _linear_init(keys[0], I, 4 * H)
    whh0, bhh0 = _linear_init(keys[1], H, 4 * H)
    wih1, bih1 = _linear_init(keys[2], H, 4 * H)
    whh1, bhh1 = _linear_init(keys[3], H, 4 * H)
    lstm = dict(wih0=wih0, whh0=whh0, b0=bih0 + bhh0,
                wihh1=jnp.concatenate([wih1, whh1], axis=0),
                b1=bih1 + bhh1)
    # MultiheadAttention: packed QKV projection + output projection.
    wq, bq = _linear_init(keys[4], H, H)
    wk, bk = _linear_init(keys[5], H, H)
    wv, bv = _linear_init(keys[6], H, H)
    wo, bo = _linear_init(keys[7], H, H)
    gsum, gbcast = _head_mix_matrices()
    mha = dict(wqkv=jnp.concatenate([wq, wk, wv], axis=1),
               bqkv=jnp.concatenate([bq, bk, bv], axis=1),
               wo=wo, bo=bo,
               gsum=gsum * jnp.float32(1.0 / math.sqrt(HEAD_DIM)),  # scale folded
               gbcast=gbcast)
    # mu / logvar heads fused into one matrix (split on lanes in-kernel).
    wmu, bmu = _linear_init(keys[8], 2 * H, LATENT_DIM)
    wlv, blv = _linear_init(keys[9], 2 * H, LATENT_DIM)
    latent = dict(wmulv=jnp.concatenate([wmu, wlv], axis=1),
                  bmulv=jnp.concatenate([bmu, blv], axis=1))
    # Decoder MLP: bf16 weights (halved HBM traffic), f32 biases/accumulation.
    decoder = []
    for i in range(N_DEC):
        decoder.append(_linear_init(keys[10 + i], DEC_DIMS[i], DEC_DIMS[i + 1],
                                    w_dtype=jnp.bfloat16))
    return dict(lstm=lstm, mha=mha, latent=latent, decoder=decoder)


# ----------------------------- main --------------------------------------------
if __name__ == "__main__":
    key = jax.random.PRNGKey(0)
    kp, kx, ke = jax.random.split(key, 3)
    params = init_params(kp)
    x = jax.random.normal(kx, (BATCH, SEQ, INPUT_DIM), jnp.float32)
    eps = jax.random.normal(ke, (BATCH, LATENT_DIM), jnp.float32)

    theta_hat, mu, logvar = jax.jit(lstm_vae_instance_forward)(x, eps, params)
    jax.block_until_ready((theta_hat, mu, logvar))
    assert theta_hat.shape == (BATCH, OUTPUT_DIM)
    assert mu.shape == (BATCH, LATENT_DIM)
    assert logvar.shape == (BATCH, LATENT_DIM)
    print("KERNEL_OK")
</pallas_src>

<mosaic_0001>
module attributes {stable_mosaic.version = 11 : i64} {
  func.func @fused_vae_kernel(%arg0: memref<16x4xf32, #tpu.memory_space<vmem>>, %arg1: memref<4x128xf32, #tpu.memory_space<vmem>>, %arg2: memref<32x128xf32, #tpu.memory_space<vmem>>, %arg3: memref<1x128xf32, #tpu.memory_space<vmem>>, %arg4: memref<64x128xf32, #tpu.memory_space<vmem>>, %arg5: memref<1x128xf32, #tpu.memory_space<vmem>>, %arg6: memref<32x96xf32, #tpu.memory_space<vmem>>, %arg7: memref<1x96xf32, #tpu.memory_space<vmem>>, %arg8: memref<32x32xf32, #tpu.memory_space<vmem>>, %arg9: memref<1x32xf32, #tpu.memory_space<vmem>>, %arg10: memref<128x32xf32, #tpu.memory_space<vmem>>, %arg11: memref<32x128xf32, #tpu.memory_space<vmem>>, %arg12: memref<64x32xf32, #tpu.memory_space<vmem>>, %arg13: memref<1x32xf32, #tpu.memory_space<vmem>>, %arg14: memref<2x16xf32, #tpu.memory_space<vmem>>, %arg15: memref<1x512xf32, #tpu.memory_space<vmem>>, %arg16: memref<1x512xf32, #tpu.memory_space<vmem>>, %arg17: memref<1x256xf32, #tpu.memory_space<vmem>>, %arg18: memref<1x128xf32, #tpu.memory_space<vmem>>, %arg19: memref<1x64xf32, #tpu.memory_space<vmem>>, %arg20: memref<1x32xf32, #tpu.memory_space<vmem>>, %arg21: memref<1x16xf32, #tpu.memory_space<vmem>>, %arg22: memref<1x8xf32, #tpu.memory_space<vmem>>, %arg23: memref<16x512xbf16, #tpu.memory_space<any>>, %arg24: memref<512x512xbf16, #tpu.memory_space<any>>, %arg25: memref<512x256xbf16, #tpu.memory_space<any>>, %arg26: memref<256x128xbf16, #tpu.memory_space<any>>, %arg27: memref<128x64xbf16, #tpu.memory_space<any>>, %arg28: memref<64x32xbf16, #tpu.memory_space<any>>, %arg29: memref<32x16xbf16, #tpu.memory_space<any>>, %arg30: memref<16x8xbf16, #tpu.memory_space<any>>, %arg31: memref<2x8xf32, #tpu.memory_space<vmem>>, %arg32: memref<2x16xf32, #tpu.memory_space<vmem>>, %arg33: memref<2x16xf32, #tpu.memory_space<vmem>>, %arg34: memref<16x128xf32, #tpu.memory_space<vmem>>, %arg35: memref<16x512xbf16, #tpu.memory_space<vmem>>, %arg36: memref<512x512xbf16, #tpu.memory_space<vmem>>, %arg37: memref<512x256xbf16, #tpu.memory_space<vmem>>, %arg38: memref<256x128xbf16, #tpu.memory_space<vmem>>, %arg39: memref<128x64xbf16, #tpu.memory_space<vmem>>, %arg40: memref<64x32xbf16, #tpu.memory_space<vmem>>, %arg41: memref<32x16xbf16, #tpu.memory_space<vmem>>, %arg42: memref<16x8xbf16, #tpu.memory_space<vmem>>, %arg43: memref<8x!tpu.dma_semaphore, #tpu.memory_space<semaphore_mem>>) attributes {dimension_semantics = [], scalar_prefetch = 0 : i64, scratch_operands = 10 : i64, tpu.core_type = #tpu.core_type<tc>} {
    %c0_i32 = arith.constant 0 : i32
    %0 = tpu.memref_slice %arg43[%c0_i32] : memref<8x!tpu.dma_semaphore, #tpu.memory_space<semaphore_mem>> -> memref<1x!tpu.dma_semaphore, #tpu.memory_space<semaphore_mem>>
    %1 = tpu.memref_squeeze %0 : memref<1x!tpu.dma_semaphore, #tpu.memory_space<semaphore_mem>> -> memref<!tpu.dma_semaphore, #tpu.memory_space<semaphore_mem>>
    tpu.enqueue_dma source(%arg23 : memref<16x512xbf16, #tpu.memory_space<any>>) target(%arg35 : memref<16x512xbf16, #tpu.memory_space<vmem>>) target_semaphore(%1 : memref<!tpu.dma_semaphore, #tpu.memory_space<semaphore_mem>>)
    %c1_i32 = arith.constant 1 : i32
    %2 = tpu.memref_slice %arg43[%c1_i32] : memref<8x!tpu.dma_semaphore, #tpu.memory_space<semaphore_mem>> -> memref<1x!tpu.dma_semaphore, #tpu.memory_space<semaphore_mem>>
    %3 = tpu.memref_squeeze %2 : memref<1x!tpu.dma_semaphore, #tpu.memory_space<semaphore_mem>> -> memref<!tpu.dma_semaphore, #tpu.memory_space<semaphore_mem>>
    tpu.enqueue_dma source(%arg24 : memref<512x512xbf16, #tpu.memory_space<any>>) target(%arg36 : memref<512x512xbf16, #tpu.memory_space<vmem>>) target_semaphore(%3 : memref<!tpu.dma_semaphore, #tpu.memory_space<semaphore_mem>>)
    %c2_i32 = arith.constant 2 : i32
    %4 = tpu.memref_slice %arg43[%c2_i32] : memref<8x!tpu.dma_semaphore, #tpu.memory_space<semaphore_mem>> -> memref<1x!tpu.dma_semaphore, #tpu.memory_space<semaphore_mem>>
    %5 = tpu.memref_squeeze %4 : memref<1x!tpu.dma_semaphore, #tpu.memory_space<semaphore_mem>> -> memref<!tpu.dma_semaphore, #tpu.memory_space<semaphore_mem>>
    tpu.enqueue_dma source(%arg25 : memref<512x256xbf16, #tpu.memory_space<any>>) target(%arg37 : memref<512x256xbf16, #tpu.memory_space<vmem>>) target_semaphore(%5 : memref<!tpu.dma_semaphore, #tpu.memory_space<semaphore_mem>>)
    %c3_i32 = arith.constant 3 : i32
    %6 = tpu.memref_slice %arg43[%c3_i32] : memref<8x!tpu.dma_semaphore, #tpu.memory_space<semaphore_mem>> -> memref<1x!tpu.dma_semaphore, #tpu.memory_space<semaphore_mem>>
    %7 = tpu.memref_squeeze %6 : memref<1x!tpu.dma_semaphore, #tpu.memory_space<semaphore_mem>> -> memref<!tpu.dma_semaphore, #tpu.memory_space<semaphore_mem>>
    tpu.enqueue_dma source(%arg26 : memref<256x128xbf16, #tpu.memory_space<any>>) target(%arg38 : memref<256x128xbf16, #tpu.memory_space<vmem>>) target_semaphore(%7 : memref<!tpu.dma_semaphore, #tpu.memory_space<semaphore_mem>>)
    %c4_i32 = arith.constant 4 : i32
    %8 = tpu.memref_slice %arg43[%c4_i32] : memref<8x!tpu.dma_semaphore, #tpu.memory_space<semaphore_mem>> -> memref<1x!tpu.dma_semaphore, #tpu.memory_space<semaphore_mem>>
    %9 = tpu.memref_squeeze %8 : memref<1x!tpu.dma_semaphore, #tpu.memory_space<semaphore_mem>> -> memref<!tpu.dma_semaphore, #tpu.memory_space<semaphore_mem>>
    tpu.enqueue_dma source(%arg27 : memref<128x64xbf16, #tpu.memory_space<any>>) target(%arg39 : memref<128x64xbf16, #tpu.memory_space<vmem>>) target_semaphore(%9 : memref<!tpu.dma_semaphore, #tpu.memory_space<semaphore_mem>>)
    %c5_i32 = arith.constant 5 : i32
    %10 = tpu.memref_slice %arg43[%c5_i32] : memref<8x!tpu.dma_semaphore, #tpu.memory_space<semaphore_mem>> -> memref<1x!tpu.dma_semaphore, #tpu.memory_space<semaphore_mem>>
    %11 = tpu.memref_squeeze %10 : memref<1x!tpu.dma_semaphore, #tpu.memory_space<semaphore_mem>> -> memref<!tpu.dma_semaphore, #tpu.memory_space<semaphore_mem>>
    tpu.enqueue_dma source(%arg28 : memref<64x32xbf16, #tpu.memory_space<any>>) target(%arg40 : memref<64x32xbf16, #tpu.memory_space<vmem>>) target_semaphore(%11 : memref<!tpu.dma_semaphore, #tpu.memory_space<semaphore_mem>>)
    %c6_i32 = arith.constant 6 : i32
    %12 = tpu.memref_slice %arg43[%c6_i32] : memref<8x!tpu.dma_semaphore, #tpu.memory_space<semaphore_mem>> -> memref<1x!tpu.dma_semaphore, #tpu.memory_space<semaphore_mem>>
    %13 = tpu.memref_squeeze %12 : memref<1x!tpu.dma_semaphore, #tpu.memory_space<semaphore_mem>> -> memref<!tpu.dma_semaphore, #tpu.memory_space<semaphore_mem>>
    tpu.enqueue_dma source(%arg29 : memref<32x16xbf16, #tpu.memory_space<any>>) target(%arg41 : memref<32x16xbf16, #tpu.memory_space<vmem>>) target_semaphore(%13 : memref<!tpu.dma_semaphore, #tpu.memory_space<semaphore_mem>>)
    %c7_i32 = arith.constant 7 : i32
    %14 = tpu.memref_slice %arg43[%c7_i32] : memref<8x!tpu.dma_semaphore, #tpu.memory_space<semaphore_mem>> -> memref<1x!tpu.dma_semaphore, #tpu.memory_space<semaphore_mem>>
    %15 = tpu.memref_squeeze %14 : memref<1x!tpu.dma_semaphore, #tpu.memory_space<semaphore_mem>> -> memref<!tpu.dma_semaphore, #tpu.memory_space<semaphore_mem>>
    tpu.enqueue_dma source(%arg30 : memref<16x8xbf16, #tpu.memory_space<any>>) target(%arg42 : memref<16x8xbf16, #tpu.memory_space<vmem>>) target_semaphore(%15 : memref<!tpu.dma_semaphore, #tpu.memory_space<semaphore_mem>>)
    %c0 = arith.constant 0 : index
    %c0_0 = arith.constant 0 : index
    %16 = vector.load %arg0[%c0, %c0_0] : memref<16x4xf32, #tpu.memory_space<vmem>>, vector<16x4xf32>
    %c0_1 = arith.constant 0 : index
    %c0_2 = arith.constant 0 : index
    %17 = vector.load %arg1[%c0_1, %c0_2] : memref<4x128xf32, #tpu.memory_space<vmem>>, vector<4x128xf32>
    %cst = arith.constant dense<0.000000e+00> : vector<16x128xf32>
    %18 = tpu.matmul %16, %17, %cst {dimension_numbers = #tpu.dot_dimension_numbers<[1], [0], [0], [1], [0, 0, 1, 1], [], []>} : vector<16x4xf32>, vector<4x128xf32>, vector<16x128xf32> -> vector<16x128xf32>
    %c0_3 = arith.constant 0 : index
    %c0_4 = arith.constant 0 : index
    %19 = vector.load %arg3[%c0_3, %c0_4] : memref<1x128xf32, #tpu.memory_space<vmem>>, vector<1x128xf32>
    %20 = vector.broadcast %19 : vector<1x128xf32> to vector<16x128xf32>
    %21 = arith.addf %18, %20 : vector<16x128xf32>
    %c0_5 = arith.constant 0 : index
    %c0_6 = arith.constant 0 : index
    %22 = vector.load %arg34[%c0_5, %c0_6] : memref<16x128xf32, #tpu.memory_space<vmem>>, vector<16x128xf32>
    tpu.vector_store %arg34[%c0_5, %c0_6], %21 {strides = array<i32>} : memref<16x128xf32, #tpu.memory_space<vmem>>, vector<16x128xf32>,
    %c0_7 = arith.constant 0 : index
    %c0_8 = arith.constant 0 : index
    %23 = vector.load %arg2[%c0_7, %c0_8] : memref<32x128xf32, #tpu.memory_space<vmem>>, vector<32x128xf32>
    %c0_9 = arith.constant 0 : index
    %c0_10 = arith.constant 0 : index
    %24 = vector.load %arg4[%c0_9, %c0_10] : memref<64x128xf32, #tpu.memory_space<vmem>>, vector<64x128xf32>
    %c0_11 = arith.constant 0 : index
    %c0_12 = arith.constant 0 : index
    %25 = vector.load %arg5[%c0_11, %c0_12] : memref<1x128xf32, #tpu.memory_space<vmem>>, vector<1x128xf32>
    %26 = tpu.iota {dimensions = array<i32: 1>} : vector<2x128xi32>
    %c64_i32 = arith.constant 64 : i32
    %27 = vector.broadcast %c64_i32 : i32 to vector<2x128xi32>
    %28 = arith.cmpi sge, %26, %27 : vector<2x128xi32>
    %c96_i32 = arith.constant 96 : i32
    %29 = vector.broadcast %c96_i32 : i32 to vector<2x128xi32>
    %30 = arith.cmpi slt, %26, %29 : vector<2x128xi32>
    %31 = arith.andi %28, %30 : vector<2x128xi1>
    %cst_13 = arith.constant 0.000000e+00 : f32
    %32 = vector.broadcast %cst_13 : f32 to vector<2x32xf32>
    %c0_14 = arith.constant 0 : index
    %c0_15 = arith.constant 0 : index
    %33 = vector.load %arg34[%c0_14, %c0_15] : memref<16x128xf32, #tpu.memory_space<vmem>>, vector<2x128xf32>
    %cst_16 = arith.constant dense<0.000000e+00> : vector<2x128xf32>
    %34 = tpu.matmul %32, %23, %cst_16 {dimension_numbers = #tpu.dot_dimension_numbers<[1], [0], [0], [1], [0, 0, 1, 1], [], []>} : vector<2x32xf32>, vector<32x128xf32>, vector<2x128xf32> -> vector<2x128xf32>
    %35 = arith.addf %33, %34 : vector<2x128xf32>
    %cst_17 = arith.constant 5.000000e-01 : f32
    %36 = vector.broadcast %cst_17 : f32 to vector<2x128xf32>
    %37 = arith.mulf %36, %35 : vector<2x128xf32>
    %38 = arith.select %31, %35, %37 : vector<2x128xi1>, vector<2x128xf32>
    %39 = math.tanh %38 : vector<2x128xf32>
    %cst_18 = arith.constant 5.000000e-01 : f32
    %40 = vector.broadcast %cst_18 : f32 to vector<2x128xf32>
    %41 = arith.mulf %40, %39 : vector<2x128xf32>
    %cst_19 = arith.constant 5.000000e-01 : f32
    %42 = vector.broadcast %cst_19 : f32 to vector<2x128xf32>
    %43 = arith.addf %41, %42 : vector<2x128xf32>
    %44 = arith.select %31, %39, %43 : vector<2x128xi1>, vector<2x128xf32>
    %45 = vector.extract_strided_slice %44 {offsets = [0, 0], sizes = [2, 32], strides = [1, 1]} : vector<2x128xf32> to vector<2x32xf32>
    %46 = vector.extract_strided_slice %44 {offsets = [0, 32], sizes = [2, 32], strides = [1, 1]} : vector<2x128xf32> to vector<2x32xf32>
    %47 = vector.extract_strided_slice %44 {offsets = [0, 64], sizes = [2, 32], strides = [1, 1]} : vector<2x128xf32> to vector<2x32xf32>
    %48 = vector.extract_strided_slice %44 {offsets = [0, 96], sizes = [2, 32], strides = [1, 1]} : vector<2x128xf32> to vector<2x32xf32>
    %49 = arith.mulf %46, %32 : vector<2x32xf32>
    %50 = arith.mulf %45, %47 : vector<2x32xf32>
    %51 = arith.addf %49, %50 : vector<2x32xf32>
    %52 = math.tanh %51 : vector<2x32xf32>
    %53 = arith.mulf %48, %52 : vector<2x32xf32>
    %54 = tpu.concatenate %53, %32 in 1 : vector<2x32xf32>, vector<2x32xf32> -> vector<2x64xf32>
    %cst_20 = arith.constant dense<0.000000e+00> : vector<2x128xf32>
    %55 = tpu.matmul %54, %24, %cst_20 {dimension_numbers = #tpu.dot_dimension_numbers<[1], [0], [0], [1], [0, 0, 1, 1], [], []>} : vector<2x64xf32>, vector<64x128xf32>, vector<2x128xf32> -> vector<2x128xf32>
    %56 = vector.broadcast %25 : vector<1x128xf32> to vector<2x128xf32>
    %57 = arith.addf %55, %56 : vector<2x128xf32>
    %cst_21 = arith.constant 5.000000e-01 : f32
    %58 = vector.broadcast %cst_21 : f32 to vector<2x128xf32>
    %59 = arith.mulf %58, %57 : vector<2x128xf32>
    %60 = arith.select %31, %57, %59 : vector<2x128xi1>, vector<2x128xf32>
    %61 = math.tanh %60 : vector<2x128xf32>
    %cst_22 = arith.constant 5.000000e-01 : f32
    %62 = vector.broadcast %cst_22 : f32 to vector<2x128xf32>
    %63 = arith.mulf %62, %61 : vector<2x128xf32>
    %cst_23 = arith.constant 5.000000e-01 : f32
    %64 = vector.broadcast %cst_23 : f32 to vector<2x128xf32>
    %65 = arith.addf %63, %64 : vector<2x128xf32>
    %66 = arith.select %31, %61, %65 : vector<2x128xi1>, vector<2x128xf32>
    %67 = vector.extract_strided_slice %66 {offsets = [0, 0], sizes = [2, 32], strides = [1, 1]} : vector<2x128xf32> to vector<2x32xf32>
    %68 = vector.extract_strided_slice %66 {offsets = [0, 32], sizes = [2, 32], strides = [1, 1]} : vector<2x128xf32> to vector<2x32xf32>
    %69 = vector.extract_strided_slice %66 {offsets = [0, 64], sizes = [2, 32], strides = [1, 1]} : vector<2x128xf32> to vector<2x32xf32>
    %70 = vector.extract_strided_slice %66 {offsets = [0, 96], sizes = [2, 32], strides = [1, 1]} : vector<2x128xf32> to vector<2x32xf32>
    %71 = arith.mulf %68, %32 : vector<2x32xf32>
    %72 = arith.mulf %67, %69 : vector<2x32xf32>
    %73 = arith.addf %71, %72 : vector<2x32xf32>
    %74 = math.tanh %73 : vector<2x32xf32>
    %75 = arith.mulf %70, %74 : vector<2x32xf32>
    %c2 = arith.constant 2 : index
    %c0_24 = arith.constant 0 : index
    %76 = vector.load %arg34[%c2, %c0_24] : memref<16x128xf32, #tpu.memory_space<vmem>>, vector<2x128xf32>
    %cst_25 = arith.constant dense<0.000000e+00> : vector<2x128xf32>
    %77 = tpu.matmul %53, %23, %cst_25 {dimension_numbers = #tpu.dot_dimension_numbers<[1], [0], [0], [1], [0, 0, 1, 1], [], []>} : vector<2x32xf32>, vector<32x128xf32>, vector<2x128xf32> -> vector<2x128xf32>
    %78 = arith.addf %76, %77 : vector<2x128xf32>
    %cst_26 = arith.constant 5.000000e-01 : f32
    %79 = vector.broadcast %cst_26 : f32 to vector<2x128xf32>
    %80 = arith.mulf %79, %78 : vector<2x128xf32>
    %81 = arith.select %31, %78, %80 : vector<2x128xi1>, vector<2x128xf32>
    %82 = math.tanh %81 : vector<2x128xf32>
    %cst_27 = arith.constant 5.000000e-01 : f32
    %83 = vector.broadcast %cst_27 : f32 to vector<2x128xf32>
    %84 = arith.mulf %83, %82 : vector<2x128xf32>
    %cst_28 = arith.constant 5.000000e-01 : f32
    %85 = vector.broadcast %cst_28 : f32 to vector<2x128xf32>
    %86 = arith.addf %84, %85 : vector<2x128xf32>
    %87 = arith.select %31, %82, %86 : vector<2x128xi1>, vector<2x128xf32>
    %88 = vector.extract_strided_slice %87 {offsets = [0, 0], sizes = [2, 32], strides = [1, 1]} : vector<2x128xf32> to vector<2x32xf32>
    %89 = vector.extract_strided_slice %87 {offsets = [0, 32], sizes = [2, 32], strides = [1, 1]} : vector<2x128xf32> to vector<2x32xf32>
    %90 = vector.extract_strided_slice %87 {offsets = [0, 64], sizes = [2, 32], strides = [1, 1]} : vector<2x128xf32> to vector<2x32xf32>
    %91 = vector.extract_strided_slice %87 {offsets = [0, 96], sizes = [2, 32], strides = [1, 1]} : vector<2x128xf32> to vector<2x32xf32>
    %92 = arith.mulf %89, %51 : vector<2x32xf32>
    %93 = arith.mulf %88, %90 : vector<2x32xf32>
    %94 = arith.addf %92, %93 : vector<2x32xf32>
    %95 = math.tanh %94 : vector<2x32xf32>
    %96 = arith.mulf %91, %95 : vector<2x32xf32>
    %97 = tpu.concatenate %96, %75 in 1 : vector<2x32xf32>, vector<2x32xf32> -> vector<2x64xf32>
    %cst_29 = arith.constant dense<0.000000e+00> : vector<2x128xf32>
    %98 = tpu.matmul %97, %24, %cst_29 {dimension_numbers = #tpu.dot_dimension_numbers<[1], [0], [0], [1], [0, 0, 1, 1], [], []>} : vector<2x64xf32>, vector<64x128xf32>, vector<2x128xf32> -> vector<2x128xf32>
    %99 = vector.broadcast %25 : vector<1x128xf32> to vector<2x128xf32>
    %100 = arith.addf %98, %99 : vector<2x128xf32>
    %cst_30 = arith.constant 5.000000e-01 : f32
    %101 = vector.broadcast %cst_30 : f32 to vector<2x128xf32>
    %102 = arith.mulf %101, %100 : vector<2x128xf32>
    %103 = arith.select %31, %100, %102 : vector<2x128xi1>, vector<2x128xf32>
    %104 = math.tanh %103 : vector<2x128xf32>
    %cst_31 = arith.constant 5.000000e-01 : f32
    %105 = vector.broadcast %cst_31 : f32 to vector<2x128xf32>
    %106 = arith.mulf %105, %104 : vector<2x128xf32>
    %cst_32 = arith.constant 5.000000e-01 : f32
    %107 = vector.broadcast %cst_32 : f32 to vector<2x128xf32>
    %108 = arith.addf %106, %107 : vector<2x128xf32>
    %109 = arith.select %31, %104, %108 : vector<2x128xi1>, vector<2x128xf32>
    %110 = vector.extract_strided_slice %109 {offsets = [0, 0], sizes = [2, 32], strides = [1, 1]} : vector<2x128xf32> to vector<2x32xf32>
    %111 = vector.extract_strided_slice %109 {offsets = [0, 32], sizes = [2, 32], strides = [1, 1]} : vector<2x128xf32> to vector<2x32xf32>
    %112 = vector.extract_strided_slice %109 {offsets = [0, 64], sizes = [2, 32], strides = [1, 1]} : vector<2x128xf32> to vector<2x32xf32>
    %113 = vector.extract_strided_slice %109 {offsets = [0, 96], sizes = [2, 32], strides = [1, 1]} : vector<2x128xf32> to vector<2x32xf32>
    %114 = arith.mulf %111, %73 : vector<2x32xf32>
    %115 = arith.mulf %110, %112 : vector<2x32xf32>
    %116 = arith.addf %114, %115 : vector<2x32xf32>
    %117 = math.tanh %116 : vector<2x32xf32>
    %118 = arith.mulf %113, %117 : vector<2x32xf32>
    %c4 = arith.constant 4 : index
    %c0_33 = arith.constant 0 : index
    %119 = vector.load %arg34[%c4, %c0_33] : memref<16x128xf32, #tpu.memory_space<vmem>>, vector<2x128xf32>
    %cst_34 = arith.constant dense<0.000000e+00> : vector<2x128xf32>
    %120 = tpu.matmul %96, %23, %cst_34 {dimension_numbers = #tpu.dot_dimension_numbers<[1], [0], [0], [1], [0, 0, 1, 1], [], []>} : vector<2x32xf32>, vector<32x128xf32>, vector<2x128xf32> -> vector<2x128xf32>
    %121 = arith.addf %119, %120 : vector<2x128xf32>
    %cst_35 = arith.constant 5.000000e-01 : f32
    %122 = vector.broadcast %cst_35 : f32 to vector<2x128xf32>
    %123 = arith.mulf %122, %121 : vector<2x128xf32>
    %124 = arith.select %31, %121, %123 : vector<2x128xi1>, vector<2x128xf32>
    %125 = math.tanh %124 : vector<2x128xf32>
    %cst_36 = arith.constant 5.000000e-01 : f32
    %126 = vector.broadcast %cst_36 : f32 to vector<2x128xf32>
    %127 = arith.mulf %126, %125 : vector<2x128xf32>
    %cst_37 = arith.constant 5.000000e-01 : f32
    %128 = vector.broadcast %cst_37 : f32 to vector<2x128xf32>
    %129 = arith.addf %127, %128 : vector<2x128xf32>
    %130 = arith.select %31, %125, %129 : vector<2x128xi1>, vector<2x128xf32>
    %131 = vector.extract_strided_slice %130 {offsets = [0, 0], sizes = [2, 32], strides = [1, 1]} : vector<2x128xf32> to vector<2x32xf32>
    %132 = vector.extract_strided_slice %130 {offsets = [0, 32], sizes = [2, 32], strides = [1, 1]} : vector<2x128xf32> to vector<2x32xf32>
    %133 = vector.extract_strided_slice %130 {offsets = [0, 64], sizes = [2, 32], strides = [1, 1]} : vector<2x128xf32> to vector<2x32xf32>
    %134 = vector.extract_strided_slice %130 {offsets = [0, 96], sizes = [2, 32], strides = [1, 1]} : vector<2x128xf32> to vector<2x32xf32>
    %135 = arith.mulf %132, %94 : vector<2x32xf32>
    %136 = arith.mulf %131, %133 : vector<2x32xf32>
    %137 = arith.addf %135, %136 : vector<2x32xf32>
    %138 = math.tanh %137 : vector<2x32xf32>
    %139 = arith.mulf %134, %138 : vector<2x32xf32>
    %140 = tpu.concatenate %139, %118 in 1 : vector<2x32xf32>, vector<2x32xf32> -> vector<2x64xf32>
    %cst_38 = arith.constant dense<0.000000e+00> : vector<2x128xf32>
    %141 = tpu.matmul %140, %24, %cst_38 {dimension_numbers = #tpu.dot_dimension_numbers<[1], [0], [0], [1], [0, 0, 1, 1], [], []>} : vector<2x64xf32>, vector<64x128xf32>, vector<2x128xf32> -> vector<2x128xf32>
    %142 = vector.broadcast %25 : vector<1x128xf32> to vector<2x128xf32>
    %143 = arith.addf %141, %142 : vector<2x128xf32>
    %cst_39 = arith.constant 5.000000e-01 : f32
    %144 = vector.broadcast %cst_39 : f32 to vector<2x128xf32>
    %145 = arith.mulf %144, %143 : vector<2x128xf32>
    %146 = arith.select %31, %143, %145 : vector<2x128xi1>, vector<2x128xf32>
    %147 = math.tanh %146 : vector<2x128xf32>
    %cst_40 = arith.constant 5.000000e-01 : f32
    %148 = vector.broadcast %cst_40 : f32 to vector<2x128xf32>
    %149 = arith.mulf %148, %147 : vector<2x128xf32>
    %cst_41 = arith.constant 5.000000e-01 : f32
    %150 = vector.broadcast %cst_41 : f32 to vector<2x128xf32>
    %151 = arith.addf %149, %150 : vector<2x128xf32>
    %152 = arith.select %31, %147, %151 : vector<2x128xi1>, vector<2x128xf32>
    %153 = vector.extract_strided_slice %152 {offsets = [0, 0], sizes = [2, 32], strides = [1, 1]} : vector<2x128xf32> to vector<2x32xf32>
    %154 = vector.extract_strided_slice %152 {offsets = [0, 32], sizes = [2, 32], strides = [1, 1]} : vector<2x128xf32> to vector<2x32xf32>
    %155 = vector.extract_strided_slice %152 {offsets = [0, 64], sizes = [2, 32], strides = [1, 1]} : vector<2x128xf32> to vector<2x32xf32>
    %156 = vector.extract_strided_slice %152 {offsets = [0, 96], sizes = [2, 32], strides = [1, 1]} : vector<2x128xf32> to vector<2x32xf32>
    %157 = arith.mulf %154, %116 : vector<2x32xf32>
    %158 = arith.mulf %153, %155 : vector<2x32xf32>
    %159 = arith.addf %157, %158 : vector<2x32xf32>
    %160 = math.tanh %159 : vector<2x32xf32>
    %161 = arith.mulf %156, %160 : vector<2x32xf32>
    %c6 = arith.constant 6 : index
    %c0_42 = arith.constant 0 : index
    %162 = vector.load %arg34[%c6, %c0_42] : memref<16x128xf32, #tpu.memory_space<vmem>>, vector<2x128xf32>
    %cst_43 = arith.constant dense<0.000000e+00> : vector<2x128xf32>
    %163 = tpu.matmul %139, %23, %cst_43 {dimension_numbers = #tpu.dot_dimension_numbers<[1], [0], [0], [1], [0, 0, 1, 1], [], []>} : vector<2x32xf32>, vector<32x128xf32>, vector<2x128xf32> -> vector<2x128xf32>
    %164 = arith.addf %162, %163 : vector<2x128xf32>
    %cst_44 = arith.constant 5.000000e-01 : f32
    %165 = vector.broadcast %cst_44 : f32 to vector<2x128xf32>
    %166 = arith.mulf %165, %164 : vector<2x128xf32>
    %167 = arith.select %31, %164, %166 : vector<2x128xi1>, vector<2x128xf32>
    %168 = math.tanh %167 : vector<2x128xf32>
    %cst_45 = arith.constant 5.000000e-01 : f32
    %169 = vector.broadcast %cst_45 : f32 to vector<2x128xf32>
    %170 = arith.mulf %169, %168 : vector<2x128xf32>
    %cst_46 = arith.constant 5.000000e-01 : f32
    %171 = vector.broadcast %cst_46 : f32 to vector<2x128xf32>
    %172 = arith.addf %170, %171 : vector<2x128xf32>
    %173 = arith.select %31, %168, %172 : vector<2x128xi1>, vector<2x128xf32>
    %174 = vector.extract_strided_slice %173 {offsets = [0, 0], sizes = [2, 32], strides = [1, 1]} : vector<2x128xf32> to vector<2x32xf32>
    %175 = vector.extract_strided_slice %173 {offsets = [0, 32], sizes = [2, 32], strides = [1, 1]} : vector<2x128xf32> to vector<2x32xf32>
    %176 = vector.extract_strided_slice %173 {offsets = [0, 64], sizes = [2, 32], strides = [1, 1]} : vector<2x128xf32> to vector<2x32xf32>
    %177 = vector.extract_strided_slice %173 {offsets = [0, 96], sizes = [2, 32], strides = [1, 1]} : vector<2x128xf32> to vector<2x32xf32>
    %178 = arith.mulf %175, %137 : vector<2x32xf32>
    %179 = arith.mulf %174, %176 : vector<2x32xf32>
    %180 = arith.addf %178, %179 : vector<2x32xf32>
    %181 = math.tanh %180 : vector<2x32xf32>
    %182 = arith.mulf %177, %181 : vector<2x32xf32>
    %183 = tpu.concatenate %182, %161 in 1 : vector<2x32xf32>, vector<2x32xf32> -> vector<2x64xf32>
    %cst_47 = arith.constant dense<0.000000e+00> : vector<2x128xf32>
    %184 = tpu.matmul %183, %24, %cst_47 {dimension_numbers = #tpu.dot_dimension_numbers<[1], [0], [0], [1], [0, 0, 1, 1], [], []>} : vector<2x64xf32>, vector<64x128xf32>, vector<2x128xf32> -> vector<2x128xf32>
    %185 = vector.broadcast %25 : vector<1x128xf32> to vector<2x128xf32>
    %186 = arith.addf %184, %185 : vector<2x128xf32>
    %cst_48 = arith.constant 5.000000e-01 : f32
    %187 = vector.broadcast %cst_48 : f32 to vector<2x128xf32>
    %188 = arith.mulf %187, %186 : vector<2x128xf32>
    %189 = arith.select %31, %186, %188 : vector<2x128xi1>, vector<2x128xf32>
    %190 = math.tanh %189 : vector<2x128xf32>
    %cst_49 = arith.constant 5.000000e-01 : f32
    %191 = vector.broadcast %cst_49 : f32 to vector<2x128xf32>
    %192 = arith.mulf %191, %190 : vector<2x128xf32>
    %cst_50 = arith.constant 5.000000e-01 : f32
    %193 = vector.broadcast %cst_50 : f32 to vector<2x128xf32>
    %194 = arith.addf %192, %193 : vector<2x128xf32>
    %195 = arith.select %31, %190, %194 : vector<2x128xi1>, vector<2x128xf32>
    %196 = vector.extract_strided_slice %195 {offsets = [0, 0], sizes = [2, 32], strides = [1, 1]} : vector<2x128xf32> to vector<2x32xf32>
    %197 = vector.extract_strided_slice %195 {offsets = [0, 32], sizes = [2, 32], strides = [1, 1]} : vector<2x128xf32> to vector<2x32xf32>
    %198 = vector.extract_strided_slice %195 {offsets = [0, 64], sizes = [2, 32], strides = [1, 1]} : vector<2x128xf32> to vector<2x32xf32>
    %199 = vector.extract_strided_slice %195 {offsets = [0, 96], sizes = [2, 32], strides = [1, 1]} : vector<2x128xf32> to vector<2x32xf32>
    %200 = arith.mulf %197, %159 : vector<2x32xf32>
    %201 = arith.mulf %196, %198 : vector<2x32xf32>
    %202 = arith.addf %200, %201 : vector<2x32xf32>
    %203 = math.tanh %202 : vector<2x32xf32>
    %204 = arith.mulf %199, %203 : vector<2x32xf32>
    %c8 = arith.constant 8 : index
    %c0_51 = arith.constant 0 : index
    %205 = vector.load %arg34[%c8, %c0_51] : memref<16x128xf32, #tpu.memory_space<vmem>>, vector<2x128xf32>
    %cst_52 = arith.constant dense<0.000000e+00> : vector<2x128xf32>
    %206 = tpu.matmul %182, %23, %cst_52 {dimension_numbers = #tpu.dot_dimension_numbers<[1], [0], [0], [1], [0, 0, 1, 1], [], []>} : vector<2x32xf32>, vector<32x128xf32>, vector<2x128xf32> -> vector<2x128xf32>
    %207 = arith.addf %205, %206 : vector<2x128xf32>
    %cst_53 = arith.constant 5.000000e-01 : f32
    %208 = vector.broadcast %cst_53 : f32 to vector<2x128xf32>
    %209 = arith.mulf %208, %207 : vector<2x128xf32>
    %210 = arith.select %31, %207, %209 : vector<2x128xi1>, vector<2x128xf32>
    %211 = math.tanh %210 : vector<2x128xf32>
    %cst_54 = arith.constant 5.000000e-01 : f32
    %212 = vector.broadcast %cst_54 : f32 to vector<2x128xf32>
    %213 = arith.mulf %212, %211 : vector<2x128xf32>
    %cst_55 = arith.constant 5.000000e-01 : f32
    %214 = vector.broadcast %cst_55 : f32 to vector<2x128xf32>
    %215 = arith.addf %213, %214 : vector<2x128xf32>
    %216 = arith.select %31, %211, %215 : vector<2x128xi1>, vector<2x128xf32>
    %217 = vector.extract_strided_slice %216 {offsets = [0, 0], sizes = [2, 32], strides = [1, 1]} : vector<2x128xf32> to vector<2x32xf32>
    %218 = vector.extract_strided_slice %216 {offsets = [0, 32], sizes = [2, 32], strides = [1, 1]} : vector<2x128xf32> to vector<2x32xf32>
    %219 = vector.extract_strided_slice %216 {offsets = [0, 64], sizes = [2, 32], strides = [1, 1]} : vector<2x128xf32> to vector<2x32xf32>
    %220 = vector.extract_strided_slice %216 {offsets = [0, 96], sizes = [2, 32], strides = [1, 1]} : vector<2x128xf32> to vector<2x32xf32>
    %221 = arith.mulf %218, %180 : vector<2x32xf32>
    %222 = arith.mulf %217, %219 : vector<2x32xf32>
    %223 = arith.addf %221, %222 : vector<2x32xf32>
    %224 = math.tanh %223 : vector<2x32xf32>
    %225 = arith.mulf %220, %224 : vector<2x32xf32>
    %226 = tpu.concatenate %225, %204 in 1 : vector<2x32xf32>, vector<2x32xf32> -> vector<2x64xf32>
    %cst_56 = arith.constant dense<0.000000e+00> : vector<2x128xf32>
    %227 = tpu.matmul %226, %24, %cst_56 {dimension_numbers = #tpu.dot_dimension_numbers<[1], [0], [0], [1], [0, 0, 1, 1], [], []>} : vector<2x64xf32>, vector<64x128xf32>, vector<2x128xf32> -> vector<2x128xf32>
    %228 = vector.broadcast %25 : vector<1x128xf32> to vector<2x128xf32>
    %229 = arith.addf %227, %228 : vector<2x128xf32>
    %cst_57 = arith.constant 5.000000e-01 : f32
    %230 = vector.broadcast %cst_57 : f32 to vector<2x128xf32>
    %231 = arith.mulf %230, %229 : vector<2x128xf32>
    %232 = arith.select %31, %229, %231 : vector<2x128xi1>, vector<2x128xf32>
    %233 = math.tanh %232 : vector<2x128xf32>
    %cst_58 = arith.constant 5.000000e-01 : f32
    %234 = vector.broadcast %cst_58 : f32 to vector<2x128xf32>
    %235 = arith.mulf %234, %233 : vector<2x128xf32>
    %cst_59 = arith.constant 5.000000e-01 : f32
    %236 = vector.broadcast %cst_59 : f32 to vector<2x128xf32>
    %237 = arith.addf %235, %236 : vector<2x128xf32>
    %238 = arith.select %31, %233, %237 : vector<2x128xi1>, vector<2x128xf32>
    %239 = vector.extract_strided_slice %238 {offsets = [0, 0], sizes = [2, 32], strides = [1, 1]} : vector<2x128xf32> to vector<2x32xf32>
    %240 = vector.extract_strided_slice %238 {offsets = [0, 32], sizes = [2, 32], strides = [1, 1]} : vector<2x128xf32> to vector<2x32xf32>
    %241 = vector.extract_strided_slice %238 {offsets = [0, 64], sizes = [2, 32], strides = [1, 1]} : vector<2x128xf32> to vector<2x32xf32>
    %242 = vector.extract_strided_slice %238 {offsets = [0, 96], sizes = [2, 32], strides = [1, 1]} : vector<2x128xf32> to vector<2x32xf32>
    %243 = arith.mulf %240, %202 : vector<2x32xf32>
    %244 = arith.mulf %239, %241 : vector<2x32xf32>
    %245 = arith.addf %243, %244 : vector<2x32xf32>
    %246 = math.tanh %245 : vector<2x32xf32>
    %247 = arith.mulf %242, %246 : vector<2x32xf32>
    %c10 = arith.constant 10 : index
    %c0_60 = arith.constant 0 : index
    %248 = vector.load %arg34[%c10, %c0_60] : memref<16x128xf32, #tpu.memory_space<vmem>>, vector<2x128xf32>
    %cst_61 = arith.constant dense<0.000000e+00> : vector<2x128xf32>
    %249 = tpu.matmul %225, %23, %cst_61 {dimension_numbers = #tpu.dot_dimension_numbers<[1], [0], [0], [1], [0, 0, 1, 1], [], []>} : vector<2x32xf32>, vector<32x128xf32>, vector<2x128xf32> -> vector<2x128xf32>
    %250 = arith.addf %248, %249 : vector<2x128xf32>
    %cst_62 = arith.constant 5.000000e-01 : f32
    %251 = vector.broadcast %cst_62 : f32 to vector<2x128xf32>
    %252 = arith.mulf %251, %250 : vector<2x128xf32>
    %253 = arith.select %31, %250, %252 : vector<2x128xi1>, vector<2x128xf32>
    %254 = math.tanh %253 : vector<2x128xf32>
    %cst_63 = arith.constant 5.000000e-01 : f32
    %255 = vector.broadcast %cst_63 : f32 to vector<2x128xf32>
    %256 = arith.mulf %255, %254 : vector<2x128xf32>
    %cst_64 = arith.constant 5.000000e-01 : f32
    %257 = vector.broadcast %cst_64 : f32 to vector<2x128xf32>
    %258 = arith.addf %256, %257 : vector<2x128xf32>
    %259 = arith.select %31, %254, %258 : vector<2x128xi1>, vector<2x128xf32>
    %260 = vector.extract_strided_slice %259 {offsets = [0, 0], sizes = [2, 32], strides = [1, 1]} : vector<2x128xf32> to vector<2x32xf32>
    %261 = vector.extract_strided_slice %259 {offsets = [0, 32], sizes = [2, 32], strides = [1, 1]} : vector<2x128xf32> to vector<2x32xf32>
    %262 = vector.extract_strided_slice %259 {offsets = [0, 64], sizes = [2, 32], strides = [1, 1]} : vector<2x128xf32> to vector<2x32xf32>
    %263 = vector.extract_strided_slice %259 {offsets = [0, 96], sizes = [2, 32], strides = [1, 1]} : vector<2x128xf32> to vector<2x32xf32>
    %264 = arith.mulf %261, %223 : vector<2x32xf32>
    %265 = arith.mulf %260, %262 : vector<2x32xf32>
    %266 = arith.addf %264, %265 : vector<2x32xf32>
    %267 = math.tanh %266 : vector<2x32xf32>
    %268 = arith.mulf %263, %267 : vector<2x32xf32>
    %269 = tpu.concatenate %268, %247 in 1 : vector<2x32xf32>, vector<2x32xf32> -> vector<2x64xf32>
    %cst_65 = arith.constant dense<0.000000e+00> : vector<2x128xf32>
    %270 = tpu.matmul %269, %24, %cst_65 {dimension_numbers = #tpu.dot_dimension_numbers<[1], [0], [0], [1], [0, 0, 1, 1], [], []>} : vector<2x64xf32>, vector<64x128xf32>, vector<2x128xf32> -> vector<2x128xf32>
    %271 = vector.broadcast %25 : vector<1x128xf32> to vector<2x128xf32>
    %272 = arith.addf %270, %271 : vector<2x128xf32>
    %cst_66 = arith.constant 5.000000e-01 : f32
    %273 = vector.broadcast %cst_66 : f32 to vector<2x128xf32>
    %274 = arith.mulf %273, %272 : vector<2x128xf32>
    %275 = arith.select %31, %272, %274 : vector<2x128xi1>, vector<2x128xf32>
    %276 = math.tanh %275 : vector<2x128xf32>
    %cst_67 = arith.constant 5.000000e-01 : f32
    %277 = vector.broadcast %cst_67 : f32 to vector<2x128xf32>
    %278 = arith.mulf %277, %276 : vector<2x128xf32>
    %cst_68 = arith.constant 5.000000e-01 : f32
    %279 = vector.broadcast %cst_68 : f32 to vector<2x128xf32>
    %280 = arith.addf %278, %279 : vector<2x128xf32>
    %281 = arith.select %31, %276, %280 : vector<2x128xi1>, vector<2x128xf32>
    %282 = vector.extract_strided_slice %281 {offsets = [0, 0], sizes = [2, 32], strides = [1, 1]} : vector<2x128xf32> to vector<2x32xf32>
    %283 = vector.extract_strided_slice %281 {offsets = [0, 32], sizes = [2, 32], strides = [1, 1]} : vector<2x128xf32> to vector<2x32xf32>
    %284 = vector.extract_strided_slice %281 {offsets = [0, 64], sizes = [2, 32], strides = [1, 1]} : vector<2x128xf32> to vector<2x32xf32>
    %285 = vector.extract_strided_slice %281 {offsets = [0, 96], sizes = [2, 32], strides = [1, 1]} : vector<2x128xf32> to vector<2x32xf32>
    %286 = arith.mulf %283, %245 : vector<2x32xf32>
    %287 = arith.mulf %282, %284 : vector<2x32xf32>
    %288 = arith.addf %286, %287 : vector<2x32xf32>
    %289 = math.tanh %288 : vector<2x32xf32>
    %290 = arith.mulf %285, %289 : vector<2x32xf32>
    %c12 = arith.constant 12 : index
    %c0_69 = arith.constant 0 : index
    %291 = vector.load %arg34[%c12, %c0_69] : memref<16x128xf32, #tpu.memory_space<vmem>>, vector<2x128xf32>
    %cst_70 = arith.constant dense<0.000000e+00> : vector<2x128xf32>
    %292 = tpu.matmul %268, %23, %cst_70 {dimension_numbers = #tpu.dot_dimension_numbers<[1], [0], [0], [1], [0, 0, 1, 1], [], []>} : vector<2x32xf32>, vector<32x128xf32>, vector<2x128xf32> -> vector<2x128xf32>
    %293 = arith.addf %291, %292 : vector<2x128xf32>
    %cst_71 = arith.constant 5.000000e-01 : f32
    %294 = vector.broadcast %cst_71 : f32 to vector<2x128xf32>
    %295 = arith.mulf %294, %293 : vector<2x128xf32>
    %296 = arith.select %31, %293, %295 : vector<2x128xi1>, vector<2x128xf32>
    %297 = math.tanh %296 : vector<2x128xf32>
    %cst_72 = arith.constant 5.000000e-01 : f32
    %298 = vector.broadcast %cst_72 : f32 to vector<2x128xf32>
    %299 = arith.mulf %298, %297 : vector<2x128xf32>
    %cst_73 = arith.constant 5.000000e-01 : f32
    %300 = vector.broadcast %cst_73 : f32 to vector<2x128xf32>
    %301 = arith.addf %299, %300 : vector<2x128xf32>
    %302 = arith.select %31, %297, %301 : vector<2x128xi1>, vector<2x128xf32>
    %303 = vector.extract_strided_slice %302 {offsets = [0, 0], sizes = [2, 32], strides = [1, 1]} : vector<2x128xf32> to vector<2x32xf32>
    %304 = vector.extract_strided_slice %302 {offsets = [0, 32], sizes = [2, 32], strides = [1, 1]} : vector<2x128xf32> to vector<2x32xf32>
    %305 = vector.extract_strided_slice %302 {offsets = [0, 64], sizes = [2, 32], strides = [1, 1]} : vector<2x128xf32> to vector<2x32xf32>
    %306 = vector.extract_strided_slice %302 {offsets = [0, 96], sizes = [2, 32], strides = [1, 1]} : vector<2x128xf32> to vector<2x32xf32>
    %307 = arith.mulf %304, %266 : vector<2x32xf32>
    %308 = arith.mulf %303, %305 : vector<2x32xf32>
    %309 = arith.addf %307, %308 : vector<2x32xf32>
    %310 = math.tanh %309 : vector<2x32xf32>
    %311 = arith.mulf %306, %310 : vector<2x32xf32>
    %312 = tpu.concatenate %311, %290 in 1 : vector<2x32xf32>, vector<2x32xf32> -> vector<2x64xf32>
    %cst_74 = arith.constant dense<0.000000e+00> : vector<2x128xf32>
    %313 = tpu.matmul %312, %24, %cst_74 {dimension_numbers = #tpu.dot_dimension_numbers<[1], [0], [0], [1], [0, 0, 1, 1], [], []>} : vector<2x64xf32>, vector<64x128xf32>, vector<2x128xf32> -> vector<2x128xf32>
    %314 = vector.broadcast %25 : vector<1x128xf32> to vector<2x128xf32>
    %315 = arith.addf %313, %314 : vector<2x128xf32>
    %cst_75 = arith.constant 5.000000e-01 : f32
    %316 = vector.broadcast %cst_75 : f32 to vector<2x128xf32>
    %317 = arith.mulf %316, %315 : vector<2x128xf32>
    %318 = arith.select %31, %315, %317 : vector<2x128xi1>, vector<2x128xf32>
    %319 = math.tanh %318 : vector<2x128xf32>
    %cst_76 = arith.constant 5.000000e-01 : f32
    %320 = vector.broadcast %cst_76 : f32 to vector<2x128xf32>
    %321 = arith.mulf %320, %319 : vector<2x128xf32>
    %cst_77 = arith.constant 5.000000e-01 : f32
    %322 = vector.broadcast %cst_77 : f32 to vector<2x128xf32>
    %323 = arith.addf %321, %322 : vector<2x128xf32>
    %324 = arith.select %31, %319, %323 : vector<2x128xi1>, vector<2x128xf32>
    %325 = vector.extract_strided_slice %324 {offsets = [0, 0], sizes = [2, 32], strides = [1, 1]} : vector<2x128xf32> to vector<2x32xf32>
    %326 = vector.extract_strided_slice %324 {offsets = [0, 32], sizes = [2, 32], strides = [1, 1]} : vector<2x128xf32> to vector<2x32xf32>
    %327 = vector.extract_strided_slice %324 {offsets = [0, 64], sizes = [2, 32], strides = [1, 1]} : vector<2x128xf32> to vector<2x32xf32>
    %328 = vector.extract_strided_slice %324 {offsets = [0, 96], sizes = [2, 32], strides = [1, 1]} : vector<2x128xf32> to vector<2x32xf32>
    %329 = arith.mulf %326, %288 : vector<2x32xf32>
    %330 = arith.mulf %325, %327 : vector<2x32xf32>
    %331 = arith.addf %329, %330 : vector<2x32xf32>
    %332 = math.tanh %331 : vector<2x32xf32>
    %333 = arith.mulf %328, %332 : vector<2x32xf32>
    %c14 = arith.constant 14 : index
    %c0_78 = arith.constant 0 : index
    %334 = vector.load %arg34[%c14, %c0_78] : memref<16x128xf32, #tpu.memory_space<vmem>>, vector<2x128xf32>
    %cst_79 = arith.constant dense<0.000000e+00> : vector<2x128xf32>
    %335 = tpu.matmul %311, %23, %cst_79 {dimension_numbers = #tpu.dot_dimension_numbers<[1], [0], [0], [1], [0, 0, 1, 1], [], []>} : vector<2x32xf32>, vector<32x128xf32>, vector<2x128xf32> -> vector<2x128xf32>
    %336 = arith.addf %334, %335 : vector<2x128xf32>
    %cst_80 = arith.constant 5.000000e-01 : f32
    %337 = vector.broadcast %cst_80 : f32 to vector<2x128xf32>
    %338 = arith.mulf %337, %336 : vector<2x128xf32>
    %339 = arith.select %31, %336, %338 : vector<2x128xi1>, vector<2x128xf32>
    %340 = math.tanh %339 : vector<2x128xf32>
    %cst_81 = arith.constant 5.000000e-01 : f32
    %341 = vector.broadcast %cst_81 : f32 to vector<2x128xf32>
    %342 = arith.mulf %341, %340 : vector<2x128xf32>
    %cst_82 = arith.constant 5.000000e-01 : f32
    %343 = vector.broadcast %cst_82 : f32 to vector<2x128xf32>
    %344 = arith.addf %342, %343 : vector<2x128xf32>
    %345 = arith.select %31, %340, %344 : vector<2x128xi1>, vector<2x128xf32>
    %346 = vector.extract_strided_slice %345 {offsets = [0, 0], sizes = [2, 32], strides = [1, 1]} : vector<2x128xf32> to vector<2x32xf32>
    %347 = vector.extract_strided_slice %345 {offsets = [0, 32], sizes = [2, 32], strides = [1, 1]} : vector<2x128xf32> to vector<2x32xf32>
    %348 = vector.extract_strided_slice %345 {offsets = [0, 64], sizes = [2, 32], strides = [1, 1]} : vector<2x128xf32> to vector<2x32xf32>
    %349 = vector.extract_strided_slice %345 {offsets = [0, 96], sizes = [2, 32], strides = [1, 1]} : vector<2x128xf32> to vector<2x32xf32>
    %350 = arith.mulf %347, %309 : vector<2x32xf32>
    %351 = arith.mulf %346, %348 : vector<2x32xf32>
    %352 = arith.addf %350, %351 : vector<2x32xf32>
    %353 = math.tanh %352 : vector<2x32xf32>
    %354 = arith.mulf %349, %353 : vector<2x32xf32>
    %355 = tpu.concatenate %354, %333 in 1 : vector<2x32xf32>, vector<2x32xf32> -> vector<2x64xf32>
    %cst_83 = arith.constant dense<0.000000e+00> : vector<2x128xf32>
    %356 = tpu.matmul %355, %24, %cst_83 {dimension_numbers = #tpu.dot_dimension_numbers<[1], [0], [0], [1], [0, 0, 1, 1], [], []>} : vector<2x64xf32>, vector<64x128xf32>, vector<2x128xf32> -> vector<2x128xf32>
    %357 = vector.broadcast %25 : vector<1x128xf32> to vector<2x128xf32>
    %358 = arith.addf %356, %357 : vector<2x128xf32>
    %cst_84 = arith.constant 5.000000e-01 : f32
    %359 = vector.broadcast %cst_84 : f32 to vector<2x128xf32>
    %360 = arith.mulf %359, %358 : vector<2x128xf32>
    %361 = arith.select %31, %358, %360 : vector<2x128xi1>, vector<2x128xf32>
    %362 = math.tanh %361 : vector<2x128xf32>
    %cst_85 = arith.constant 5.000000e-01 : f32
    %363 = vector.broadcast %cst_85 : f32 to vector<2x128xf32>
    %364 = arith.mulf %363, %362 : vector<2x128xf32>
    %cst_86 = arith.constant 5.000000e-01 : f32
    %365 = vector.broadcast %cst_86 : f32 to vector<2x128xf32>
    %366 = arith.addf %364, %365 : vector<2x128xf32>
    %367 = arith.select %31, %362, %366 : vector<2x128xi1>, vector<2x128xf32>
    %368 = vector.extract_strided_slice %367 {offsets = [0, 0], sizes = [2, 32], strides = [1, 1]} : vector<2x128xf32> to vector<2x32xf32>
    %369 = vector.extract_strided_slice %367 {offsets = [0, 32], sizes = [2, 32], strides = [1, 1]} : vector<2x128xf32> to vector<2x32xf32>
    %370 = vector.extract_strided_slice %367 {offsets = [0, 64], sizes = [2, 32], strides = [1, 1]} : vector<2x128xf32> to vector<2x32xf32>
    %371 = vector.extract_strided_slice %367 {offsets = [0, 96], sizes = [2, 32], strides = [1, 1]} : vector<2x128xf32> to vector<2x32xf32>
    %372 = arith.mulf %369, %331 : vector<2x32xf32>
    %373 = arith.mulf %368, %370 : vector<2x32xf32>
    %374 = arith.addf %372, %373 : vector<2x32xf32>
    %375 = math.tanh %374 : vector<2x32xf32>
    %376 = arith.mulf %371, %375 : vector<2x32xf32>
    %c0_87 = arith.constant 0 : index
    %c0_88 = arith.constant 0 : index
    %377 = vector.load %arg6[%c0_87, %c0_88] : memref<32x96xf32, #tpu.memory_space<vmem>>, vector<32x96xf32>
    %c0_89 = arith.constant 0 : index
    %c0_90 = arith.constant 0 : index
    %378 = vector.load %arg7[%c0_89, %c0_90] : memref<1x96xf32, #tpu.memory_space<vmem>>, vector<1x96xf32>
    %cst_91 = arith.constant dense<0.000000e+00> : vector<2x96xf32>
    %379 = tpu.matmul %354, %377, %cst_91 {dimension_numbers = #tpu.dot_dimension_numbers<[1], [0], [0], [1], [0, 0, 1, 1], [], []>} : vector<2x32xf32>, vector<32x96xf32>, vector<2x96xf32> -> vector<2x96xf32>
    %380 = vector.broadcast %378 : vector<1x96xf32> to vector<2x96xf32>
    %381 = arith.addf %379, %380 : vector<2x96xf32>
    %cst_92 = arith.constant dense<0.000000e+00> : vector<2x96xf32>
    %382 = tpu.matmul %376, %377, %cst_92 {dimension_numbers = #tpu.dot_dimension_numbers<[1], [0], [0], [1], [0, 0, 1, 1], [], []>} : vector<2x32xf32>, vector<32x96xf32>, vector<2x96xf32> -> vector<2x96xf32>
    %383 = vector.broadcast %378 : vector<1x96xf32> to vector<2x96xf32>
    %384 = arith.addf %382, %383 : vector<2x96xf32>
    %385 = vector.extract_strided_slice %381 {offsets = [0, 0], sizes = [2, 32], strides = [1, 1]} : vector<2x96xf32> to vector<2x32xf32>
    %386 = vector.extract_strided_slice %381 {offsets = [0, 32], sizes = [2, 32], strides = [1, 1]} : vector<2x96xf32> to vector<2x32xf32>
    %387 = vector.extract_strided_slice %381 {offsets = [0, 64], sizes = [2, 32], strides = [1, 1]} : vector<2x96xf32> to vector<2x32xf32>
    %388 = vector.extract_strided_slice %384 {offsets = [0, 0], sizes = [2, 32], strides = [1, 1]} : vector<2x96xf32> to vector<2x32xf32>
    %389 = vector.extract_strided_slice %384 {offsets = [0, 32], sizes = [2, 32], strides = [1, 1]} : vector<2x96xf32> to vector<2x32xf32>
    %390 = vector.extract_strided_slice %384 {offsets = [0, 64], sizes = [2, 32], strides = [1, 1]} : vector<2x96xf32> to vector<2x32xf32>
    %391 = arith.mulf %385, %386 : vector<2x32xf32>
    %392 = arith.mulf %385, %389 : vector<2x32xf32>
    %393 = arith.mulf %388, %386 : vector<2x32xf32>
    %394 = arith.mulf %388, %389 : vector<2x32xf32>
    %395 = tpu.concatenate %391, %392, %393, %394 in 1 : vector<2x32xf32>, vector<2x32xf32>, vector<2x32xf32>, vector<2x32xf32> -> vector<2x128xf32>
    %c0_93 = arith.constant 0 : index
    %c0_94 = arith.constant 0 : index
    %396 = vector.load %arg10[%c0_93, %c0_94] : memref<128x32xf32, #tpu.memory_space<vmem>>, vector<128x32xf32>
    %cst_95 = arith.constant dense<0.000000e+00> : vector<2x32xf32>
    %397 = tpu.matmul %395, %396, %cst_95 {dimension_numbers = #tpu.dot_dimension_numbers<[1], [0], [0], [1], [0, 0, 1, 1], [], []>} : vector<2x128xf32>, vector<128x32xf32>, vector<2x32xf32> -> vector<2x32xf32>
    %398 = vector.extract_strided_slice %397 {offsets = [0, 0], sizes = [2, 8], strides = [1, 1]} : vector<2x32xf32> to vector<2x8xf32>
    %399 = vector.extract_strided_slice %397 {offsets = [0, 8], sizes = [2, 8], strides = [1, 1]} : vector<2x32xf32> to vector<2x8xf32>
    %400 = vector.extract_strided_slice %397 {offsets = [0, 16], sizes = [2, 8], strides = [1, 1]} : vector<2x32xf32> to vector<2x8xf32>
    %401 = vector.extract_strided_slice %397 {offsets = [0, 24], sizes = [2, 8], strides = [1, 1]} : vector<2x32xf32> to vector<2x8xf32>
    %402 = arith.maximumf %398, %399 : vector<2x8xf32>
    %403 = arith.subf %398, %402 : vector<2x8xf32>
    %404 = math.exp %403 : vector<2x8xf32>
    %405 = arith.subf %399, %402 : vector<2x8xf32>
    %406 = math.exp %405 : vector<2x8xf32>
    %407 = arith.maximumf %400, %401 : vector<2x8xf32>
    %408 = arith.subf %400, %407 : vector<2x8xf32>
    %409 = math.exp %408 : vector<2x8xf32>
    %410 = arith.subf %401, %407 : vector<2x8xf32>
    %411 = math.exp %410 : vector<2x8xf32>
    %412 = arith.addf %404, %406 : vector<2x8xf32>
    %cst_96 = arith.constant 1.000000e+00 : f32
    %413 = vector.broadcast %cst_96 : f32 to vector<2x8xf32>
    %414 = arith.divf %413, %412 : vector<2x8xf32>
    %415 = arith.addf %409, %411 : vector<2x8xf32>
    %cst_97 = arith.constant 1.000000e+00 : f32
    %416 = vector.broadcast %cst_97 : f32 to vector<2x8xf32>
    %417 = arith.divf %416, %415 : vector<2x8xf32>
    %418 = arith.mulf %404, %414 : vector<2x8xf32>
    %419 = arith.mulf %406, %414 : vector<2x8xf32>
    %420 = arith.mulf %409, %417 : vector<2x8xf32>
    %421 = arith.mulf %411, %417 : vector<2x8xf32>
    %422 = tpu.concatenate %418, %419, %420, %421 in 1 : vector<2x8xf32>, vector<2x8xf32>, vector<2x8xf32>, vector<2x8xf32> -> vector<2x32xf32>
    %c0_98 = arith.constant 0 : index
    %c0_99 = arith.constant 0 : index
    %423 = vector.load %arg11[%c0_98, %c0_99] : memref<32x128xf32, #tpu.memory_space<vmem>>, vector<32x128xf32>
    %cst_100 = arith.constant dense<0.000000e+00> : vector<2x128xf32>
    %424 = tpu.matmul %422, %423, %cst_100 {dimension_numbers = #tpu.dot_dimension_numbers<[1], [0], [0], [1], [0, 0, 1, 1], [], []>} : vector<2x32xf32>, vector<32x128xf32>, vector<2x128xf32> -> vector<2x128xf32>
    %425 = vector.extract_strided_slice %424 {offsets = [0, 0], sizes = [2, 32], strides = [1, 1]} : vector<2x128xf32> to vector<2x32xf32>
    %426 = arith.mulf %425, %387 : vector<2x32xf32>
    %427 = vector.extract_strided_slice %424 {offsets = [0, 32], sizes = [2, 32], strides = [1, 1]} : vector<2x128xf32> to vector<2x32xf32>
    %428 = arith.mulf %427, %390 : vector<2x32xf32>
    %429 = arith.addf %426, %428 : vector<2x32xf32>
    %430 = vector.extract_strided_slice %424 {offsets = [0, 64], sizes = [2, 32], strides = [1, 1]} : vector<2x128xf32> to vector<2x32xf32>
    %431 = arith.mulf %430, %387 : vector<2x32xf32>
    %432 = vector.extract_strided_slice %424 {offsets = [0, 96], sizes = [2, 32], strides = [1, 1]} : vector<2x128xf32> to vector<2x32xf32>
    %433 = arith.mulf %432, %390 : vector<2x32xf32>
    %434 = arith.addf %431, %433 : vector<2x32xf32>
    %c0_101 = arith.constant 0 : index
    %c0_102 = arith.constant 0 : index
    %435 = vector.load %arg8[%c0_101, %c0_102] : memref<32x32xf32, #tpu.memory_space<vmem>>, vector<32x32xf32>
    %c0_103 = arith.constant 0 : index
    %c0_104 = arith.constant 0 : index
    %436 = vector.load %arg9[%c0_103, %c0_104] : memref<1x32xf32, #tpu.memory_space<vmem>>, vector<1x32xf32>
    %cst_105 = arith.constant dense<0.000000e+00> : vector<2x32xf32>
    %437 = tpu.matmul %429, %435, %cst_105 {dimension_numbers = #tpu.dot_dimension_numbers<[1], [0], [0], [1], [0, 0, 1, 1], [], []>} : vector<2x32xf32>, vector<32x32xf32>, vector<2x32xf32> -> vector<2x32xf32>
    %438 = vector.broadcast %436 : vector<1x32xf32> to vector<2x32xf32>
    %439 = arith.addf %437, %438 : vector<2x32xf32>
    %cst_106 = arith.constant dense<0.000000e+00> : vector<2x32xf32>
    %440 = tpu.matmul %434, %435, %cst_106 {dimension_numbers = #tpu.dot_dimension_numbers<[1], [0], [0], [1], [0, 0, 1, 1], [], []>} : vector<2x32xf32>, vector<32x32xf32>, vector<2x32xf32> -> vector<2x32xf32>
    %441 = vector.broadcast %436 : vector<1x32xf32> to vector<2x32xf32>
    %442 = arith.addf %440, %441 : vector<2x32xf32>
    %443 = tpu.concatenate %439, %442 in 1 : vector<2x32xf32>, vector<2x32xf32> -> vector<2x64xf32>
    %c0_107 = arith.constant 0 : index
    %c0_108 = arith.constant 0 : index
    %444 = vector.load %arg12[%c0_107, %c0_108] : memref<64x32xf32, #tpu.memory_space<vmem>>, vector<64x32xf32>
    %cst_109 = arith.constant dense<0.000000e+00> : vector<2x32xf32>
    %445 = tpu.matmul %443, %444, %cst_109 {dimension_numbers = #tpu.dot_dimension_numbers<[1], [0], [0], [1], [0, 0, 1, 1], [], []>} : vector<2x64xf32>, vector<64x32xf32>, vector<2x32xf32> -> vector<2x32xf32>
    %c0_110 = arith.constant 0 : index
    %c0_111 = arith.constant 0 : index
    %446 = vector.load %arg13[%c0_110, %c0_111] : memref<1x32xf32, #tpu.memory_space<vmem>>, vector<1x32xf32>
    %447 = vector.broadcast %446 : vector<1x32xf32> to vector<2x32xf32>
    %448 = arith.addf %445, %447 : vector<2x32xf32>
    %449 = vector.extract_strided_slice %448 {offsets = [0, 0], sizes = [2, 16], strides = [1, 1]} : vector<2x32xf32> to vector<2x16xf32>
    %450 = vector.extract_strided_slice %448 {offsets = [0, 16], sizes = [2, 16], strides = [1, 1]} : vector<2x32xf32> to vector<2x16xf32>
    %c0_112 = arith.constant 0 : index
    %c0_113 = arith.constant 0 : index
    %451 = vector.load %arg14[%c0_112, %c0_113] : memref<2x16xf32, #tpu.memory_space<vmem>>, vector<2x16xf32>
    %cst_114 = arith.constant 5.000000e-01 : f32
    %452 = vector.broadcast %cst_114 : f32 to vector<2x16xf32>
    %453 = arith.mulf %452, %450 : vector<2x16xf32>
    %454 = math.exp %453 : vector<2x16xf32>
    %455 = arith.mulf %451, %454 : vector<2x16xf32>
    %456 = arith.addf %449, %455 : vector<2x16xf32>
    %c0_115 = arith.constant 0 : index
    %c0_116 = arith.constant 0 : index
    %457 = vector.load %arg32[%c0_115, %c0_116] : memref<2x16xf32, #tpu.memory_space<vmem>>, vector<2x16xf32>
    tpu.vector_store %arg32[%c0_115, %c0_116], %449 {strides = array<i32>} : memref<2x16xf32, #tpu.memory_space<vmem>>, vector<2x16xf32>,
    %c0_117 = arith.constant 0 : index
    %c0_118 = arith.constant 0 : index
    %458 = vector.load %arg33[%c0_117, %c0_118] : memref<2x16xf32, #tpu.memory_space<vmem>>, vector<2x16xf32>
    tpu.vector_store %arg33[%c0_117, %c0_118], %450 {strides = array<i32>} : memref<2x16xf32, #tpu.memory_space<vmem>>, vector<2x16xf32>,
    %c0_i32_119 = arith.constant 0 : i32
    %459 = tpu.memref_slice %arg43[%c0_i32_119] : memref<8x!tpu.dma_semaphore, #tpu.memory_space<semaphore_mem>> -> memref<1x!tpu.dma_semaphore, #tpu.memory_space<semaphore_mem>>
    %460 = tpu.memref_squeeze %459 : memref<1x!tpu.dma_semaphore, #tpu.memory_space<semaphore_mem>> -> memref<!tpu.dma_semaphore, #tpu.memory_space<semaphore_mem>>
    tpu.wait_dma2 semaphore(%460 : memref<!tpu.dma_semaphore, #tpu.memory_space<semaphore_mem>>) src(%arg23 : memref<16x512xbf16, #tpu.memory_space<any>>) dst(%arg35 : memref<16x512xbf16, #tpu.memory_space<vmem>>)
    %461 = arith.truncf %456 : vector<2x16xf32> to vector<2x16xbf16>
    %c0_120 = arith.constant 0 : index
    %c0_121 = arith.constant 0 : index
    %462 = vector.load %arg35[%c0_120, %c0_121] : memref<16x512xbf16, #tpu.memory_space<vmem>>, vector<16x512xbf16>
    %cst_122 = arith.constant dense<0.000000e+00> : vector<2x512xf32>
    %463 = tpu.matmul %461, %462, %cst_122 {dimension_numbers = #tpu.dot_dimension_numbers<[1], [0], [0], [1], [0, 0, 1, 1], [], []>} : vector<2x16xbf16>, vector<16x512xbf16>, vector<2x512xf32> -> vector<2x512xf32>
    %c0_123 = arith.constant 0 : index
    %c0_124 = arith.constant 0 : index
    %464 = vector.load %arg15[%c0_123, %c0_124] : memref<1x512xf32, #tpu.memory_space<vmem>>, vector<1x512xf32>
    %465 = vector.broadcast %464 : vector<1x512xf32> to vector<2x512xf32>
    %466 = arith.addf %463, %465 : vector<2x512xf32>
    %cst_125 = arith.constant 0.000000e+00 : f32
    %467 = vector.broadcast %cst_125 : f32 to vector<2x512xf32>
    %468 = arith.maximumf %466, %467 : vector<2x512xf32>
    %c1_i32_126 = arith.constant 1 : i32
    %469 = tpu.memref_slice %arg43[%c1_i32_126] : memref<8x!tpu.dma_semaphore, #tpu.memory_space<semaphore_mem>> -> memref<1x!tpu.dma_semaphore, #tpu.memory_space<semaphore_mem>>
    %470 = tpu.memref_squeeze %469 : memref<1x!tpu.dma_semaphore, #tpu.memory_space<semaphore_mem>> -> memref<!tpu.dma_semaphore, #tpu.memory_space<semaphore_mem>>
    tpu.wait_dma2 semaphore(%470 : memref<!tpu.dma_semaphore, #tpu.memory_space<semaphore_mem>>) src(%arg24 : memref<512x512xbf16, #tpu.memory_space<any>>) dst(%arg36 : memref<512x512xbf16, #tpu.memory_space<vmem>>)
    %471 = arith.truncf %468 : vector<2x512xf32> to vector<2x512xbf16>
    %c0_127 = arith.constant 0 : index
    %c0_128 = arith.constant 0 : index
    %472 = vector.load %arg36[%c0_127, %c0_128] : memref<512x512xbf16, #tpu.memory_space<vmem>>, vector<512x512xbf16>
    %cst_129 = arith.constant dense<0.000000e+00> : vector<2x512xf32>
    %473 = tpu.matmul %471, %472, %cst_129 {dimension_numbers = #tpu.dot_dimension_numbers<[1], [0], [0], [1], [0, 0, 1, 1], [], []>} : vector<2x512xbf16>, vector<512x512xbf16>, vector<2x512xf32> -> vector<2x512xf32>
    %c0_130 = arith.constant 0 : index
    %c0_131 = arith.constant 0 : index
    %474 = vector.load %arg16[%c0_130, %c0_131] : memref<1x512xf32, #tpu.memory_space<vmem>>, vector<1x512xf32>
    %475 = vector.broadcast %474 : vector<1x512xf32> to vector<2x512xf32>
    %476 = arith.addf %473, %475 : vector<2x512xf32>
    %cst_132 = arith.constant 0.000000e+00 : f32
    %477 = vector.broadcast %cst_132 : f32 to vector<2x512xf32>
    %478 = arith.maximumf %476, %477 : vector<2x512xf32>
    %c2_i32_133 = arith.constant 2 : i32
    %479 = tpu.memref_slice %arg43[%c2_i32_133] : memref<8x!tpu.dma_semaphore, #tpu.memory_space<semaphore_mem>> -> memref<1x!tpu.dma_semaphore, #tpu.memory_space<semaphore_mem>>
    %480 = tpu.memref_squeeze %479 : memref<1x!tpu.dma_semaphore, #tpu.memory_space<semaphore_mem>> -> memref<!tpu.dma_semaphore, #tpu.memory_space<semaphore_mem>>
    tpu.wait_dma2 semaphore(%480 : memref<!tpu.dma_semaphore, #tpu.memory_space<semaphore_mem>>) src(%arg25 : memref<512x256xbf16, #tpu.memory_space<any>>) dst(%arg37 : memref<512x256xbf16, #tpu.memory_space<vmem>>)
    %481 = arith.truncf %478 : vector<2x512xf32> to vector<2x512xbf16>
    %c0_134 = arith.constant 0 : index
    %c0_135 = arith.constant 0 : index
    %482 = vector.load %arg37[%c0_134, %c0_135] : memref<512x256xbf16, #tpu.memory_space<vmem>>, vector<512x256xbf16>
    %cst_136 = arith.constant dense<0.000000e+00> : vector<2x256xf32>
    %483 = tpu.matmul %481, %482, %cst_136 {dimension_numbers = #tpu.dot_dimension_numbers<[1], [0], [0], [1], [0, 0, 1, 1], [], []>} : vector<2x512xbf16>, vector<512x256xbf16>, vector<2x256xf32> -> vector<2x256xf32>
    %c0_137 = arith.constant 0 : index
    %c0_138 = arith.constant 0 : index
    %484 = vector.load %arg17[%c0_137, %c0_138] : memref<1x256xf32, #tpu.memory_space<vmem>>, vector<1x256xf32>
    %485 = vector.broadcast %484 : vector<1x256xf32> to vector<2x256xf32>
    %486 = arith.addf %483, %485 : vector<2x256xf32>
    %cst_139 = arith.constant 0.000000e+00 : f32
    %487 = vector.broadcast %cst_139 : f32 to vector<2x256xf32>
    %488 = arith.maximumf %486, %487 : vector<2x256xf32>
    %c3_i32_140 = arith.constant 3 : i32
    %489 = tpu.memref_slice %arg43[%c3_i32_140] : memref<8x!tpu.dma_semaphore, #tpu.memory_space<semaphore_mem>> -> memref<1x!tpu.dma_semaphore, #tpu.memory_space<semaphore_mem>>
    %490 = tpu.memref_squeeze %489 : memref<1x!tpu.dma_semaphore, #tpu.memory_space<semaphore_mem>> -> memref<!tpu.dma_semaphore, #tpu.memory_space<semaphore_mem>>
    tpu.wait_dma2 semaphore(%490 : memref<!tpu.dma_semaphore, #tpu.memory_space<semaphore_mem>>) src(%arg26 : memref<256x128xbf16, #tpu.memory_space<any>>) dst(%arg38 : memref<256x128xbf16, #tpu.memory_space<vmem>>)
    %491 = arith.truncf %488 : vector<2x256xf32> to vector<2x256xbf16>
    %c0_141 = arith.constant 0 : index
    %c0_142 = arith.constant 0 : index
    %492 = vector.load %arg38[%c0_141, %c0_142] : memref<256x128xbf16, #tpu.memory_space<vmem>>, vector<256x128xbf16>
    %cst_143 = arith.constant dense<0.000000e+00> : vector<2x128xf32>
    %493 = tpu.matmul %491, %492, %cst_143 {dimension_numbers = #tpu.dot_dimension_numbers<[1], [0], [0], [1], [0, 0, 1, 1], [], []>} : vector<2x256xbf16>, vector<256x128xbf16>, vector<2x128xf32> -> vector<2x128xf32>
    %c0_144 = arith.constant 0 : index
    %c0_145 = arith.constant 0 : index
    %494 = vector.load %arg18[%c0_144, %c0_145] : memref<1x128xf32, #tpu.memory_space<vmem>>, vector<1x128xf32>
    %495 = vector.broadcast %494 : vector<1x128xf32> to vector<2x128xf32>
    %496 = arith.addf %493, %495 : vector<2x128xf32>
    %cst_146 = arith.constant 0.000000e+00 : f32
    %497 = vector.broadcast %cst_146 : f32 to vector<2x128xf32>
    %498 = arith.maximumf %496, %497 : vector<2x128xf32>
    %c4_i32_147 = arith.constant 4 : i32
    %499 = tpu.memref_slice %arg43[%c4_i32_147] : memref<8x!tpu.dma_semaphore, #tpu.memory_space<semaphore_mem>> -> memref<1x!tpu.dma_semaphore, #tpu.memory_space<semaphore_mem>>
    %500 = tpu.memref_squeeze %499 : memref<1x!tpu.dma_semaphore, #tpu.memory_space<semaphore_mem>> -> memref<!tpu.dma_semaphore, #tpu.memory_space<semaphore_mem>>
    tpu.wait_dma2 semaphore(%500 : memref<!tpu.dma_semaphore, #tpu.memory_space<semaphore_mem>>) src(%arg27 : memref<128x64xbf16, #tpu.memory_space<any>>) dst(%arg39 : memref<128x64xbf16, #tpu.memory_space<vmem>>)
    %501 = arith.truncf %498 : vector<2x128xf32> to vector<2x128xbf16>
    %c0_148 = arith.constant 0 : index
    %c0_149 = arith.constant 0 : index
    %502 = vector.load %arg39[%c0_148, %c0_149] : memref<128x64xbf16, #tpu.memory_space<vmem>>, vector<128x64xbf16>
    %cst_150 = arith.constant dense<0.000000e+00> : vector<2x64xf32>
    %503 = tpu.matmul %501, %502, %cst_150 {dimension_numbers = #tpu.dot_dimension_numbers<[1], [0], [0], [1], [0, 0, 1, 1], [], []>} : vector<2x128xbf16>, vector<128x64xbf16>, vector<2x64xf32> -> vector<2x64xf32>
    %c0_151 = arith.constant 0 : index
    %c0_152 = arith.constant 0 : index
    %504 = vector.load %arg19[%c0_151, %c0_152] : memref<1x64xf32, #tpu.memory_space<vmem>>, vector<1x64xf32>
    %505 = vector.broadcast %504 : vector<1x64xf32> to vector<2x64xf32>
    %506 = arith.addf %503, %505 : vector<2x64xf32>
    %cst_153 = arith.constant 0.000000e+00 : f32
    %507 = vector.broadcast %cst_153 : f32 to vector<2x64xf32>
    %508 = arith.maximumf %506, %507 : vector<2x64xf32>
    %c5_i32_154 = arith.constant 5 : i32
    %509 = tpu.memref_slice %arg43[%c5_i32_154] : memref<8x!tpu.dma_semaphore, #tpu.memory_space<semaphore_mem>> -> memref<1x!tpu.dma_semaphore, #tpu.memory_space<semaphore_mem>>
    %510 = tpu.memref_squeeze %509 : memref<1x!tpu.dma_semaphore, #tpu.memory_space<semaphore_mem>> -> memref<!tpu.dma_semaphore, #tpu.memory_space<semaphore_mem>>
    tpu.wait_dma2 semaphore(%510 : memref<!tpu.dma_semaphore, #tpu.memory_space<semaphore_mem>>) src(%arg28 : memref<64x32xbf16, #tpu.memory_space<any>>) dst(%arg40 : memref<64x32xbf16, #tpu.memory_space<vmem>>)
    %511 = arith.truncf %508 : vector<2x64xf32> to vector<2x64xbf16>
    %c0_155 = arith.constant 0 : index
    %c0_156 = arith.constant 0 : index
    %512 = vector.load %arg40[%c0_155, %c0_156] : memref<64x32xbf16, #tpu.memory_space<vmem>>, vector<64x32xbf16>
    %cst_157 = arith.constant dense<0.000000e+00> : vector<2x32xf32>
    %513 = tpu.matmul %511, %512, %cst_157 {dimension_numbers = #tpu.dot_dimension_numbers<[1], [0], [0], [1], [0, 0, 1, 1], [], []>} : vector<2x64xbf16>, vector<64x32xbf16>, vector<2x32xf32> -> vector<2x32xf32>
    %c0_158 = arith.constant 0 : index
    %c0_159 = arith.constant 0 : index
    %514 = vector.load %arg20[%c0_158, %c0_159] : memref<1x32xf32, #tpu.memory_space<vmem>>, vector<1x32xf32>
    %515 = vector.broadcast %514 : vector<1x32xf32> to vector<2x32xf32>
    %516 = arith.addf %513, %515 : vector<2x32xf32>
    %cst_160 = arith.constant 0.000000e+00 : f32
    %517 = vector.broadcast %cst_160 : f32 to vector<2x32xf32>
    %518 = arith.maximumf %516, %517 : vector<2x32xf32>
    %c6_i32_161 = arith.constant 6 : i32
    %519 = tpu.memref_slice %arg43[%c6_i32_161] : memref<8x!tpu.dma_semaphore, #tpu.memory_space<semaphore_mem>> -> memref<1x!tpu.dma_semaphore, #tpu.memory_space<semaphore_mem>>
    %520 = tpu.memref_squeeze %519 : memref<1x!tpu.dma_semaphore, #tpu.memory_space<semaphore_mem>> -> memref<!tpu.dma_semaphore, #tpu.memory_space<semaphore_mem>>
    tpu.wait_dma2 semaphore(%520 : memref<!tpu.dma_semaphore, #tpu.memory_space<semaphore_mem>>) src(%arg29 : memref<32x16xbf16, #tpu.memory_space<any>>) dst(%arg41 : memref<32x16xbf16, #tpu.memory_space<vmem>>)
    %521 = arith.truncf %518 : vector<2x32xf32> to vector<2x32xbf16>
    %c0_162 = arith.constant 0 : index
    %c0_163 = arith.constant 0 : index
    %522 = vector.load %arg41[%c0_162, %c0_163] : memref<32x16xbf16, #tpu.memory_space<vmem>>, vector<32x16xbf16>
    %cst_164 = arith.constant dense<0.000000e+00> : vector<2x16xf32>
    %523 = tpu.matmul %521, %522, %cst_164 {dimension_numbers = #tpu.dot_dimension_numbers<[1], [0], [0], [1], [0, 0, 1, 1], [], []>} : vector<2x32xbf16>, vector<32x16xbf16>, vector<2x16xf32> -> vector<2x16xf32>
    %c0_165 = arith.constant 0 : index
    %c0_166 = arith.constant 0 : index
    %524 = vector.load %arg21[%c0_165, %c0_166] : memref<1x16xf32, #tpu.memory_space<vmem>>, vector<1x16xf32>
    %525 = vector.broadcast %524 : vector<1x16xf32> to vector<2x16xf32>
    %526 = arith.addf %523, %525 : vector<2x16xf32>
    %cst_167 = arith.constant 0.000000e+00 : f32
    %527 = vector.broadcast %cst_167 : f32 to vector<2x16xf32>
    %528 = arith.maximumf %526, %527 : vector<2x16xf32>
    %c7_i32_168 = arith.constant 7 : i32
    %529 = tpu.memref_slice %arg43[%c7_i32_168] : memref<8x!tpu.dma_semaphore, #tpu.memory_space<semaphore_mem>> -> memref<1x!tpu.dma_semaphore, #tpu.memory_space<semaphore_mem>>
    %530 = tpu.memref_squeeze %529 : memref<1x!tpu.dma_semaphore, #tpu.memory_space<semaphore_mem>> -> memref<!tpu.dma_semaphore, #tpu.memory_space<semaphore_mem>>
    tpu.wait_dma2 semaphore(%530 : memref<!tpu.dma_semaphore, #tpu.memory_space<semaphore_mem>>) src(%arg30 : memref<16x8xbf16, #tpu.memory_space<any>>) dst(%arg42 : memref<16x8xbf16, #tpu.memory_space<vmem>>)
    %531 = arith.truncf %528 : vector<2x16xf32> to vector<2x16xbf16>
    %c0_169 = arith.constant 0 : index
    %c0_170 = arith.constant 0 : index
    %532 = vector.load %arg42[%c0_169, %c0_170] : memref<16x8xbf16, #tpu.memory_space<vmem>>, vector<16x8xbf16>
    %cst_171 = arith.constant dense<0.000000e+00> : vector<2x8xf32>
    %533 = tpu.matmul %531, %532, %cst_171 {dimension_numbers = #tpu.dot_dimension_numbers<[1], [0], [0], [1], [0, 0, 1, 1], [], []>} : vector<2x16xbf16>, vector<16x8xbf16>, vector<2x8xf32> -> vector<2x8xf32>
    %c0_172 = arith.constant 0 : index
    %c0_173 = arith.constant 0 : index
    %534 = vector.load %arg22[%c0_172, %c0_173] : memref<1x8xf32, #tpu.memory_space<vmem>>, vector<1x8xf32>
    %535 = vector.broadcast %534 : vector<1x8xf32> to vector<2x8xf32>
    %536 = arith.addf %533, %535 : vector<2x8xf32>
    %c0_174 = arith.constant 0 : index
    %c0_175 = arith.constant 0 : index
    %537 = vector.load %arg31[%c0_174, %c0_175] : memref<2x8xf32, #tpu.memory_space<vmem>>, vector<2x8xf32>
    tpu.vector_store %arg31[%c0_174, %c0_175], %536 {strides = array<i32>} : memref<2x8xf32, #tpu.memory_space<vmem>>, vector<2x8xf32>,
    return
  }
}

</mosaic_0001>

<llo_original>
// kernel: lstm_vae_instance_forward.1
$region0: #{lstm_vae_instance_forward.1}
  #allocation0 [shape = 'u32[]', space=smem, size = 0x4, offset = 0x4, fixed_abs, tag = 'smem constant byte address 0x4 - core index']
  #allocation1 [shape = 'u32[144,128]{1,0:T(1,128)}', space=vmem, size = 0x12000, scoped, tag = 'internal scratch']
  #allocation2 [shape = 'f32[16,128]{1,0:T(8,128)}', space=vmem, size = 0x2000, scoped, tag = 'scratch operand']
  #allocation3 [shape = 'bf16[16,512]{1,0:T(16,128)(2,1)}', space=vmem, size = 0x4000, scoped, tag = 'scratch operand']
  #allocation4 [shape = 'bf16[512,512]{1,0:T(16,128)(2,1)}', space=vmem, size = 0x80000, scoped, tag = 'scratch operand']
  #allocation5 [shape = 'bf16[512,256]{1,0:T(16,128)(2,1)}', space=vmem, size = 0x40000, scoped, tag = 'scratch operand']
  #allocation6 [shape = 'bf16[256,128]{1,0:T(16,128)(2,1)}', space=vmem, size = 0x10000, scoped, tag = 'scratch operand']
  #allocation7 [shape = 'bf16[128,64]{1,0:T(16,128)(2,1)}', space=vmem, size = 0x8000, scoped, tag = 'scratch operand']
  #allocation8 [shape = 'bf16[64,32]{1,0:T(16,128)(2,1)}', space=vmem, size = 0x4000, scoped, tag = 'scratch operand']
  #allocation9 [shape = 'bf16[32,16]{1,0:T(16,128)(2,1)}', space=vmem, size = 0x2000, scoped, tag = 'scratch operand']
  #allocation10 [shape = 'bf16[16,8]{1,0:T(16,128)(2,1)}', space=vmem, size = 0x1000, scoped, tag = 'scratch operand']
  #allocation11 [shape = 's32[8]{0}', space=sflag, size = 0x20, scoped, tag = 'scratch operand']
  #allocation19 [shape = 's32[]', space=sflag, size = 0x4, offset = 0, fixed_abs, tag = 'sflag constant byte address 0x0 - dummy sync flag']
  #allocation20 [shape = 's32[]', space=sflag, size = 0x4, offset = 0, fixed_abs, tag = 'sflag constant byte address 0x0 - dummy sync flag']
  #allocation22 [shape = 's32[]', space=sflag, size = 0x4, offset = 0, fixed_abs, tag = 'sflag constant byte address 0x0 - dummy sync flag']
  #allocation24 [shape = 's32[]', space=sflag, size = 0x4, offset = 0, fixed_abs, tag = 'sflag constant byte address 0x0 - dummy sync flag']
  #allocation25 [shape = 's32[]', space=sflag, size = 0x4, offset = 0, fixed_abs, tag = 'sflag constant byte address 0x0 - dummy sync flag']
  #allocation26 [shape = 's32[]', space=sflag, size = 0x4, offset = 0, fixed_abs, tag = 'sflag constant byte address 0x0 - dummy sync flag']
  #allocation27 [shape = 's32[]', space=sflag, size = 0x4, offset = 0, fixed_abs, tag = 'sflag constant byte address 0x0 - dummy sync flag']
  #allocation28 [shape = 's32[]', space=sflag, size = 0x4, offset = 0, fixed_abs, tag = 'sflag constant byte address 0x0 - dummy sync flag']
  %s0 = inlined_call_operand.smem [shape: u32[34], index: -1, kind: input, shape index: {}]
  %s1 = sld [smem:[%s0]]
  %s2 = scalar_lea.smem %s0, 1
  %s3 = sld [smem:[%s2]]
  %s4 = scalar_lea.smem %s0, 2
  %s5 = sld [smem:[%s4]]
  %s6 = scalar_lea.smem %s0, 3
  %s7 = sld [smem:[%s6]]
  %s8 = scalar_lea.smem %s0, 4
  %s9 = sld [smem:[%s8]]
  %s10 = scalar_lea.smem %s0, 5
  %s11 = sld [smem:[%s10]]
  %s12 = scalar_lea.smem %s0, 6
  %s13 = sld [smem:[%s12]]
  %s14 = scalar_lea.smem %s0, 7
  %s15 = sld [smem:[%s14]]
  %s16 = scalar_lea.smem %s0, 8
  %s17 = sld [smem:[%s16]]
  %s18 = scalar_lea.smem %s0, 9
  %s19 = sld [smem:[%s18]]
  %s20 = scalar_lea.smem %s0, 10
  %s21 = sld [smem:[%s20]]
  %s22 = scalar_lea.smem %s0, 11
  %s23 = sld [smem:[%s22]]
  %s24 = scalar_lea.smem %s0, 12
  %s25 = sld [smem:[%s24]]
  %s26 = scalar_lea.smem %s0, 13
  %s27 = sld [smem:[%s26]]
  %s28 = scalar_lea.smem %s0, 14
  %s29 = sld [smem:[%s28]]
  %s30 = scalar_lea.smem %s0, 15
  %s31 = sld [smem:[%s30]]
  %s32 = scalar_lea.smem %s0, 16
  %s33 = sld [smem:[%s32]]
  %s34 = scalar_lea.smem %s0, 17
  %s35 = sld [smem:[%s34]]
  %s36 = scalar_lea.smem %s0, 18
  %s37 = sld [smem:[%s36]]
  %s38 = scalar_lea.smem %s0, 19
  %s39 = sld [smem:[%s38]]
  %s40 = scalar_lea.smem %s0, 20
  %s41 = sld [smem:[%s40]]
  %s42 = scalar_lea.smem %s0, 21
  %s43 = sld [smem:[%s42]]
  %s44 = scalar_lea.smem %s0, 22
  %s45 = sld [smem:[%s44]]
  %s46 = scalar_lea.smem %s0, 23
  %s47 = sld [smem:[%s46]]
  %s48 = scalar_lea.smem %s0, 24
  %s49 = sld [smem:[%s48]]
  %s50 = scalar_lea.smem %s0, 25
  %s51 = sld [smem:[%s50]]
  %s52 = scalar_lea.smem %s0, 26
  %s53 = sld [smem:[%s52]]
  %s54 = scalar_lea.smem %s0, 27
  %s55 = sld [smem:[%s54]]
  %s56 = scalar_lea.smem %s0, 28
  %s57 = sld [smem:[%s56]]
  %s58 = scalar_lea.smem %s0, 29
  %s59 = sld [smem:[%s58]]
  %s60 = scalar_lea.smem %s0, 30
  %s61 = sld [smem:[%s60]]
  %s62 = scalar_lea.smem %s0, 31
  %s63 = sld [smem:[%s62]]
  %s64 = scalar_lea.smem %s0, 32
  %s65 = sld [smem:[%s64]]
  %s66 = scalar_lea.smem %s0, 33
  %s67 = sld [smem:[%s66]]
  %68 = xla_tuple %s63, %s65, %s67
  %s69 = sld [smem:[#allocation0]]
  $region329: #{lstm_vae_instance_forward.1} parent=0
    _
  %s71 = ssub.s32 1, %s69
  %s72 = scalar_select 0, %s71, %s69
  $region1: #{lstm_vae_instance_forward.1} parent=0
    #allocation12 [shape = 'u8[2048]{0}', space=vmem, size = 0x800, scoped, tag = 'input window, operand 15, single buffered']
    #allocation13 [shape = 's32[1]{0}', space=sflag, size = 0x4, scoped, tag = 'scoped memory for lstm_vae_instance_forward.1']
    #allocation14 [shape = 's32[1]{0}', space=sflag, size = 0x4, scoped, tag = 'scoped memory for lstm_vae_instance_forward.1']
    #allocation15 [shape = 'u8[1024]{0}', space=vmem, size = 0x400, scoped, tag = 'output window, operand 0, single buffered']
    #allocation16 [shape = 'u8[1024]{0}', space=vmem, size = 0x400, scoped, tag = 'output window, operand 1, single buffered']
    #allocation17 [shape = 's32[1]{0}', space=sflag, size = 0x4, scoped, tag = 'scoped memory for lstm_vae_instance_forward.1']
    #allocation18 [shape = 'u8[1024]{0}', space=vmem, size = 0x400, scoped, tag = 'output window, operand 2, single buffered']
    #allocation21 [shape = 'u32[9]{0}', space=smem, size = 0x24, scoped, tag = 'DMA stride descriptor']
    #allocation23 [shape = 'u32[9]{0}', space=smem, size = 0x24, scoped, tag = 'DMA stride descriptor']
    %73 = vsyncpa [#allocation13], 0
    %74 = vsyncpa [#allocation14], 0
    %75 = vsyncpa [#allocation17], 0
    // Predicated region
    $region2: #{lstm_vae_instance_forward.1} parent=1 // pred_check
      _
    $region3: #{lstm_vae_instance_forward.1} parent=1 // pred_check_branch
      %77 = sbr.rel (0) target = $region5
    $region4: #{lstm_vae_instance_forward.1} parent=1 // pred_region
      _
    $region5: #{lstm_vae_instance_forward.1} parent=1 // pred_fallthru
      _
    // Predicated region
    $region6: #{lstm_vae_instance_forward.1} parent=1 // pred_check
      _
    $region7: #{lstm_vae_instance_forward.1} parent=1 // pred_check_branch
      %79 = sbr.rel (0) target = $region9
    $region8: #{lstm_vae_instance_forward.1} parent=1 // pred_region
      _
    $region9: #{lstm_vae_instance_forward.1} parent=1 // pred_fallthru
      _
    // Predicated region
    $region10: #{lstm_vae_instance_forward.1} parent=1 // pred_check
      _
    $region11: #{lstm_vae_instance_forward.1} parent=1 // pred_check_branch
      %81 = sbr.rel (0) target = $region13
    $region12: #{lstm_vae_instance_forward.1} parent=1 // pred_region
      _
    $region13: #{lstm_vae_instance_forward.1} parent=1 // pred_fallthru
      _
    // Predicated region
    $region14: #{lstm_vae_instance_forward.1} parent=1 // pred_check
      _
    $region15: #{lstm_vae_instance_forward.1} parent=1 // pred_check_branch
      %83 = sbr.rel (0) target = $region17
    $region16: #{lstm_vae_instance_forward.1} parent=1 // pred_region
      _
    $region17: #{lstm_vae_instance_forward.1} parent=1 // pred_fallthru
      _
    // Predicated region
    $region18: #{lstm_vae_instance_forward.1} parent=1 // pred_check
      _
    $region19: #{lstm_vae_instance_forward.1} parent=1 // pred_check_branch
      %85 = sbr.rel (0) target = $region21
    $region20: #{lstm_vae_instance_forward.1} parent=1 // pred_region
      _
    $region21: #{lstm_vae_instance_forward.1} parent=1 // pred_fallthru
      _
    // Predicated region
    $region22: #{lstm_vae_instance_forward.1} parent=1 // pred_check
      _
    $region23: #{lstm_vae_instance_forward.1} parent=1 // pred_check_branch
      %87 = sbr.rel (0) target = $region25
    $region24: #{lstm_vae_instance_forward.1} parent=1 // pred_region
      _
    $region25: #{lstm_vae_instance_forward.1} parent=1 // pred_fallthru
      _
    // Predicated region
    $region26: #{lstm_vae_instance_forward.1} parent=1 // pred_check
      _
    $region27: #{lstm_vae_instance_forward.1} parent=1 // pred_check_branch
      %89 = sbr.rel (0) target = $region29
    $region28: #{lstm_vae_instance_forward.1} parent=1 // pred_region
      _
    $region29: #{lstm_vae_instance_forward.1} parent=1 // pred_fallthru
      _
    // Predicated region
    $region30: #{lstm_vae_instance_forward.1} parent=1 // pred_check
      _
    $region31: #{lstm_vae_instance_forward.1} parent=1 // pred_check_branch
      %91 = sbr.rel (0) target = $region33
    $region32: #{lstm_vae_instance_forward.1} parent=1 // pred_region
      _
    $region33: #{lstm_vae_instance_forward.1} parent=1 // pred_fallthru
      _
    // Predicated region
    $region34: #{lstm_vae_instance_forward.1} parent=1 // pred_check
      _
    $region35: #{lstm_vae_instance_forward.1} parent=1 // pred_check_branch
      %93 = sbr.rel (0) target = $region37
    $region36: #{lstm_vae_instance_forward.1} parent=1 // pred_region
      _
    $region37: #{lstm_vae_instance_forward.1} parent=1 // pred_fallthru
      _
    // Predicated region
    $region38: #{lstm_vae_instance_forward.1} parent=1 // pred_check
      _
    $region39: #{lstm_vae_instance_forward.1} parent=1 // pred_check_branch
      %95 = sbr.rel (0) target = $region41
    $region40: #{lstm_vae_instance_forward.1} parent=1 // pred_region
      _
    $region41: #{lstm_vae_instance_forward.1} parent=1 // pred_fallthru
      _
    // Predicated region
    $region42: #{lstm_vae_instance_forward.1} parent=1 // pred_check
      _
    $region43: #{lstm_vae_instance_forward.1} parent=1 // pred_check_branch
      %97 = sbr.rel (0) target = $region45
    $region44: #{lstm_vae_instance_forward.1} parent=1 // pred_region
      _
    $region45: #{lstm_vae_instance_forward.1} parent=1 // pred_fallthru
      _
    // Predicated region
    $region46: #{lstm_vae_instance_forward.1} parent=1 // pred_check
      _
    $region47: #{lstm_vae_instance_forward.1} parent=1 // pred_check_branch
      %99 = sbr.rel (0) target = $region49
    $region48: #{lstm_vae_instance_forward.1} parent=1 // pred_region
      _
    $region49: #{lstm_vae_instance_forward.1} parent=1 // pred_fallthru
      _
    // Predicated region
    $region50: #{lstm_vae_instance_forward.1} parent=1 // pred_check
      _
    $region51: #{lstm_vae_instance_forward.1} parent=1 // pred_check_branch
      %101 = sbr.rel (0) target = $region53
    $region52: #{lstm_vae_instance_forward.1} parent=1 // pred_region
      _
    $region53: #{lstm_vae_instance_forward.1} parent=1 // pred_fallthru
      _
    // Predicated region
    $region54: #{lstm_vae_instance_forward.1} parent=1 // pred_check
      _
    $region55: #{lstm_vae_instance_forward.1} parent=1 // pred_check_branch
      %103 = sbr.rel (0) target = $region57
    $region56: #{lstm_vae_instance_forward.1} parent=1 // pred_region
      _
    $region57: #{lstm_vae_instance_forward.1} parent=1 // pred_fallthru
      _
    // Predicated region
    $region58: #{lstm_vae_instance_forward.1} parent=1 // pred_check
      _
    $region59: #{lstm_vae_instance_forward.1} parent=1 // pred_check_branch
      %105 = sbr.rel (0) target = $region61
    $region60: #{lstm_vae_instance_forward.1} parent=1 // pred_region
      _
    $region61: #{lstm_vae_instance_forward.1} parent=1 // pred_fallthru
      _
    // Predicated region
    $region62: #{lstm_vae_instance_forward.1} parent=1 // pred_check
      _
    $region63: #{lstm_vae_instance_forward.1} parent=1 // pred_check_branch
      %107 = sbr.rel (0) target = $region65
    $region64: #{lstm_vae_instance_forward.1} parent=1 // pred_region
      %s109 = ssub.s32 64, 64
      %110 = vsyncadd [#allocation13], %s109
      %s112 = sshll.u32 [#allocation12], 4
      %s113 = int_to_ptr.vmem [resolvable:$true] %s112
      %115 = dma.hbm_to_vmem [thread:$0]  %s31, 64, %s113, [#allocation13]
    $region65: #{lstm_vae_instance_forward.1} parent=1 // pred_fallthru
      _
    // Predicated region
    $region66: #{lstm_vae_instance_forward.1} parent=1 // pred_check
      _
    $region67: #{lstm_vae_instance_forward.1} parent=1 // pred_check_branch
      %117 = sbr.rel (0) target = $region69
    $region68: #{lstm_vae_instance_forward.1} parent=1 // pred_region
      _
    $region69: #{lstm_vae_instance_forward.1} parent=1 // pred_fallthru
      _
    // Predicated region
    $region70: #{lstm_vae_instance_forward.1} parent=1 // pred_check
      _
    $region71: #{lstm_vae_instance_forward.1} parent=1 // pred_check_branch
      %119 = sbr.rel (0) target = $region73
    $region72: #{lstm_vae_instance_forward.1} parent=1 // pred_region
      _
    $region73: #{lstm_vae_instance_forward.1} parent=1 // pred_fallthru
      _
    // Predicated region
    $region74: #{lstm_vae_instance_forward.1} parent=1 // pred_check
      _
    $region75: #{lstm_vae_instance_forward.1} parent=1 // pred_check_branch
      %121 = sbr.rel (0) target = $region77
    $region76: #{lstm_vae_instance_forward.1} parent=1 // pred_region
      _
    $region77: #{lstm_vae_instance_forward.1} parent=1 // pred_fallthru
      _
    // Predicated region
    $region78: #{lstm_vae_instance_forward.1} parent=1 // pred_check
      _
    $region79: #{lstm_vae_instance_forward.1} parent=1 // pred_check_branch
      %123 = sbr.rel (0) target = $region81
    $region80: #{lstm_vae_instance_forward.1} parent=1 // pred_region
      _
    $region81: #{lstm_vae_instance_forward.1} parent=1 // pred_fallthru
      _
    // Predicated region
    $region82: #{lstm_vae_instance_forward.1} parent=1 // pred_check
      _
    $region83: #{lstm_vae_instance_forward.1} parent=1 // pred_check_branch
      %125 = sbr.rel (0) target = $region85
    $region84: #{lstm_vae_instance_forward.1} parent=1 // pred_region
      _
    $region85: #{lstm_vae_instance_forward.1} parent=1 // pred_fallthru
      _
    // Predicated region
    $region86: #{lstm_vae_instance_forward.1} parent=1 // pred_check
      _
    $region87: #{lstm_vae_instance_forward.1} parent=1 // pred_check_branch
      %127 = sbr.rel (0) target = $region89
    $region88: #{lstm_vae_instance_forward.1} parent=1 // pred_region
      _
    $region89: #{lstm_vae_instance_forward.1} parent=1 // pred_fallthru
      _
    // Predicated region
    $region90: #{lstm_vae_instance_forward.1} parent=1 // pred_check
      _
    $region91: #{lstm_vae_instance_forward.1} parent=1 // pred_check_branch
      %129 = sbr.rel (0) target = $region93
    $region92: #{lstm_vae_instance_forward.1} parent=1 // pred_region
      _
    $region93: #{lstm_vae_instance_forward.1} parent=1 // pred_fallthru
      _
    // Predicated region
    $region94: #{lstm_vae_instance_forward.1} parent=1 // pred_check
      _
    $region95: #{lstm_vae_instance_forward.1} parent=1 // pred_check_branch
      %131 = sbr.rel (0) target = $region97
    $region96: #{lstm_vae_instance_forward.1} parent=1 // pred_region
      %132 = dma.done [#allocation13], 64
    $region97: #{lstm_vae_instance_forward.1} parent=1 // pred_fallthru
      _
    %p135 = scmp.lt.u32.totalorder 4, 8
    %p136 = pneg %p135
    // Predicated region
    $region98: #{lstm_vae_instance_forward.1} parent=1 // pred_check
      _
    $region99: #{lstm_vae_instance_forward.1} parent=1 // pred_check_branch
      %138 = sbr.rel (%p135) target = $region101
    $region100: #{lstm_vae_instance_forward.1} parent=1 // pred_region
      %s167 = sand.u32 4, 7
      %p168 = scmp.eq.s32.totalorder %s167, 0
      %p169 = pneg %p168
      // Predicated region
      $region113: #{lstm_vae_instance_forward.1} parent=100 // pred_check
        _
      $region114: #{lstm_vae_instance_forward.1} parent=100 // pred_check_branch
        %171 = sbr.rel (%p168) target = $region116
      $region115: #{lstm_vae_instance_forward.1} parent=100 // pred_region
        %s172 = sand.u32 4, 7
        %s173 = ssub.s32 4, %s172
        %s174 = scalar_lea.vmem %s47, %s173
        %s175 = ssub.s32 4, %s172
        %s176 = scalar_lea.vmem [#allocation3], %s175
        loop: start=0, step=1, limit=1
        $region117: #{lstm_vae_instance_forward.1} parent=115 // loop_pre_header
          _
        $region118: #{lstm_vae_instance_forward.1} parent=115 // loop_header
          %s178 = sphi 0, %s182
          %p179 = scmp.ge.s32.totalorder %s178, 1
          %s183 = sphi %s47, %s47
          %s184 = sphi [#allocation3], [#allocation3]
        $region119: #{lstm_vae_instance_forward.1} parent=115 // loop_header_branch
          %181 = sbr.rel (%p179) target = $region123
        $region120: #{lstm_vae_instance_forward.1} parent=115 // loop_body
          _
        $region121: #{lstm_vae_instance_forward.1} parent=115 // loop_footer
          %s182 = sadd.s32 1, %s178
        $region122: #{lstm_vae_instance_forward.1} parent=115 // loop_footer_branch
          %177 = sbr.rel target = $region118
        $region123: #{lstm_vae_instance_forward.1} parent=115 // loop_exit
          _
        %s185 = sshllo.u32 0, %s172
        loop: start=0, step=1, limit=1
        $region124: #{lstm_vae_instance_forward.1} parent=115 // loop_pre_header
          _
        $region125: #{lstm_vae_instance_forward.1} parent=115 // loop_header
          %s187 = sphi 0, %s191
          %p188 = scmp.ge.s32.totalorder %s187, 1
          %s192 = sphi %s174, %s174
          %s193 = sphi %s176, %s176
        $region126: #{lstm_vae_instance_forward.1} parent=115 // loop_header_branch
          %190 = sbr.rel (%p188) target = $region130
        $region127: #{lstm_vae_instance_forward.1} parent=115 // loop_body
          %v194 = vld [vmem:[%s192] sm:%s185]
          %195 = vst [vmem:[%s193] sm:%s185] %v194
          %v196 = vld [vmem:[%s192 + $0x10] sm:%s185]
          %197 = vst [vmem:[%s193 + $0x4] sm:%s185] %v196
          %v198 = vld [vmem:[%s192 + $0x4] sm:%s185]
          %199 = vst [vmem:[%s193 + $0x8] sm:%s185] %v198
          %v200 = vld [vmem:[%s192 + $0x14] sm:%s185]
          %201 = vst [vmem:[%s193 + $0xc] sm:%s185] %v200
          %v202 = vld [vmem:[%s192 + $0x8] sm:%s185]
          %203 = vst [vmem:[%s193 + $0x10] sm:%s185] %v202
          %v204 = vld [vmem:[%s192 + $0x18] sm:%s185]
          %205 = vst [vmem:[%s193 + $0x14] sm:%s185] %v204
          %v206 = vld [vmem:[%s192 + $0xc] sm:%s185]
          %207 = vst [vmem:[%s193 + $0x18] sm:%s185] %v206
          %v208 = vld [vmem:[%s192 + $0x1c] sm:%s185]
          %209 = vst [vmem:[%s193 + $0x1c] sm:%s185] %v208
        $region128: #{lstm_vae_instance_forward.1} parent=115 // loop_footer
          %s191 = sadd.s32 1, %s187
        $region129: #{lstm_vae_instance_forward.1} parent=115 // loop_footer_branch
          %186 = sbr.rel target = $region125
        $region130: #{lstm_vae_instance_forward.1} parent=115 // loop_exit
          _
      $region116: #{lstm_vae_instance_forward.1} parent=100 // pred_fallthru
        _
    $region101: #{lstm_vae_instance_forward.1} parent=1 // pred_fallthru
      _
    // Predicated region
    $region102: #{lstm_vae_instance_forward.1} parent=1 // pred_check
      %p139 = pneg %p135
    $region103: #{lstm_vae_instance_forward.1} parent=1 // pred_check_branch
      %141 = sbr.rel (%p139) target = $region105
    $region104: #{lstm_vae_instance_forward.1} parent=1 // pred_region
      %s142 = sshllo.u32 0, 4
      loop: start=0, step=1, limit=1
      $region106: #{lstm_vae_instance_forward.1} parent=104 // loop_pre_header
        _
      $region107: #{lstm_vae_instance_forward.1} parent=104 // loop_header
        %s144 = sphi 0, %s148
        %p145 = scmp.ge.s32.totalorder %s144, 1
        %s149 = sphi %s47, %s47
        %s150 = sphi [#allocation3], [#allocation3]
      $region108: #{lstm_vae_instance_forward.1} parent=104 // loop_header_branch
        %147 = sbr.rel (%p145) target = $region112
      $region109: #{lstm_vae_instance_forward.1} parent=104 // loop_body
        %v151 = vld [vmem:[%s149] sm:%s142]
        %152 = vst [vmem:[%s150] sm:%s142] %v151
        %v153 = vld [vmem:[%s149 + $0x10] sm:%s142]
        %154 = vst [vmem:[%s150 + $0x4] sm:%s142] %v153
        %v155 = vld [vmem:[%s149 + $0x4] sm:%s142]
        %156 = vst [vmem:[%s150 + $0x8] sm:%s142] %v155
        %v157 = vld [vmem:[%s149 + $0x14] sm:%s142]
        %158 = vst [vmem:[%s150 + $0xc] sm:%s142] %v157
        %v159 = vld [vmem:[%s149 + $0x8] sm:%s142]
        %160 = vst [vmem:[%s150 + $0x10] sm:%s142] %v159
        %v161 = vld [vmem:[%s149 + $0x18] sm:%s142]
        %162 = vst [vmem:[%s150 + $0x14] sm:%s142] %v161
        %v163 = vld [vmem:[%s149 + $0xc] sm:%s142]
        %164 = vst [vmem:[%s150 + $0x18] sm:%s142] %v163
        %v165 = vld [vmem:[%s149 + $0x1c] sm:%s142]
        %166 = vst [vmem:[%s150 + $0x1c] sm:%s142] %v165
      $region110: #{lstm_vae_instance_forward.1} parent=104 // loop_footer
        %s148 = sadd.s32 1, %s144
      $region111: #{lstm_vae_instance_forward.1} parent=104 // loop_footer_branch
        %143 = sbr.rel target = $region107
      $region112: #{lstm_vae_instance_forward.1} parent=104 // loop_exit
        _
    $region105: #{lstm_vae_instance_forward.1} parent=1 // pred_fallthru
      _
    // Predicated region
    $region131: #{lstm_vae_instance_forward.1} parent=1 // pred_check
      _
    $region132: #{lstm_vae_instance_forward.1} parent=1 // pred_check_branch
      %212 = sbr.rel (0) target = $region134
    $region133: #{lstm_vae_instance_forward.1} parent=1 // pred_region
      %213 = vsyncadd [#allocation11], 512
    $region134: #{lstm_vae_instance_forward.1} parent=1 // pred_fallthru
      _
    %s214 = scalar_lea.sflag [#allocation11], 1
    %s216 = sshll.u32 1, 14
    %s217 = sxor.u32 4294967295, %s216
    %s219 = sld [smem:[#allocation0]]
    %s220 = sadd.s32 2, %s219
    %s222 = sshll.u32 7, 26
    %s223 = sxor.u32 4294967295, %s222
    %s224 = sand.u32 0, %s223
    %s225 = sshll.u32 %s220, 26
    %s226 = sor.u32 %s224, %s225
    %s227 = sshll.u32 [#allocation4], 4
    %s228 = int_to_ptr.vmem [resolvable:$true] %s227
    %231 = sst [smem:[#allocation21]] 512
    %s232 = scalar_lea.smem [#allocation21], 1
    %233 = sst [smem:[%s232]] 512
    %s234 = scalar_lea.smem [#allocation21], 2
    %235 = sst [smem:[%s234]] 4
    %s236 = scalar_lea.smem [#allocation21], 3
    %237 = sst [smem:[%s236]] 64
    %s238 = scalar_lea.smem [#allocation21], 4
    %239 = sst [smem:[%s238]] 128
    %s240 = scalar_lea.smem [#allocation21], 5
    %241 = sst [smem:[%s240]] 2
    %s242 = scalar_lea.smem [#allocation21], 6
    %243 = sst [smem:[%s242]] 256
    %s244 = scalar_lea.smem [#allocation21], 7
    %245 = sst [smem:[%s244]] 64
    %s246 = scalar_lea.smem [#allocation21], 8
    %247 = sst [smem:[%s246]] 4
    %249 = dma.general %s49, 16384, %s228, %s214, [#allocation20], [#allocation21], %s226, 0
    %s250 = scalar_lea.sflag [#allocation11], 2
    %s252 = sshll.u32 1, 14
    %s253 = sxor.u32 4294967295, %s252
    %s255 = sadd.s32 2, %s219
    %s257 = sshll.u32 7, 26
    %s258 = sxor.u32 4294967295, %s257
    %s259 = sand.u32 0, %s258
    %s260 = sshll.u32 %s255, 26
    %s261 = sor.u32 %s259, %s260
    %s262 = sshll.u32 [#allocation5], 4
    %s263 = int_to_ptr.vmem [resolvable:$true] %s262
    %266 = sst [smem:[#allocation23]] 256
    %s267 = scalar_lea.smem [#allocation23], 1
    %268 = sst [smem:[%s267]] 256
    %s269 = scalar_lea.smem [#allocation23], 2
    %270 = sst [smem:[%s269]] 2
    %s271 = scalar_lea.smem [#allocation23], 3
    %272 = sst [smem:[%s271]] 64
    %s273 = scalar_lea.smem [#allocation23], 4
    %274 = sst [smem:[%s273]] 128
    %s275 = scalar_lea.smem [#allocation23], 5
    %276 = sst [smem:[%s275]] 2
    %s277 = scalar_lea.smem [#allocation23], 6
    %278 = sst [smem:[%s277]] 128
    %s279 = scalar_lea.smem [#allocation23], 7
    %280 = sst [smem:[%s279]] 64
    %s281 = scalar_lea.smem [#allocation23], 8
    %282 = sst [smem:[%s281]] 4
    %284 = dma.general %s51, 8192, %s263, %s250, [#allocation22], [#allocation23], %s261, 0
    %s285 = scalar_lea.sflag [#allocation11], 3
    %p287 = scmp.lt.u32.totalorder 128, 8
    %p288 = pneg %p287
    // Predicated region
    $region135: #{lstm_vae_instance_forward.1} parent=1 // pred_check
      _
    $region136: #{lstm_vae_instance_forward.1} parent=1 // pred_check_branch
      %290 = sbr.rel (%p287) target = $region138
    $region137: #{lstm_vae_instance_forward.1} parent=1 // pred_region
      %s305 = sand.u32 128, 7
      %p306 = scmp.eq.s32.totalorder %s305, 0
      // Predicated region
      $region150: #{lstm_vae_instance_forward.1} parent=137 // pred_check
        %p307 = pneg %p306
      $region151: #{lstm_vae_instance_forward.1} parent=137 // pred_check_branch
        %309 = sbr.rel (%p307) target = $region153
      $region152: #{lstm_vae_instance_forward.1} parent=137 // pred_region
        loop: start=0, step=1, limit=1
        $region154: #{lstm_vae_instance_forward.1} parent=152 // loop_pre_header
          _
        $region155: #{lstm_vae_instance_forward.1} parent=152 // loop_header
          %s311 = sphi 0, %s315
          %p312 = scmp.ge.s32.totalorder %s311, 1
          %s316 = sphi %s53, %s53
          %s317 = sphi [#allocation6], [#allocation6]
        $region156: #{lstm_vae_instance_forward.1} parent=152 // loop_header_branch
          %314 = sbr.rel (%p312) target = $region160
        $region157: #{lstm_vae_instance_forward.1} parent=152 // loop_body
          %v318 = vld [vmem:[%s316] sm:$0xff]
          %319 = vst [vmem:[%s317] sm:$0xff] %v318
          %v320 = vld [vmem:[%s316 + $0x8] sm:$0xff]
          %321 = vst [vmem:[%s317 + $0x8] sm:$0xff] %v320
          %v322 = vld [vmem:[%s316 + $0x10] sm:$0xff]
          %323 = vst [vmem:[%s317 + $0x10] sm:$0xff] %v322
          %v324 = vld [vmem:[%s316 + $0x18] sm:$0xff]
          %325 = vst [vmem:[%s317 + $0x18] sm:$0xff] %v324
          %v326 = vld [vmem:[%s316 + $0x20] sm:$0xff]
          %327 = vst [vmem:[%s317 + $0x20] sm:$0xff] %v326
          %v328 = vld [vmem:[%s316 + $0x28] sm:$0xff]
          %329 = vst [vmem:[%s317 + $0x28] sm:$0xff] %v328
          %v330 = vld [vmem:[%s316 + $0x30] sm:$0xff]
          %331 = vst [vmem:[%s317 + $0x30] sm:$0xff] %v330
          %v332 = vld [vmem:[%s316 + $0x38] sm:$0xff]
          %333 = vst [vmem:[%s317 + $0x38] sm:$0xff] %v332
          %v334 = vld [vmem:[%s316 + $0x40] sm:$0xff]
          %335 = vst [vmem:[%s317 + $0x40] sm:$0xff] %v334
          %v336 = vld [vmem:[%s316 + $0x48] sm:$0xff]
          %337 = vst [vmem:[%s317 + $0x48] sm:$0xff] %v336
          %v338 = vld [vmem:[%s316 + $0x50] sm:$0xff]
          %339 = vst [vmem:[%s317 + $0x50] sm:$0xff] %v338
          %v340 = vld [vmem:[%s316 + $0x58] sm:$0xff]
          %341 = vst [vmem:[%s317 + $0x58] sm:$0xff] %v340
          %v342 = vld [vmem:[%s316 + $0x60] sm:$0xff]
          %343 = vst [vmem:[%s317 + $0x60] sm:$0xff] %v342
          %v344 = vld [vmem:[%s316 + $0x68] sm:$0xff]
          %345 = vst [vmem:[%s317 + $0x68] sm:$0xff] %v344
          %v346 = vld [vmem:[%s316 + $0x70] sm:$0xff]
          %347 = vst [vmem:[%s317 + $0x70] sm:$0xff] %v346
          %v348 = vld [vmem:[%s316 + $0x78] sm:$0xff]
          %349 = vst [vmem:[%s317 + $0x78] sm:$0xff] %v348
        $region158: #{lstm_vae_instance_forward.1} parent=152 // loop_footer
          %s315 = sadd.s32 1, %s311
        $region159: #{lstm_vae_instance_forward.1} parent=152 // loop_footer_branch
          %310 = sbr.rel target = $region155
        $region160: #{lstm_vae_instance_forward.1} parent=152 // loop_exit
          _
      $region153: #{lstm_vae_instance_forward.1} parent=137 // pred_fallthru
        _
      %p350 = pneg %p306
      // Predicated region
      $region161: #{lstm_vae_instance_forward.1} parent=137 // pred_check
        _
      $region162: #{lstm_vae_instance_forward.1} parent=137 // pred_check_branch
        %352 = sbr.rel (%p306) target = $region164
      $region163: #{lstm_vae_instance_forward.1} parent=137 // pred_region
        %s353 = sand.u32 128, 7
      $region164: #{lstm_vae_instance_forward.1} parent=137 // pred_fallthru
        _
    $region138: #{lstm_vae_instance_forward.1} parent=1 // pred_fallthru
      _
    // Predicated region
    $region139: #{lstm_vae_instance_forward.1} parent=1 // pred_check
      %p291 = pneg %p287
    $region140: #{lstm_vae_instance_forward.1} parent=1 // pred_check_branch
      %293 = sbr.rel (%p291) target = $region142
    $region141: #{lstm_vae_instance_forward.1} parent=1 // pred_region
      %s294 = sshllo.u32 0, 128
      loop: start=0, step=1, limit=1
      $region143: #{lstm_vae_instance_forward.1} parent=141 // loop_pre_header
        _
      $region144: #{lstm_vae_instance_forward.1} parent=141 // loop_header
        %s296 = sphi 0, %s300
        %p297 = scmp.ge.s32.totalorder %s296, 1
        %s301 = sphi %s53, %s53
        %s302 = sphi [#allocation6], [#allocation6]
      $region145: #{lstm_vae_instance_forward.1} parent=141 // loop_header_branch
        %299 = sbr.rel (%p297) target = $region149
      $region146: #{lstm_vae_instance_forward.1} parent=141 // loop_body
        %v303 = vld [vmem:[%s301] sm:%s294]
        %304 = vst [vmem:[%s302] sm:%s294] %v303
      $region147: #{lstm_vae_instance_forward.1} parent=141 // loop_footer
        %s300 = sadd.s32 1, %s296
      $region148: #{lstm_vae_instance_forward.1} parent=141 // loop_footer_branch
        %295 = sbr.rel target = $region144
      $region149: #{lstm_vae_instance_forward.1} parent=141 // loop_exit
        _
    $region142: #{lstm_vae_instance_forward.1} parent=1 // pred_fallthru
      _
    // Predicated region
    $region165: #{lstm_vae_instance_forward.1} parent=1 // pred_check
      _
    $region166: #{lstm_vae_instance_forward.1} parent=1 // pred_check_branch
      %356 = sbr.rel (0) target = $region168
    $region167: #{lstm_vae_instance_forward.1} parent=1 // pred_region
      %357 = vsyncadd %s285, 2048
    $region168: #{lstm_vae_instance_forward.1} parent=1 // pred_fallthru
      _
    %s358 = scalar_lea.sflag [#allocation11], 4
    %p360 = scmp.lt.u32.totalorder 64, 8
    %p361 = pneg %p360
    // Predicated region
    $region169: #{lstm_vae_instance_forward.1} parent=1 // pred_check
      _
    $region170: #{lstm_vae_instance_forward.1} parent=1 // pred_check_branch
      %363 = sbr.rel (%p360) target = $region172
    $region171: #{lstm_vae_instance_forward.1} parent=1 // pred_region
      %s378 = sand.u32 64, 7
      %p379 = scmp.eq.s32.totalorder %s378, 0
      // Predicated region
      $region184: #{lstm_vae_instance_forward.1} parent=171 // pred_check
        %p380 = pneg %p379
      $region185: #{lstm_vae_instance_forward.1} parent=171 // pred_check_branch
        %382 = sbr.rel (%p380) target = $region187
      $region186: #{lstm_vae_instance_forward.1} parent=171 // pred_region
        loop: start=0, step=1, limit=1
        $region188: #{lstm_vae_instance_forward.1} parent=186 // loop_pre_header
          _
        $region189: #{lstm_vae_instance_forward.1} parent=186 // loop_header
          %s384 = sphi 0, %s388
          %p385 = scmp.ge.s32.totalorder %s384, 1
          %s389 = sphi %s55, %s55
          %s390 = sphi [#allocation7], [#allocation7]
        $region190: #{lstm_vae_instance_forward.1} parent=186 // loop_header_branch
          %387 = sbr.rel (%p385) target = $region194
        $region191: #{lstm_vae_instance_forward.1} parent=186 // loop_body
          %v391 = vld [vmem:[%s389] sm:$0xff]
          %392 = vst [vmem:[%s390] sm:$0xff] %v391
          %v393 = vld [vmem:[%s389 + $0x8] sm:$0xff]
          %394 = vst [vmem:[%s390 + $0x8] sm:$0xff] %v393
          %v395 = vld [vmem:[%s389 + $0x10] sm:$0xff]
          %396 = vst [vmem:[%s390 + $0x10] sm:$0xff] %v395
          %v397 = vld [vmem:[%s389 + $0x18] sm:$0xff]
          %398 = vst [vmem:[%s390 + $0x18] sm:$0xff] %v397
          %v399 = vld [vmem:[%s389 + $0x20] sm:$0xff]
          %400 = vst [vmem:[%s390 + $0x20] sm:$0xff] %v399
          %v401 = vld [vmem:[%s389 + $0x28] sm:$0xff]
          %402 = vst [vmem:[%s390 + $0x28] sm:$0xff] %v401
          %v403 = vld [vmem:[%s389 + $0x30] sm:$0xff]
          %404 = vst [vmem:[%s390 + $0x30] sm:$0xff] %v403
          %v405 = vld [vmem:[%s389 + $0x38] sm:$0xff]
          %406 = vst [vmem:[%s390 + $0x38] sm:$0xff] %v405
        $region192: #{lstm_vae_instance_forward.1} parent=186 // loop_footer
          %s388 = sadd.s32 1, %s384
        $region193: #{lstm_vae_instance_forward.1} parent=186 // loop_footer_branch
          %383 = sbr.rel target = $region189
        $region194: #{lstm_vae_instance_forward.1} parent=186 // loop_exit
          _
      $region187: #{lstm_vae_instance_forward.1} parent=171 // pred_fallthru
        _
      %p407 = pneg %p379
      // Predicated region
      $region195: #{lstm_vae_instance_forward.1} parent=171 // pred_check
        _
      $region196: #{lstm_vae_instance_forward.1} parent=171 // pred_check_branch
        %409 = sbr.rel (%p379) target = $region198
      $region197: #{lstm_vae_instance_forward.1} parent=171 // pred_region
        %s410 = sand.u32 64, 7
      $region198: #{lstm_vae_instance_forward.1} parent=171 // pred_fallthru
        _
    $region172: #{lstm_vae_instance_forward.1} parent=1 // pred_fallthru
      _
    // Predicated region
    $region173: #{lstm_vae_instance_forward.1} parent=1 // pred_check
      %p364 = pneg %p360
    $region174: #{lstm_vae_instance_forward.1} parent=1 // pred_check_branch
      %366 = sbr.rel (%p364) target = $region176
    $region175: #{lstm_vae_instance_forward.1} parent=1 // pred_region
      %s367 = sshllo.u32 0, 64
      loop: start=0, step=1, limit=1
      $region177: #{lstm_vae_instance_forward.1} parent=175 // loop_pre_header
        _
      $region178: #{lstm_vae_instance_forward.1} parent=175 // loop_header
        %s369 = sphi 0, %s373
        %p370 = scmp.ge.s32.totalorder %s369, 1
        %s374 = sphi %s55, %s55
        %s375 = sphi [#allocation7], [#allocation7]
      $region179: #{lstm_vae_instance_forward.1} parent=175 // loop_header_branch
        %372 = sbr.rel (%p370) target = $region183
      $region180: #{lstm_vae_instance_forward.1} parent=175 // loop_body
        %v376 = vld [vmem:[%s374] sm:%s367]
        %377 = vst [vmem:[%s375] sm:%s367] %v376
      $region181: #{lstm_vae_instance_forward.1} parent=175 // loop_footer
        %s373 = sadd.s32 1, %s369
      $region182: #{lstm_vae_instance_forward.1} parent=175 // loop_footer_branch
        %368 = sbr.rel target = $region178
      $region183: #{lstm_vae_instance_forward.1} parent=175 // loop_exit
        _
    $region176: #{lstm_vae_instance_forward.1} parent=1 // pred_fallthru
      _
    // Predicated region
    $region199: #{lstm_vae_instance_forward.1} parent=1 // pred_check
      _
    $region200: #{lstm_vae_instance_forward.1} parent=1 // pred_check_branch
      %413 = sbr.rel (0) target = $region202
    $region201: #{lstm_vae_instance_forward.1} parent=1 // pred_region
      %414 = vsyncadd %s358, 1024
    $region202: #{lstm_vae_instance_forward.1} parent=1 // pred_fallthru
      _
    %s415 = scalar_lea.sflag [#allocation11], 5
    %p417 = scmp.lt.u32.totalorder 32, 8
    %p418 = pneg %p417
    // Predicated region
    $region203: #{lstm_vae_instance_forward.1} parent=1 // pred_check
      _
    $region204: #{lstm_vae_instance_forward.1} parent=1 // pred_check_branch
      %420 = sbr.rel (%p417) target = $region206
    $region205: #{lstm_vae_instance_forward.1} parent=1 // pred_region
      %s435 = sand.u32 32, 7
      %p436 = scmp.eq.s32.totalorder %s435, 0
      // Predicated region
      $region218: #{lstm_vae_instance_forward.1} parent=205 // pred_check
        %p437 = pneg %p436
      $region219: #{lstm_vae_instance_forward.1} parent=205 // pred_check_branch
        %439 = sbr.rel (%p437) target = $region221
      $region220: #{lstm_vae_instance_forward.1} parent=205 // pred_region
        loop: start=0, step=1, limit=1
        $region222: #{lstm_vae_instance_forward.1} parent=220 // loop_pre_header
          _
        $region223: #{lstm_vae_instance_forward.1} parent=220 // loop_header
          %s441 = sphi 0, %s445
          %p442 = scmp.ge.s32.totalorder %s441, 1
          %s446 = sphi %s57, %s57
          %s447 = sphi [#allocation8], [#allocation8]
        $region224: #{lstm_vae_instance_forward.1} parent=220 // loop_header_branch
          %444 = sbr.rel (%p442) target = $region228
        $region225: #{lstm_vae_instance_forward.1} parent=220 // loop_body
          %v448 = vld [vmem:[%s446] sm:$0xff]
          %449 = vst [vmem:[%s447] sm:$0xff] %v448
          %v450 = vld [vmem:[%s446 + $0x8] sm:$0xff]
          %451 = vst [vmem:[%s447 + $0x8] sm:$0xff] %v450
          %v452 = vld [vmem:[%s446 + $0x10] sm:$0xff]
          %453 = vst [vmem:[%s447 + $0x10] sm:$0xff] %v452
          %v454 = vld [vmem:[%s446 + $0x18] sm:$0xff]
          %455 = vst [vmem:[%s447 + $0x18] sm:$0xff] %v454
        $region226: #{lstm_vae_instance_forward.1} parent=220 // loop_footer
          %s445 = sadd.s32 1, %s441
        $region227: #{lstm_vae_instance_forward.1} parent=220 // loop_footer_branch
          %440 = sbr.rel target = $region223
        $region228: #{lstm_vae_instance_forward.1} parent=220 // loop_exit
          _
      $region221: #{lstm_vae_instance_forward.1} parent=205 // pred_fallthru
        _
      %p456 = pneg %p436
      // Predicated region
      $region229: #{lstm_vae_instance_forward.1} parent=205 // pred_check
        _
      $region230: #{lstm_vae_instance_forward.1} parent=205 // pred_check_branch
        %458 = sbr.rel (%p436) target = $region232
      $region231: #{lstm_vae_instance_forward.1} parent=205 // pred_region
        %s459 = sand.u32 32, 7
      $region232: #{lstm_vae_instance_forward.1} parent=205 // pred_fallthru
        _
    $region206: #{lstm_vae_instance_forward.1} parent=1 // pred_fallthru
      _
    // Predicated region
    $region207: #{lstm_vae_instance_forward.1} parent=1 // pred_check
      %p421 = pneg %p417
    $region208: #{lstm_vae_instance_forward.1} parent=1 // pred_check_branch
      %423 = sbr.rel (%p421) target = $region210
    $region209: #{lstm_vae_instance_forward.1} parent=1 // pred_region
      %s424 = sshllo.u32 0, 32
      loop: start=0, step=1, limit=1
      $region211: #{lstm_vae_instance_forward.1} parent=209 // loop_pre_header
        _
      $region212: #{lstm_vae_instance_forward.1} parent=209 // loop_header
        %s426 = sphi 0, %s430
        %p427 = scmp.ge.s32.totalorder %s426, 1
        %s431 = sphi %s57, %s57
        %s432 = sphi [#allocation8], [#allocation8]
      $region213: #{lstm_vae_instance_forward.1} parent=209 // loop_header_branch
        %429 = sbr.rel (%p427) target = $region217
      $region214: #{lstm_vae_instance_forward.1} parent=209 // loop_body
        %v433 = vld [vmem:[%s431] sm:%s424]
        %434 = vst [vmem:[%s432] sm:%s424] %v433
      $region215: #{lstm_vae_instance_forward.1} parent=209 // loop_footer
        %s430 = sadd.s32 1, %s426
      $region216: #{lstm_vae_instance_forward.1} parent=209 // loop_footer_branch
        %425 = sbr.rel target = $region212
      $region217: #{lstm_vae_instance_forward.1} parent=209 // loop_exit
        _
    $region210: #{lstm_vae_instance_forward.1} parent=1 // pred_fallthru
      _
    // Predicated region
    $region233: #{lstm_vae_instance_forward.1} parent=1 // pred_check
      _
    $region234: #{lstm_vae_instance_forward.1} parent=1 // pred_check_branch
      %462 = sbr.rel (0) target = $region236
    $region235: #{lstm_vae_instance_forward.1} parent=1 // pred_region
      %463 = vsyncadd %s415, 512
    $region236: #{lstm_vae_instance_forward.1} parent=1 // pred_fallthru
      _
    %s464 = scalar_lea.sflag [#allocation11], 6
    %p466 = scmp.lt.u32.totalorder 16, 8
    %p467 = pneg %p466
    // Predicated region
    $region237: #{lstm_vae_instance_forward.1} parent=1 // pred_check
      _
    $region238: #{lstm_vae_instance_forward.1} parent=1 // pred_check_branch
      %469 = sbr.rel (%p466) target = $region240
    $region239: #{lstm_vae_instance_forward.1} parent=1 // pred_region
      %s484 = sand.u32 16, 7
      %p485 = scmp.eq.s32.totalorder %s484, 0
      // Predicated region
      $region252: #{lstm_vae_instance_forward.1} parent=239 // pred_check
        %p486 = pneg %p485
      $region253: #{lstm_vae_instance_forward.1} parent=239 // pred_check_branch
        %488 = sbr.rel (%p486) target = $region255
      $region254: #{lstm_vae_instance_forward.1} parent=239 // pred_region
        loop: start=0, step=1, limit=1
        $region256: #{lstm_vae_instance_forward.1} parent=254 // loop_pre_header
          _
        $region257: #{lstm_vae_instance_forward.1} parent=254 // loop_header
          %s490 = sphi 0, %s494
          %p491 = scmp.ge.s32.totalorder %s490, 1
          %s495 = sphi %s59, %s59
          %s496 = sphi [#allocation9], [#allocation9]
        $region258: #{lstm_vae_instance_forward.1} parent=254 // loop_header_branch
          %493 = sbr.rel (%p491) target = $region262
        $region259: #{lstm_vae_instance_forward.1} parent=254 // loop_body
          %v497 = vld [vmem:[%s495] sm:$0xff]
          %498 = vst [vmem:[%s496] sm:$0xff] %v497
          %v499 = vld [vmem:[%s495 + $0x8] sm:$0xff]
          %500 = vst [vmem:[%s496 + $0x8] sm:$0xff] %v499
        $region260: #{lstm_vae_instance_forward.1} parent=254 // loop_footer
          %s494 = sadd.s32 1, %s490
        $region261: #{lstm_vae_instance_forward.1} parent=254 // loop_footer_branch
          %489 = sbr.rel target = $region257
        $region262: #{lstm_vae_instance_forward.1} parent=254 // loop_exit
          _
      $region255: #{lstm_vae_instance_forward.1} parent=239 // pred_fallthru
        _
      %p501 = pneg %p485
      // Predicated region
      $region263: #{lstm_vae_instance_forward.1} parent=239 // pred_check
        _
      $region264: #{lstm_vae_instance_forward.1} parent=239 // pred_check_branch
        %503 = sbr.rel (%p485) target = $region266
      $region265: #{lstm_vae_instance_forward.1} parent=239 // pred_region
        %s504 = sand.u32 16, 7
      $region266: #{lstm_vae_instance_forward.1} parent=239 // pred_fallthru
        _
    $region240: #{lstm_vae_instance_forward.1} parent=1 // pred_fallthru
      _
    // Predicated region
    $region241: #{lstm_vae_instance_forward.1} parent=1 // pred_check
      %p470 = pneg %p466
    $region242: #{lstm_vae_instance_forward.1} parent=1 // pred_check_branch
      %472 = sbr.rel (%p470) target = $region244
    $region243: #{lstm_vae_instance_forward.1} parent=1 // pred_region
      %s473 = sshllo.u32 0, 16
      loop: start=0, step=1, limit=1
      $region245: #{lstm_vae_instance_forward.1} parent=243 // loop_pre_header
        _
      $region246: #{lstm_vae_instance_forward.1} parent=243 // loop_header
        %s475 = sphi 0, %s479
        %p476 = scmp.ge.s32.totalorder %s475, 1
        %s480 = sphi %s59, %s59
        %s481 = sphi [#allocation9], [#allocation9]
      $region247: #{lstm_vae_instance_forward.1} parent=243 // loop_header_branch
        %478 = sbr.rel (%p476) target = $region251
      $region248: #{lstm_vae_instance_forward.1} parent=243 // loop_body
        %v482 = vld [vmem:[%s480] sm:%s473]
        %483 = vst [vmem:[%s481] sm:%s473] %v482
      $region249: #{lstm_vae_instance_forward.1} parent=243 // loop_footer
        %s479 = sadd.s32 1, %s475
      $region250: #{lstm_vae_instance_forward.1} parent=243 // loop_footer_branch
        %474 = sbr.rel target = $region246
      $region251: #{lstm_vae_instance_forward.1} parent=243 // loop_exit
        _
    $region244: #{lstm_vae_instance_forward.1} parent=1 // pred_fallthru
      _
    // Predicated region
    $region267: #{lstm_vae_instance_forward.1} parent=1 // pred_check
      _
    $region268: #{lstm_vae_instance_forward.1} parent=1 // pred_check_branch
      %507 = sbr.rel (0) target = $region270
    $region269: #{lstm_vae_instance_forward.1} parent=1 // pred_region
      %508 = vsyncadd %s464, 256
    $region270: #{lstm_vae_instance_forward.1} parent=1 // pred_fallthru
      _
    %s509 = scalar_lea.sflag [#allocation11], 7
    %p511 = scmp.lt.u32.totalorder 8, 8
    %p512 = pneg %p511
    // Predicated region
    $region271: #{lstm_vae_instance_forward.1} parent=1 // pred_check
      _
    $region272: #{lstm_vae_instance_forward.1} parent=1 // pred_check_branch
      %514 = sbr.rel (%p511) target = $region274
    $region273: #{lstm_vae_instance_forward.1} parent=1 // pred_region
      %s529 = sand.u32 8, 7
      %p530 = scmp.eq.s32.totalorder %s529, 0
      // Predicated region
      $region286: #{lstm_vae_instance_forward.1} parent=273 // pred_check
        %p531 = pneg %p530
      $region287: #{lstm_vae_instance_forward.1} parent=273 // pred_check_branch
        %533 = sbr.rel (%p531) target = $region289
      $region288: #{lstm_vae_instance_forward.1} parent=273 // pred_region
        loop: start=0, step=1, limit=1
        $region290: #{lstm_vae_instance_forward.1} parent=288 // loop_pre_header
          _
        $region291: #{lstm_vae_instance_forward.1} parent=288 // loop_header
          %s535 = sphi 0, %s539
          %p536 = scmp.ge.s32.totalorder %s535, 1
          %s540 = sphi %s61, %s61
          %s541 = sphi [#allocation10], [#allocation10]
        $region292: #{lstm_vae_instance_forward.1} parent=288 // loop_header_branch
          %538 = sbr.rel (%p536) target = $region296
        $region293: #{lstm_vae_instance_forward.1} parent=288 // loop_body
          %v542 = vld [vmem:[%s540] sm:$0xff]
          %543 = vst [vmem:[%s541] sm:$0xff] %v542
        $region294: #{lstm_vae_instance_forward.1} parent=288 // loop_footer
          %s539 = sadd.s32 1, %s535
        $region295: #{lstm_vae_instance_forward.1} parent=288 // loop_footer_branch
          %534 = sbr.rel target = $region291
        $region296: #{lstm_vae_instance_forward.1} parent=288 // loop_exit
          _
      $region289: #{lstm_vae_instance_forward.1} parent=273 // pred_fallthru
        _
      %p544 = pneg %p530
      // Predicated region
      $region297: #{lstm_vae_instance_forward.1} parent=273 // pred_check
        _
      $region298: #{lstm_vae_instance_forward.1} parent=273 // pred_check_branch
        %546 = sbr.rel (%p530) target = $region300
      $region299: #{lstm_vae_instance_forward.1} parent=273 // pred_region
        %s547 = sand.u32 8, 7
      $region300: #{lstm_vae_instance_forward.1} parent=273 // pred_fallthru
        _
    $region274: #{lstm_vae_instance_forward.1} parent=1 // pred_fallthru
      _
    // Predicated region
    $region275: #{lstm_vae_instance_forward.1} parent=1 // pred_check
      %p515 = pneg %p511
    $region276: #{lstm_vae_instance_forward.1} parent=1 // pred_check_branch
      %517 = sbr.rel (%p515) target = $region278
    $region277: #{lstm_vae_instance_forward.1} parent=1 // pred_region
      %s518 = sshllo.u32 0, 8
      loop: start=0, step=1, limit=1
      $region279: #{lstm_vae_instance_forward.1} parent=277 // loop_pre_header
        _
      $region280: #{lstm_vae_instance_forward.1} parent=277 // loop_header
        %s520 = sphi 0, %s524
        %p521 = scmp.ge.s32.totalorder %s520, 1
        %s525 = sphi %s61, %s61
        %s526 = sphi [#allocation10], [#allocation10]
      $region281: #{lstm_vae_instance_forward.1} parent=277 // loop_header_branch
        %523 = sbr.rel (%p521) target = $region285
      $region282: #{lstm_vae_instance_forward.1} parent=277 // loop_body
        %v527 = vld [vmem:[%s525] sm:%s518]
        %528 = vst [vmem:[%s526] sm:%s518] %v527
      $region283: #{lstm_vae_instance_forward.1} parent=277 // loop_footer
        %s524 = sadd.s32 1, %s520
      $region284: #{lstm_vae_instance_forward.1} parent=277 // loop_footer_branch
        %519 = sbr.rel target = $region280
      $region285: #{lstm_vae_instance_forward.1} parent=277 // loop_exit
        _
    $region278: #{lstm_vae_instance_forward.1} parent=1 // pred_fallthru
      _
    // Predicated region
    $region301: #{lstm_vae_instance_forward.1} parent=1 // pred_check
      _
    $region302: #{lstm_vae_instance_forward.1} parent=1 // pred_check_branch
      %550 = sbr.rel (0) target = $region304
    $region303: #{lstm_vae_instance_forward.1} parent=1 // pred_region
      %551 = vsyncadd %s509, 128
    $region304: #{lstm_vae_instance_forward.1} parent=1 // pred_fallthru
      _
    %v552 = vld [vmem:[%s1] sm:$0xff]
    %v553 = vld [vmem:[%s1 + $0x8] sm:$0xff]
    %v554 = vld [vmem:[%s3] sm:$0xf]
    %v555 = vld [vmem:[%s7] sm:$0x1]
    %v557 = vlaneseq
    %v558 = vshrl.u32 %v557, 7
    %v559 = vsub.s32 0, %v558
    %v560 = vrot.slane %v555, %v559
    %vm562 = vcmask 31744
    %v564 = vsel %vm562, %v552, 0
    %v567 = vsel %vm562, %v553, 0
    %vm569 = vcmask 1043456
    %v571 = vsel %vm569, %v554, 0
    %573 = vmatprep.subr.mxu0 0.0
    %574 = vmatpush1.msra.mxu0 %v571
    %575 = vmatprep.subr.mxu0 0.0
    %576 = vmatpush1.msra.mxu0 0.0
    %577 = vmatprep.subr.mxu0 0.0
    %578 = vmatpush1.msra.mxu0 0.0
    %579 = vmatprep.subr.mxu0 0.0
    %580 = vmatpush1.msra.mxu0 0.0
    %581 = vmatprep.subr.mxu0 0.0
    %582 = vmatpush1.msra.mxu0 0.0
    %583 = vmatprep.subr.mxu0 0.0
    %584 = vmatpush1.msra.mxu0 0.0
    %585 = vmatprep.subr.mxu0 0.0
    %586 = vmatpush1.msra.mxu0 0.0
    %587 = vmatprep.subr.mxu0 0.0
    %588 = vmatpush1.msra.mxu0 0.0
    %589 = vmatprep.subr.mxu0 0.0
    %590 = vmatpush1.msra.mxu0 0.0
    %591 = vmatprep.subr.mxu0 0.0
    %592 = vmatpush1.msra.mxu0 0.0
    %593 = vmatprep.subr.mxu0 0.0
    %594 = vmatpush1.msra.mxu0 0.0
    %595 = vmatprep.subr.mxu0 0.0
    %596 = vmatpush1.msra.mxu0 0.0
    %597 = vmatprep.subr.mxu0 0.0
    %598 = vmatpush1.msra.mxu0 0.0
    %599 = vmatprep.subr.mxu0 0.0
    %600 = vmatpush1.msra.mxu0 0.0
    %601 = vmatprep.subr.mxu0 0.0
    %602 = vmatpush1.msra.mxu0 0.0
    %603 = vmatprep.subr.mxu0 0.0
    %604 = vmatpush1.msra.mxu0 0.0
    %605 = vmatprep.subr.mxu0 0.0
    %606 = vmatpush1.msra.mxu0 0.0
    %607 = vmatprep.subr.mxu0 0.0
    %608 = vmatpush1.msra.mxu0 0.0
    %609 = vmatprep.subr.mxu0 0.0
    %610 = vmatpush1.msra.mxu0 0.0
    %611 = vmatprep.subr.mxu0 0.0
    %612 = vmatpush1.msra.mxu0 0.0
    %613 = vmatprep.subr.mxu0 0.0
    %614 = vmatpush1.msra.mxu0 0.0
    %615 = vmatprep.subr.mxu0 0.0
    %616 = vmatpush1.msra.mxu0 0.0
    %617 = vmatprep.subr.mxu0 0.0
    %618 = vmatpush1.msra.mxu0 0.0
    %619 = vmatprep.subr.mxu0 0.0
    %620 = vmatpush1.msra.mxu0 0.0
    %621 = vmatprep.subr.mxu0 0.0
    %622 = vmatpush1.msra.mxu0 0.0
    %623 = vmatprep.subr.mxu0 0.0
    %624 = vmatpush1.msra.mxu0 0.0
    %625 = vmatprep.subr.mxu0 0.0
    %626 = vmatpush1.msra.mxu0 0.0
    %627 = vmatprep.subr.mxu0 0.0
    %628 = vmatpush1.msra.mxu0 0.0
    %629 = vmatprep.subr.mxu0 0.0
    %630 = vmatpush1.msra.mxu0 0.0
    %631 = vmatprep.subr.mxu0 0.0
    %632 = vmatpush1.msra.mxu0 0.0
    %633 = vmatprep.subr.mxu0 0.0
    %634 = vmatpush1.msra.mxu0 0.0
    %635 = vmatprep.subr.mxu0 0.0
    %636 = vmatpush1.msra.mxu0 0.0
    %637 = vmatprep.mubr.f32.mxu0 0.0
    %638 = vmatmul.mubr.f32.gmra.mrb[0].mxu0 %v564
    %v639 = vpop.f32.mrb[0].mxu0
    %v640 = vadd.f32 %v560, %v639
    %v641 = vpop.f32.mrb[0].mxu0
    %642 = vmatprep.mubr.f32.mxu0 0.0
    %643 = vmatmul.mubr.f32.gmra.mrb[0].mxu0 %v567
    %v644 = vpop.f32.mrb[0].mxu0
    %v645 = vadd.f32 %v560, %v644
    %v646 = vpop.f32.mrb[0].mxu0
    %647 = vdwg.mxu0
    %648 = vst [vmem:[#allocation2] sm:$0xff] %v640
    %649 = vst [vmem:[#allocation2 + $0x8] sm:$0xff] %v645
    %v650 = vld [vmem:[%s5] sm:$0xff]
    %v651 = vld [vmem:[%s5 + $0x8] sm:$0xff]
    %v652 = vld [vmem:[%s5 + $0x10] sm:$0xff]
    %v653 = vld [vmem:[%s5 + $0x18] sm:$0xff]
    %v654 = vld [vmem:[%s9] sm:$0xff]
    %v655 = vld [vmem:[%s9 + $0x8] sm:$0xff]
    %v656 = vld [vmem:[%s9 + $0x10] sm:$0xff]
    %v657 = vld [vmem:[%s9 + $0x18] sm:$0xff]
    %v658 = vld [vmem:[%s9 + $0x20] sm:$0xff]
    %v659 = vld [vmem:[%s9 + $0x28] sm:$0xff]
    %v660 = vld [vmem:[%s9 + $0x30] sm:$0xff]
    %v661 = vld [vmem:[%s9 + $0x38] sm:$0xff]
    %v662 = vld [vmem:[%s11] sm:$0x1]
    %v663 = vlaneseq
    %v664 = vand.u32 %v663, 127
    %vm665 = vcmp.ge.s32.totalorder %v664, 64
    %vm666 = vcmp.lt.s32.totalorder %v664, 96
    %vm667 = vmand %vm665, %vm666
    %v668 = vld [vmem:[#allocation2] sm:$0x3]
    %vm669 = vcmask 261120
    %v671 = vsel %vm669, 0.0, 0
    %673 = vmatprep.subr.mxu0 0.0
    %674 = vmatpush1.msra.mxu0 %v650
    %675 = vmatprep.subr.mxu0 0.0
    %676 = vmatpush1.msra.mxu0 %v651
    %677 = vmatprep.subr.mxu0 0.0
    %678 = vmatpush1.msra.mxu0 %v652
    %679 = vmatprep.subr.mxu0 0.0
    %680 = vmatpush1.msra.mxu0 %v653
    %681 = vmatprep.subr.mxu0 0.0
    %682 = vmatpush1.msra.mxu0 0.0
    %683 = vmatprep.subr.mxu0 0.0
    %684 = vmatpush1.msra.mxu0 0.0
    %685 = vmatprep.subr.mxu0 0.0
    %686 = vmatpush1.msra.mxu0 0.0
    %687 = vmatprep.subr.mxu0 0.0
    %688 = vmatpush1.msra.mxu0 0.0
    %689 = vmatprep.subr.mxu0 0.0
    %690 = vmatpush1.msra.mxu0 0.0
    %691 = vmatprep.subr.mxu0 0.0
    %692 = vmatpush1.msra.mxu0 0.0
    %693 = vmatprep.subr.mxu0 0.0
    %694 = vmatpush1.msra.mxu0 0.0
    %695 = vmatprep.subr.mxu0 0.0
    %696 = vmatpush1.msra.mxu0 0.0
    %697 = vmatprep.subr.mxu0 0.0
    %698 = vmatpush1.msra.mxu0 0.0
    %699 = vmatprep.subr.mxu0 0.0
    %700 = vmatpush1.msra.mxu0 0.0
    %701 = vmatprep.subr.mxu0 0.0
    %702 = vmatpush1.msra.mxu0 0.0
    %703 = vmatprep.subr.mxu0 0.0
    %704 = vmatpush1.msra.mxu0 0.0
    %705 = vmatprep.subr.mxu0 0.0
    %706 = vmatpush1.msra.mxu0 0.0
    %707 = vmatprep.subr.mxu0 0.0
    %708 = vmatpush1.msra.mxu0 0.0
    %709 = vmatprep.subr.mxu0 0.0
    %710 = vmatpush1.msra.mxu0 0.0
    %711 = vmatprep.subr.mxu0 0.0
    %712 = vmatpush1.msra.mxu0 0.0
    %713 = vmatprep.subr.mxu0 0.0
    %714 = vmatpush1.msra.mxu0 0.0
    %715 = vmatprep.subr.mxu0 0.0
    %716 = vmatpush1.msra.mxu0 0.0
    %717 = vmatprep.subr.mxu0 0.0
    %718 = vmatpush1.msra.mxu0 0.0
    %719 = vmatprep.subr.mxu0 0.0
    %720 = vmatpush1.msra.mxu0 0.0
    %721 = vmatprep.subr.mxu0 0.0
    %722 = vmatpush1.msra.mxu0 0.0
    %723 = vmatprep.subr.mxu0 0.0
    %724 = vmatpush1.msra.mxu0 0.0
    %725 = vmatprep.subr.mxu0 0.0
    %726 = vmatpush1.msra.mxu0 0.0
    %727 = vmatprep.subr.mxu0 0.0
    %728 = vmatpush1.msra.mxu0 0.0
    %729 = vmatprep.subr.mxu0 0.0
    %730 = vmatpush1.msra.mxu0 0.0
    %731 = vmatprep.subr.mxu0 0.0
    %732 = vmatpush1.msra.mxu0 0.0
    %733 = vmatprep.subr.mxu0 0.0
    %734 = vmatpush1.msra.mxu0 0.0
    %735 = vmatprep.subr.mxu0 0.0
    %736 = vmatpush1.msra.mxu0 0.0
    %737 = vmatprep.mubr.f32.mxu0 0.0
    %738 = vmatmul.mubr.f32.gmra.mrb[0].mxu0 %v671
    %v739 = vpop.f32.mrb[0].mxu0
    %v740 = vadd.f32 0.0, %v739
    %v741 = vpop.f32.mrb[0].mxu0
    %742 = vdwg.mxu0
    %v743 = vadd.f32 %v668, %v740
    %v744 = vmul.f32 %v743, 0.5
    %v745 = vsel %vm667, %v743, %v744
    %v746 = vtanh.pop %v745
    %v747 = vmul.f32 %v746, 0.5
    %v748 = vadd.f32 %v747, 0.5
    %v749 = vsel %vm667, %v746, %v748
    %v750 = vmul.f32 %v749, 0.0
    %752 = vrot.lane.b32.xlu0 %v749, 64
    %v753 = vpop.permute.xlu0 %752
    %v755 = vmul.f32 %v749, %v753
    %757 = vrot.lane.b32.xlu0 %v755, 32
    %v758 = vpop.permute.xlu0 %757
    %v760 = vadd.f32 %v750, %v758
    %v761 = vtanh.pop %v760
    %763 = vrot.lane.b32.xlu0 %v761, 64
    %v764 = vpop.permute.xlu0 %763
    %v766 = vmul.f32 %v749, %v764
    %768 = vrot.lane.b32.xlu0 %v766, 32
    %v769 = vpop.permute.xlu0 %768
    %v771 = vsel %vm669, %v769, 0.0
    %v773 = vlaneseq
    %v774 = vshrl.u32 %v773, 7
    %v775 = vsub.s32 0, %v774
    %v776 = vrot.slane %v662, %v775
    %vm778 = vcmask 523264
    %v780 = vsel %vm778, %v771, 0
    %782 = vmatprep.subr.mxu0 0.0
    %783 = vmatpush1.msra.mxu0 %v654
    %784 = vmatprep.subr.mxu0 0.0
    %785 = vmatpush1.msra.mxu0 %v655
    %786 = vmatprep.subr.mxu0 0.0
    %787 = vmatpush1.msra.mxu0 %v656
    %788 = vmatprep.subr.mxu0 0.0
    %789 = vmatpush1.msra.mxu0 %v657
    %790 = vmatprep.subr.mxu0 0.0
    %791 = vmatpush1.msra.mxu0 %v658
    %792 = vmatprep.subr.mxu0 0.0
    %793 = vmatpush1.msra.mxu0 %v659
    %794 = vmatprep.subr.mxu0 0.0
    %795 = vmatpush1.msra.mxu0 %v660
    %796 = vmatprep.subr.mxu0 0.0
    %797 = vmatpush1.msra.mxu0 %v661
    %798 = vmatprep.subr.mxu0 0.0
    %799 = vmatpush1.msra.mxu0 0.0
    %800 = vmatprep.subr.mxu0 0.0
    %801 = vmatpush1.msra.mxu0 0.0
    %802 = vmatprep.subr.mxu0 0.0
    %803 = vmatpush1.msra.mxu0 0.0
    %804 = vmatprep.subr.mxu0 0.0
    %805 = vmatpush1.msra.mxu0 0.0
    %806 = vmatprep.subr.mxu0 0.0
    %807 = vmatpush1.msra.mxu0 0.0
    %808 = vmatprep.subr.mxu0 0.0
    %809 = vmatpush1.msra.mxu0 0.0
    %810 = vmatprep.subr.mxu0 0.0
    %811 = vmatpush1.msra.mxu0 0.0
    %812 = vmatprep.subr.mxu0 0.0
    %813 = vmatpush1.msra.mxu0 0.0
    %814 = vmatprep.subr.mxu0 0.0
    %815 = vmatpush1.msra.mxu0 0.0
    %816 = vmatprep.subr.mxu0 0.0
    %817 = vmatpush1.msra.mxu0 0.0
    %818 = vmatprep.subr.mxu0 0.0
    %819 = vmatpush1.msra.mxu0 0.0
    %820 = vmatprep.subr.mxu0 0.0
    %821 = vmatpush1.msra.mxu0 0.0
    %822 = vmatprep.subr.mxu0 0.0
    %823 = vmatpush1.msra.mxu0 0.0
    %824 = vmatprep.subr.mxu0 0.0
    %825 = vmatpush1.msra.mxu0 0.0
    %826 = vmatprep.subr.mxu0 0.0
    %827 = vmatpush1.msra.mxu0 0.0
    %828 = vmatprep.subr.mxu0 0.0
    %829 = vmatpush1.msra.mxu0 0.0
    %830 = vmatprep.subr.mxu0 0.0
    %831 = vmatpush1.msra.mxu0 0.0
    %832 = vmatprep.subr.mxu0 0.0
    %833 = vmatpush1.msra.mxu0 0.0
    %834 = vmatprep.subr.mxu0 0.0
    %835 = vmatpush1.msra.mxu0 0.0
    %836 = vmatprep.subr.mxu0 0.0
    %837 = vmatpush1.msra.mxu0 0.0
    %838 = vmatprep.subr.mxu0 0.0
    %839 = vmatpush1.msra.mxu0 0.0
    %840 = vmatprep.subr.mxu0 0.0
    %841 = vmatpush1.msra.mxu0 0.0
    %842 = vmatprep.subr.mxu0 0.0
    %843 = vmatpush1.msra.mxu0 0.0
    %844 = vmatprep.subr.mxu0 0.0
    %845 = vmatpush1.msra.mxu0 0.0
    %846 = vmatprep.mubr.f32.mxu0 0.0
    %847 = vmatmul.mubr.f32.gmra.mrb[0].mxu0 %v780
    %v848 = vpop.f32.mrb[0].mxu0
    %v849 = vadd.f32 %v776, %v848
    %v850 = vpop.f32.mrb[0].mxu0
    %851 = vdwg.mxu0
    %v852 = vmul.f32 %v849, 0.5
    %v853 = vsel %vm667, %v849, %v852
    %v854 = vtanh.pop %v853
    %v855 = vmul.f32 %v854, 0.5
    %v856 = vadd.f32 %v855, 0.5
    %v857 = vsel %vm667, %v854, %v856
    %v858 = vmul.f32 %v857, 0.0
    %860 = vrot.lane.b32.xlu0 %v857, 64
    %v861 = vpop.permute.xlu0 %860
    %v863 = vmul.f32 %v857, %v861
    %865 = vrot.lane.b32.xlu0 %v863, 32
    %v866 = vpop.permute.xlu0 %865
    %v868 = vadd.f32 %v858, %v866
    %v869 = vtanh.pop %v868
    %871 = vrot.lane.b32.xlu0 %v869, 64
    %v872 = vpop.permute.xlu0 %871
    %v874 = vmul.f32 %v857, %v872
    %v875 = vld [vmem:[#allocation2 + $0x2] sm:$0x3]
    %v876 = vsel %vm669, %v769, 0
    %878 = vmatprep.subr.mxu0 0.0
    %879 = vmatpush1.msra.mxu0 %v650
    %880 = vmatprep.subr.mxu0 0.0
    %881 = vmatpush1.msra.mxu0 %v651
    %882 = vmatprep.subr.mxu0 0.0
    %883 = vmatpush1.msra.mxu0 %v652
    %884 = vmatprep.subr.mxu0 0.0
    %885 = vmatpush1.msra.mxu0 %v653
    %886 = vmatprep.subr.mxu0 0.0
    %887 = vmatpush1.msra.mxu0 0.0
    %888 = vmatprep.subr.mxu0 0.0
    %889 = vmatpush1.msra.mxu0 0.0
    %890 = vmatprep.subr.mxu0 0.0
    %891 = vmatpush1.msra.mxu0 0.0
    %892 = vmatprep.subr.mxu0 0.0
    %893 = vmatpush1.msra.mxu0 0.0
    %894 = vmatprep.subr.mxu0 0.0
    %895 = vmatpush1.msra.mxu0 0.0
    %896 = vmatprep.subr.mxu0 0.0
    %897 = vmatpush1.msra.mxu0 0.0
    %898 = vmatprep.subr.mxu0 0.0
    %899 = vmatpush1.msra.mxu0 0.0
    %900 = vmatprep.subr.mxu0 0.0
    %901 = vmatpush1.msra.mxu0 0.0
    %902 = vmatprep.subr.mxu0 0.0
    %903 = vmatpush1.msra.mxu0 0.0
    %904 = vmatprep.subr.mxu0 0.0
    %905 = vmatpush1.msra.mxu0 0.0
    %906 = vmatprep.subr.mxu0 0.0
    %907 = vmatpush1.msra.mxu0 0.0
    %908 = vmatprep.subr.mxu0 0.0
    %909 = vmatpush1.msra.mxu0 0.0
    %910 = vmatprep.subr.mxu0 0.0
    %911 = vmatpush1.msra.mxu0 0.0
    %912 = vmatprep.subr.mxu0 0.0
    %913 = vmatpush1.msra.mxu0 0.0
    %914 = vmatprep.subr.mxu0 0.0
    %915 = vmatpush1.msra.mxu0 0.0
    %916 = vmatprep.subr.mxu0 0.0
    %917 = vmatpush1.msra.mxu0 0.0
    %918 = vmatprep.subr.mxu0 0.0
    %919 = vmatpush1.msra.mxu0 0.0
    %920 = vmatprep.subr.mxu0 0.0
    %921 = vmatpush1.msra.mxu0 0.0
    %922 = vmatprep.subr.mxu0 0.0
    %923 = vmatpush1.msra.mxu0 0.0
    %924 = vmatprep.subr.mxu0 0.0
    %925 = vmatpush1.msra.mxu0 0.0
    %926 = vmatprep.subr.mxu0 0.0
    %927 = vmatpush1.msra.mxu0 0.0
    %928 = vmatprep.subr.mxu0 0.0
    %929 = vmatpush1.msra.mxu0 0.0
    %930 = vmatprep.subr.mxu0 0.0
    %931 = vmatpush1.msra.mxu0 0.0
    %932 = vmatprep.subr.mxu0 0.0
    %933 = vmatpush1.msra.mxu0 0.0
    %934 = vmatprep.subr.mxu0 0.0
    %935 = vmatpush1.msra.mxu0 0.0
    %936 = vmatprep.subr.mxu0 0.0
    %937 = vmatpush1.msra.mxu0 0.0
    %938 = vmatprep.subr.mxu0 0.0
    %939 = vmatpush1.msra.mxu0 0.0
    %940 = vmatprep.subr.mxu0 0.0
    %941 = vmatpush1.msra.mxu0 0.0
    %942 = vmatprep.mubr.f32.mxu0 0.0
    %943 = vmatmul.mubr.f32.gmra.mrb[0].mxu0 %v876
    %v944 = vpop.f32.mrb[0].mxu0
    %v945 = vadd.f32 0.0, %v944
    %v946 = vpop.f32.mrb[0].mxu0
    %947 = vdwg.mxu0
    %v948 = vadd.f32 %v875, %v945
    %v949 = vmul.f32 %v948, 0.5
    %v950 = vsel %vm667, %v948, %v949
    %v951 = vtanh.pop %v950
    %v952 = vmul.f32 %v951, 0.5
    %v953 = vadd.f32 %v952, 0.5
    %v954 = vsel %vm667, %v951, %v953
    %v955 = vmul.f32 %v954, %v760
    %957 = vrot.lane.b32.xlu0 %v954, 64
    %v958 = vpop.permute.xlu0 %957
    %v960 = vmul.f32 %v954, %v958
    %962 = vrot.lane.b32.xlu0 %v960, 32
    %v963 = vpop.permute.xlu0 %962
    %v965 = vadd.f32 %v955, %v963
    %v966 = vtanh.pop %v965
    %968 = vrot.lane.b32.xlu0 %v966, 64
    %v969 = vpop.permute.xlu0 %968
    %v971 = vmul.f32 %v954, %v969
    %973 = vrot.lane.b32.xlu0 %v971, 32
    %v974 = vpop.permute.xlu0 %973
    %977 = vrot.lane.b32.xlu0 %v874, 64
    %v978 = vpop.permute.xlu0 %977
    %v980 = vsel %vm669, %v974, %v978
    %v982 = vsel %vm778, %v980, 0
    %984 = vmatprep.subr.mxu0 0.0
    %985 = vmatpush1.msra.mxu0 %v654
    %986 = vmatprep.subr.mxu0 0.0
    %987 = vmatpush1.msra.mxu0 %v655
    %988 = vmatprep.subr.mxu0 0.0
    %989 = vmatpush1.msra.mxu0 %v656
    %990 = vmatprep.subr.mxu0 0.0
    %991 = vmatpush1.msra.mxu0 %v657
    %992 = vmatprep.subr.mxu0 0.0
    %993 = vmatpush1.msra.mxu0 %v658
    %994 = vmatprep.subr.mxu0 0.0
    %995 = vmatpush1.msra.mxu0 %v659
    %996 = vmatprep.subr.mxu0 0.0
    %997 = vmatpush1.msra.mxu0 %v660
    %998 = vmatprep.subr.mxu0 0.0
    %999 = vmatpush1.msra.mxu0 %v661
    %1000 = vmatprep.subr.mxu0 0.0
    %1001 = vmatpush1.msra.mxu0 0.0
    %1002 = vmatprep.subr.mxu0 0.0
    %1003 = vmatpush1.msra.mxu0 0.0
    %1004 = vmatprep.subr.mxu0 0.0
    %1005 = vmatpush1.msra.mxu0 0.0
    %1006 = vmatprep.subr.mxu0 0.0
    %1007 = vmatpush1.msra.mxu0 0.0
    %1008 = vmatprep.subr.mxu0 0.0
    %1009 = vmatpush1.msra.mxu0 0.0
    %1010 = vmatprep.subr.mxu0 0.0
    %1011 = vmatpush1.msra.mxu0 0.0
    %1012 = vmatprep.subr.mxu0 0.0
    %1013 = vmatpush1.msra.mxu0 0.0
    %1014 = vmatprep.subr.mxu0 0.0
    %1015 = vmatpush1.msra.mxu0 0.0
    %1016 = vmatprep.subr.mxu0 0.0
    %1017 = vmatpush1.msra.mxu0 0.0
    %1018 = vmatprep.subr.mxu0 0.0
    %1019 = vmatpush1.msra.mxu0 0.0
    %1020 = vmatprep.subr.mxu0 0.0
    %1021 = vmatpush1.msra.mxu0 0.0
    %1022 = vmatprep.subr.mxu0 0.0
    %1023 = vmatpush1.msra.mxu0 0.0
    %1024 = vmatprep.subr.mxu0 0.0
    %1025 = vmatpush1.msra.mxu0 0.0
    %1026 = vmatprep.subr.mxu0 0.0
    %1027 = vmatpush1.msra.mxu0 0.0
    %1028 = vmatprep.subr.mxu0 0.0
    %1029 = vmatpush1.msra.mxu0 0.0
    %1030 = vmatprep.subr.mxu0 0.0
    %1031 = vmatpush1.msra.mxu0 0.0
    %1032 = vmatprep.subr.mxu0 0.0
    %1033 = vmatpush1.msra.mxu0 0.0
    %1034 = vmatprep.subr.mxu0 0.0
    %1035 = vmatpush1.msra.mxu0 0.0
    %1036 = vmatprep.subr.mxu0 0.0
    %1037 = vmatpush1.msra.mxu0 0.0
    %1038 = vmatprep.subr.mxu0 0.0
    %1039 = vmatpush1.msra.mxu0 0.0
    %1040 = vmatprep.subr.mxu0 0.0
    %1041 = vmatpush1.msra.mxu0 0.0
    %1042 = vmatprep.subr.mxu0 0.0
    %1043 = vmatpush1.msra.mxu0 0.0
    %1044 = vmatprep.subr.mxu0 0.0
    %1045 = vmatpush1.msra.mxu0 0.0
    %1046 = vmatprep.subr.mxu0 0.0
    %1047 = vmatpush1.msra.mxu0 0.0
    %1048 = vmatprep.mubr.f32.mxu0 0.0
    %1049 = vmatmul.mubr.f32.gmra.mrb[0].mxu0 %v982
    %v1050 = vpop.f32.mrb[0].mxu0
    %v1051 = vadd.f32 %v776, %v1050
    %v1052 = vpop.f32.mrb[0].mxu0
    %1053 = vdwg.mxu0
    %v1054 = vmul.f32 %v1051, 0.5
    %v1055 = vsel %vm667, %v1051, %v1054
    %v1056 = vtanh.pop %v1055
    %v1057 = vmul.f32 %v1056, 0.5
    %v1058 = vadd.f32 %v1057, 0.5
    %v1059 = vsel %vm667, %v1056, %v1058
    %v1060 = vmul.f32 %v1059, %v868
    %1062 = vrot.lane.b32.xlu0 %v1059, 64
    %v1063 = vpop.permute.xlu0 %1062
    %v1065 = vmul.f32 %v1059, %v1063
    %1067 = vrot.lane.b32.xlu0 %v1065, 32
    %v1068 = vpop.permute.xlu0 %1067
    %v1070 = vadd.f32 %v1060, %v1068
    %v1071 = vtanh.pop %v1070
    %1073 = vrot.lane.b32.xlu0 %v1071, 64
    %v1074 = vpop.permute.xlu0 %1073
    %v1076 = vmul.f32 %v1059, %v1074
    %v1077 = vld [vmem:[#allocation2 + $0x4] sm:$0x3]
    %v1078 = vsel %vm669, %v974, 0
    %1080 = vmatprep.subr.mxu0 0.0
    %1081 = vmatpush1.msra.mxu0 %v650
    %1082 = vmatprep.subr.mxu0 0.0
    %1083 = vmatpush1.msra.mxu0 %v651
    %1084 = vmatprep.subr.mxu0 0.0
    %1085 = vmatpush1.msra.mxu0 %v652
    %1086 = vmatprep.subr.mxu0 0.0
    %1087 = vmatpush1.msra.mxu0 %v653
    %1088 = vmatprep.subr.mxu0 0.0
    %1089 = vmatpush1.msra.mxu0 0.0
    %1090 = vmatprep.subr.mxu0 0.0
    %1091 = vmatpush1.msra.mxu0 0.0
    %1092 = vmatprep.subr.mxu0 0.0
    %1093 = vmatpush1.msra.mxu0 0.0
    %1094 = vmatprep.subr.mxu0 0.0
    %1095 = vmatpush1.msra.mxu0 0.0
    %1096 = vmatprep.subr.mxu0 0.0
    %1097 = vmatpush1.msra.mxu0 0.0
    %1098 = vmatprep.subr.mxu0 0.0
    %1099 = vmatpush1.msra.mxu0 0.0
    %1100 = vmatprep.subr.mxu0 0.0
    %1101 = vmatpush1.msra.mxu0 0.0
    %1102 = vmatprep.subr.mxu0 0.0
    %1103 = vmatpush1.msra.mxu0 0.0
    %1104 = vmatprep.subr.mxu0 0.0
    %1105 = vmatpush1.msra.mxu0 0.0
    %1106 = vmatprep.subr.mxu0 0.0
    %1107 = vmatpush1.msra.mxu0 0.0
    %1108 = vmatprep.subr.mxu0 0.0
    %1109 = vmatpush1.msra.mxu0 0.0
    %1110 = vmatprep.subr.mxu0 0.0
    %1111 = vmatpush1.msra.mxu0 0.0
    %1112 = vmatprep.subr.mxu0 0.0
    %1113 = vmatpush1.msra.mxu0 0.0
    %1114 = vmatprep.subr.mxu0 0.0
    %1115 = vmatpush1.msra.mxu0 0.0
    %1116 = vmatprep.subr.mxu0 0.0
    %1117 = vmatpush1.msra.mxu0 0.0
    %1118 = vmatprep.subr.mxu0 0.0
    %1119 = vmatpush1.msra.mxu0 0.0
    %1120 = vmatprep.subr.mxu0 0.0
    %1121 = vmatpush1.msra.mxu0 0.0
    %1122 = vmatprep.subr.mxu0 0.0
    %1123 = vmatpush1.msra.mxu0 0.0
    %1124 = vmatprep.subr.mxu0 0.0
    %1125 = vmatpush1.msra.mxu0 0.0
    %1126 = vmatprep.subr.mxu0 0.0
    %1127 = vmatpush1.msra.mxu0 0.0
    %1128 = vmatprep.subr.mxu0 0.0
    %1129 = vmatpush1.msra.mxu0 0.0
    %1130 = vmatprep.subr.mxu0 0.0
    %1131 = vmatpush1.msra.mxu0 0.0
    %1132 = vmatprep.subr.mxu0 0.0
    %1133 = vmatpush1.msra.mxu0 0.0
    %1134 = vmatprep.subr.mxu0 0.0
    %1135 = vmatpush1.msra.mxu0 0.0
    %1136 = vmatprep.subr.mxu0 0.0
    %1137 = vmatpush1.msra.mxu0 0.0
    %1138 = vmatprep.subr.mxu0 0.0
    %1139 = vmatpush1.msra.mxu0 0.0
    %1140 = vmatprep.subr.mxu0 0.0
    %1141 = vmatpush1.msra.mxu0 0.0
    %1142 = vmatprep.subr.mxu0 0.0
    %1143 = vmatpush1.msra.mxu0 0.0
    %1144 = vmatprep.mubr.f32.mxu0 0.0
    %1145 = vmatmul.mubr.f32.gmra.mrb[0].mxu0 %v1078
    %v1146 = vpop.f32.mrb[0].mxu0
    %v1147 = vadd.f32 0.0, %v1146
    %v1148 = vpop.f32.mrb[0].mxu0
    %1149 = vdwg.mxu0
    %v1150 = vadd.f32 %v1077, %v1147
    %v1151 = vmul.f32 %v1150, 0.5
    %v1152 = vsel %vm667, %v1150, %v1151
    %v1153 = vtanh.pop %v1152
    %v1154 = vmul.f32 %v1153, 0.5
    %v1155 = vadd.f32 %v1154, 0.5
    %v1156 = vsel %vm667, %v1153, %v1155
    %v1157 = vmul.f32 %v1156, %v965
    %1159 = vrot.lane.b32.xlu0 %v1156, 64
    %v1160 = vpop.permute.xlu0 %1159
    %v1162 = vmul.f32 %v1156, %v1160
    %1164 = vrot.lane.b32.xlu0 %v1162, 32
    %v1165 = vpop.permute.xlu0 %1164
    %v1167 = vadd.f32 %v1157, %v1165
    %v1168 = vtanh.pop %v1167
    %1170 = vrot.lane.b32.xlu0 %v1168, 64
    %v1171 = vpop.permute.xlu0 %1170
    %v1173 = vmul.f32 %v1156, %v1171
    %1175 = vrot.lane.b32.xlu0 %v1173, 32
    %v1176 = vpop.permute.xlu0 %1175
    %1179 = vrot.lane.b32.xlu0 %v1076, 64
    %v1180 = vpop.permute.xlu0 %1179
    %v1182 = vsel %vm669, %v1176, %v1180
    %v1184 = vsel %vm778, %v1182, 0
    %1186 = vmatprep.subr.mxu0 0.0
    %1187 = vmatpush1.msra.mxu0 %v654
    %1188 = vmatprep.subr.mxu0 0.0
    %1189 = vmatpush1.msra.mxu0 %v655
    %1190 = vmatprep.subr.mxu0 0.0
    %1191 = vmatpush1.msra.mxu0 %v656
    %1192 = vmatprep.subr.mxu0 0.0
    %1193 = vmatpush1.msra.mxu0 %v657
    %1194 = vmatprep.subr.mxu0 0.0
    %1195 = vmatpush1.msra.mxu0 %v658
    %1196 = vmatprep.subr.mxu0 0.0
    %1197 = vmatpush1.msra.mxu0 %v659
    %1198 = vmatprep.subr.mxu0 0.0
    %1199 = vmatpush1.msra.mxu0 %v660
    %1200 = vmatprep.subr.mxu0 0.0
    %1201 = vmatpush1.msra.mxu0 %v661
    %1202 = vmatprep.subr.mxu0 0.0
    %1203 = vmatpush1.msra.mxu0 0.0
    %1204 = vmatprep.subr.mxu0 0.0
    %1205 = vmatpush1.msra.mxu0 0.0
    %1206 = vmatprep.subr.mxu0 0.0
    %1207 = vmatpush1.msra.mxu0 0.0
    %1208 = vmatprep.subr.mxu0 0.0
    %1209 = vmatpush1.msra.mxu0 0.0
    %1210 = vmatprep.subr.mxu0 0.0
    %1211 = vmatpush1.msra.mxu0 0.0
    %1212 = vmatprep.subr.mxu0 0.0
    %1213 = vmatpush1.msra.mxu0 0.0
    %1214 = vmatprep.subr.mxu0 0.0
    %1215 = vmatpush1.msra.mxu0 0.0
    %1216 = vmatprep.subr.mxu0 0.0
    %1217 = vmatpush1.msra.mxu0 0.0
    %1218 = vmatprep.subr.mxu0 0.0
    %1219 = vmatpush1.msra.mxu0 0.0
    %1220 = vmatprep.subr.mxu0 0.0
    %1221 = vmatpush1.msra.mxu0 0.0
    %1222 = vmatprep.subr.mxu0 0.0
    %1223 = vmatpush1.msra.mxu0 0.0
    %1224 = vmatprep.subr.mxu0 0.0
    %1225 = vmatpush1.msra.mxu0 0.0
    %1226 = vmatprep.subr.mxu0 0.0
    %1227 = vmatpush1.msra.mxu0 0.0
    %1228 = vmatprep.subr.mxu0 0.0
    %1229 = vmatpush1.msra.mxu0 0.0
    %1230 = vmatprep.subr.mxu0 0.0
    %1231 = vmatpush1.msra.mxu0 0.0
    %1232 = vmatprep.subr.mxu0 0.0
    %1233 = vmatpush1.msra.mxu0 0.0
    %1234 = vmatprep.subr.mxu0 0.0
    %1235 = vmatpush1.msra.mxu0 0.0
    %1236 = vmatprep.subr.mxu0 0.0
    %1237 = vmatpush1.msra.mxu0 0.0
    %1238 = vmatprep.subr.mxu0 0.0
    %1239 = vmatpush1.msra.mxu0 0.0
    %1240 = vmatprep.subr.mxu0 0.0
    %1241 = vmatpush1.msra.mxu0 0.0
    %1242 = vmatprep.subr.mxu0 0.0
    %1243 = vmatpush1.msra.mxu0 0.0
    %1244 = vmatprep.subr.mxu0 0.0
    %1245 = vmatpush1.msra.mxu0 0.0
    %1246 = vmatprep.subr.mxu0 0.0
    %1247 = vmatpush1.msra.mxu0 0.0
    %1248 = vmatprep.subr.mxu0 0.0
    %1249 = vmatpush1.msra.mxu0 0.0
    %1250 = vmatprep.mubr.f32.mxu0 0.0
    %1251 = vmatmul.mubr.f32.gmra.mrb[0].mxu0 %v1184
    %v1252 = vpop.f32.mrb[0].mxu0
    %v1253 = vadd.f32 %v776, %v1252
    %v1254 = vpop.f32.mrb[0].mxu0
    %1255 = vdwg.mxu0
    %v1256 = vmul.f32 %v1253, 0.5
    %v1257 = vsel %vm667, %v1253, %v1256
    %v1258 = vtanh.pop %v1257
    %v1259 = vmul.f32 %v1258, 0.5
    %v1260 = vadd.f32 %v1259, 0.5
    %v1261 = vsel %vm667, %v1258, %v1260
    %v1262 = vmul.f32 %v1261, %v1070
    %1264 = vrot.lane.b32.xlu0 %v1261, 64
    %v1265 = vpop.permute.xlu0 %1264
    %v1267 = vmul.f32 %v1261, %v1265
    %1269 = vrot.lane.b32.xlu0 %v1267, 32
    %v1270 = vpop.permute.xlu0 %1269
    %v1272 = vadd.f32 %v1262, %v1270
    %v1273 = vtanh.pop %v1272
    %1275 = vrot.lane.b32.xlu0 %v1273, 64
    %v1276 = vpop.permute.xlu0 %1275
    %v1278 = vmul.f32 %v1261, %v1276
    %v1279 = vld [vmem:[#allocation2 + $0x6] sm:$0x3]
    %v1280 = vsel %vm669, %v1176, 0
    %1282 = vmatprep.subr.mxu0 0.0
    %1283 = vmatpush1.msra.mxu0 %v650
    %1284 = vmatprep.subr.mxu0 0.0
    %1285 = vmatpush1.msra.mxu0 %v651
    %1286 = vmatprep.subr.mxu0 0.0
    %1287 = vmatpush1.msra.mxu0 %v652
    %1288 = vmatprep.subr.mxu0 0.0
    %1289 = vmatpush1.msra.mxu0 %v653
    %1290 = vmatprep.subr.mxu0 0.0
    %1291 = vmatpush1.msra.mxu0 0.0
    %1292 = vmatprep.subr.mxu0 0.0
    %1293 = vmatpush1.msra.mxu0 0.0
    %1294 = vmatprep.subr.mxu0 0.0
    %1295 = vmatpush1.msra.mxu0 0.0
    %1296 = vmatprep.subr.mxu0 0.0
    %1297 = vmatpush1.msra.mxu0 0.0
    %1298 = vmatprep.subr.mxu0 0.0
    %1299 = vmatpush1.msra.mxu0 0.0
    %1300 = vmatprep.subr.mxu0 0.0
    %1301 = vmatpush1.msra.mxu0 0.0
    %1302 = vmatprep.subr.mxu0 0.0
    %1303 = vmatpush1.msra.mxu0 0.0
    %1304 = vmatprep.subr.mxu0 0.0
    %1305 = vmatpush1.msra.mxu0 0.0
    %1306 = vmatprep.subr.mxu0 0.0
    %1307 = vmatpush1.msra.mxu0 0.0
    %1308 = vmatprep.subr.mxu0 0.0
    %1309 = vmatpush1.msra.mxu0 0.0
    %1310 = vmatprep.subr.mxu0 0.0
    %1311 = vmatpush1.msra.mxu0 0.0
    %1312 = vmatprep.subr.mxu0 0.0
    %1313 = vmatpush1.msra.mxu0 0.0
    %1314 = vmatprep.subr.mxu0 0.0
    %1315 = vmatpush1.msra.mxu0 0.0
    %1316 = vmatprep.subr.mxu0 0.0
    %1317 = vmatpush1.msra.mxu0 0.0
    %1318 = vmatprep.subr.mxu0 0.0
    %1319 = vmatpush1.msra.mxu0 0.0
    %1320 = vmatprep.subr.mxu0 0.0
    %1321 = vmatpush1.msra.mxu0 0.0
    %1322 = vmatprep.subr.mxu0 0.0
    %1323 = vmatpush1.msra.mxu0 0.0
    %1324 = vmatprep.subr.mxu0 0.0
    %1325 = vmatpush1.msra.mxu0 0.0
    %1326 = vmatprep.subr.mxu0 0.0
    %1327 = vmatpush1.msra.mxu0 0.0
    %1328 = vmatprep.subr.mxu0 0.0
    %1329 = vmatpush1.msra.mxu0 0.0
    %1330 = vmatprep.subr.mxu0 0.0
    %1331 = vmatpush1.msra.mxu0 0.0
    %1332 = vmatprep.subr.mxu0 0.0
    %1333 = vmatpush1.msra.mxu0 0.0
    %1334 = vmatprep.subr.mxu0 0.0
    %1335 = vmatpush1.msra.mxu0 0.0
    %1336 = vmatprep.subr.mxu0 0.0
    %1337 = vmatpush1.msra.mxu0 0.0
    %1338 = vmatprep.subr.mxu0 0.0
    %1339 = vmatpush1.msra.mxu0 0.0
    %1340 = vmatprep.subr.mxu0 0.0
    %1341 = vmatpush1.msra.mxu0 0.0
    %1342 = vmatprep.subr.mxu0 0.0
    %1343 = vmatpush1.msra.mxu0 0.0
    %1344 = vmatprep.subr.mxu0 0.0
    %1345 = vmatpush1.msra.mxu0 0.0
    %1346 = vmatprep.mubr.f32.mxu0 0.0
    %1347 = vmatmul.mubr.f32.gmra.mrb[0].mxu0 %v1280
    %v1348 = vpop.f32.mrb[0].mxu0
    %v1349 = vadd.f32 0.0, %v1348
    %v1350 = vpop.f32.mrb[0].mxu0
    %1351 = vdwg.mxu0
    %v1352 = vadd.f32 %v1279, %v1349
    %v1353 = vmul.f32 %v1352, 0.5
    %v1354 = vsel %vm667, %v1352, %v1353
    %v1355 = vtanh.pop %v1354
    %v1356 = vmul.f32 %v1355, 0.5
    %v1357 = vadd.f32 %v1356, 0.5
    %v1358 = vsel %vm667, %v1355, %v1357
    %v1359 = vmul.f32 %v1358, %v1167
    %1361 = vrot.lane.b32.xlu0 %v1358, 64
    %v1362 = vpop.permute.xlu0 %1361
    %v1364 = vmul.f32 %v1358, %v1362
    %1366 = vrot.lane.b32.xlu0 %v1364, 32
    %v1367 = vpop.permute.xlu0 %1366
    %v1369 = vadd.f32 %v1359, %v1367
    %v1370 = vtanh.pop %v1369
    %1372 = vrot.lane.b32.xlu0 %v1370, 64
    %v1373 = vpop.permute.xlu0 %1372
    %v1375 = vmul.f32 %v1358, %v1373
    %1377 = vrot.lane.b32.xlu0 %v1375, 32
    %v1378 = vpop.permute.xlu0 %1377
    %1381 = vrot.lane.b32.xlu0 %v1278, 64
    %v1382 = vpop.permute.xlu0 %1381
    %v1384 = vsel %vm669, %v1378, %v1382
    %v1386 = vsel %vm778, %v1384, 0
    %1388 = vmatprep.subr.mxu0 0.0
    %1389 = vmatpush1.msra.mxu0 %v654
    %1390 = vmatprep.subr.mxu0 0.0
    %1391 = vmatpush1.msra.mxu0 %v655
    %1392 = vmatprep.subr.mxu0 0.0
    %1393 = vmatpush1.msra.mxu0 %v656
    %1394 = vmatprep.subr.mxu0 0.0
    %1395 = vmatpush1.msra.mxu0 %v657
    %1396 = vmatprep.subr.mxu0 0.0
    %1397 = vmatpush1.msra.mxu0 %v658
    %1398 = vmatprep.subr.mxu0 0.0
    %1399 = vmatpush1.msra.mxu0 %v659
    %1400 = vmatprep.subr.mxu0 0.0
    %1401 = vmatpush1.msra.mxu0 %v660
    %1402 = vmatprep.subr.mxu0 0.0
    %1403 = vmatpush1.msra.mxu0 %v661
    %1404 = vmatprep.subr.mxu0 0.0
    %1405 = vmatpush1.msra.mxu0 0.0
    %1406 = vmatprep.subr.mxu0 0.0
    %1407 = vmatpush1.msra.mxu0 0.0
    %1408 = vmatprep.subr.mxu0 0.0
    %1409 = vmatpush1.msra.mxu0 0.0
    %1410 = vmatprep.subr.mxu0 0.0
    %1411 = vmatpush1.msra.mxu0 0.0
    %1412 = vmatprep.subr.mxu0 0.0
    %1413 = vmatpush1.msra.mxu0 0.0
    %1414 = vmatprep.subr.mxu0 0.0
    %1415 = vmatpush1.msra.mxu0 0.0
    %1416 = vmatprep.subr.mxu0 0.0
    %1417 = vmatpush1.msra.mxu0 0.0
    %1418 = vmatprep.subr.mxu0 0.0
    %1419 = vmatpush1.msra.mxu0 0.0
    %1420 = vmatprep.subr.mxu0 0.0
    %1421 = vmatpush1.msra.mxu0 0.0
    %1422 = vmatprep.subr.mxu0 0.0
    %1423 = vmatpush1.msra.mxu0 0.0
    %1424 = vmatprep.subr.mxu0 0.0
    %1425 = vmatpush1.msra.mxu0 0.0
    %1426 = vmatprep.subr.mxu0 0.0
    %1427 = vmatpush1.msra.mxu0 0.0
    %1428 = vmatprep.subr.mxu0 0.0
    %1429 = vmatpush1.msra.mxu0 0.0
    %1430 = vmatprep.subr.mxu0 0.0
    %1431 = vmatpush1.msra.mxu0 0.0
    %1432 = vmatprep.subr.mxu0 0.0
    %1433 = vmatpush1.msra.mxu0 0.0
    %1434 = vmatprep.subr.mxu0 0.0
    %1435 = vmatpush1.msra.mxu0 0.0
    %1436 = vmatprep.subr.mxu0 0.0
    %1437 = vmatpush1.msra.mxu0 0.0
    %1438 = vmatprep.subr.mxu0 0.0
    %1439 = vmatpush1.msra.mxu0 0.0
    %1440 = vmatprep.subr.mxu0 0.0
    %1441 = vmatpush1.msra.mxu0 0.0
    %1442 = vmatprep.subr.mxu0 0.0
    %1443 = vmatpush1.msra.mxu0 0.0
    %1444 = vmatprep.subr.mxu0 0.0
    %1445 = vmatpush1.msra.mxu0 0.0
    %1446 = vmatprep.subr.mxu0 0.0
    %1447 = vmatpush1.msra.mxu0 0.0
    %1448 = vmatprep.subr.mxu0 0.0
    %1449 = vmatpush1.msra.mxu0 0.0
    %1450 = vmatprep.subr.mxu0 0.0
    %1451 = vmatpush1.msra.mxu0 0.0
    %1452 = vmatprep.mubr.f32.mxu0 0.0
    %1453 = vmatmul.mubr.f32.gmra.mrb[0].mxu0 %v1386
    %v1454 = vpop.f32.mrb[0].mxu0
    %v1455 = vadd.f32 %v776, %v1454
    %v1456 = vpop.f32.mrb[0].mxu0
    %1457 = vdwg.mxu0
    %v1458 = vmul.f32 %v1455, 0.5
    %v1459 = vsel %vm667, %v1455, %v1458
    %v1460 = vtanh.pop %v1459
    %v1461 = vmul.f32 %v1460, 0.5
    %v1462 = vadd.f32 %v1461, 0.5
    %v1463 = vsel %vm667, %v1460, %v1462
    %v1464 = vmul.f32 %v1463, %v1272
    %1466 = vrot.lane.b32.xlu0 %v1463, 64
    %v1467 = vpop.permute.xlu0 %1466
    %v1469 = vmul.f32 %v1463, %v1467
    %1471 = vrot.lane.b32.xlu0 %v1469, 32
    %v1472 = vpop.permute.xlu0 %1471
    %v1474 = vadd.f32 %v1464, %v1472
    %v1475 = vtanh.pop %v1474
    %1477 = vrot.lane.b32.xlu0 %v1475, 64
    %v1478 = vpop.permute.xlu0 %1477
    %v1480 = vmul.f32 %v1463, %v1478
    %v1481 = vld [vmem:[#allocation2 + $0x8] sm:$0x3]
    %v1482 = vsel %vm669, %v1378, 0
    %1484 = vmatprep.subr.mxu0 0.0
    %1485 = vmatpush1.msra.mxu0 %v650
    %1486 = vmatprep.subr.mxu0 0.0
    %1487 = vmatpush1.msra.mxu0 %v651
    %1488 = vmatprep.subr.mxu0 0.0
    %1489 = vmatpush1.msra.mxu0 %v652
    %1490 = vmatprep.subr.mxu0 0.0
    %1491 = vmatpush1.msra.mxu0 %v653
    %1492 = vmatprep.subr.mxu0 0.0
    %1493 = vmatpush1.msra.mxu0 0.0
    %1494 = vmatprep.subr.mxu0 0.0
    %1495 = vmatpush1.msra.mxu0 0.0
    %1496 = vmatprep.subr.mxu0 0.0
    %1497 = vmatpush1.msra.mxu0 0.0
    %1498 = vmatprep.subr.mxu0 0.0
    %1499 = vmatpush1.msra.mxu0 0.0
    %1500 = vmatprep.subr.mxu0 0.0
    %1501 = vmatpush1.msra.mxu0 0.0
    %1502 = vmatprep.subr.mxu0 0.0
    %1503 = vmatpush1.msra.mxu0 0.0
    %1504 = vmatprep.subr.mxu0 0.0
    %1505 = vmatpush1.msra.mxu0 0.0
    %1506 = vmatprep.subr.mxu0 0.0
    %1507 = vmatpush1.msra.mxu0 0.0
    %1508 = vmatprep.subr.mxu0 0.0
    %1509 = vmatpush1.msra.mxu0 0.0
    %1510 = vmatprep.subr.mxu0 0.0
    %1511 = vmatpush1.msra.mxu0 0.0
    %1512 = vmatprep.subr.mxu0 0.0
    %1513 = vmatpush1.msra.mxu0 0.0
    %1514 = vmatprep.subr.mxu0 0.0
    %1515 = vmatpush1.msra.mxu0 0.0
    %1516 = vmatprep.subr.mxu0 0.0
    %1517 = vmatpush1.msra.mxu0 0.0
    %1518 = vmatprep.subr.mxu0 0.0
    %1519 = vmatpush1.msra.mxu0 0.0
    %1520 = vmatprep.subr.mxu0 0.0
    %1521 = vmatpush1.msra.mxu0 0.0
    %1522 = vmatprep.subr.mxu0 0.0
    %1523 = vmatpush1.msra.mxu0 0.0
    %1524 = vmatprep.subr.mxu0 0.0
    %1525 = vmatpush1.msra.mxu0 0.0
    %1526 = vmatprep.subr.mxu0 0.0
    %1527 = vmatpush1.msra.mxu0 0.0
    %1528 = vmatprep.subr.mxu0 0.0
    %1529 = vmatpush1.msra.mxu0 0.0
    %1530 = vmatprep.subr.mxu0 0.0
    %1531 = vmatpush1.msra.mxu0 0.0
    %1532 = vmatprep.subr.mxu0 0.0
    %1533 = vmatpush1.msra.mxu0 0.0
    %1534 = vmatprep.subr.mxu0 0.0
    %1535 = vmatpush1.msra.mxu0 0.0
    %1536 = vmatprep.subr.mxu0 0.0
    %1537 = vmatpush1.msra.mxu0 0.0
    %1538 = vmatprep.subr.mxu0 0.0
    %1539 = vmatpush1.msra.mxu0 0.0
    %1540 = vmatprep.subr.mxu0 0.0
    %1541 = vmatpush1.msra.mxu0 0.0
    %1542 = vmatprep.subr.mxu0 0.0
    %1543 = vmatpush1.msra.mxu0 0.0
    %1544 = vmatprep.subr.mxu0 0.0
    %1545 = vmatpush1.msra.mxu0 0.0
    %1546 = vmatprep.subr.mxu0 0.0
    %1547 = vmatpush1.msra.mxu0 0.0
    %1548 = vmatprep.mubr.f32.mxu0 0.0
    %1549 = vmatmul.mubr.f32.gmra.mrb[0].mxu0 %v1482
    %v1550 = vpop.f32.mrb[0].mxu0
    %v1551 = vadd.f32 0.0, %v1550
    %v1552 = vpop.f32.mrb[0].mxu0
    %1553 = vdwg.mxu0
    %v1554 = vadd.f32 %v1481, %v1551
    %v1555 = vmul.f32 %v1554, 0.5
    %v1556 = vsel %vm667, %v1554, %v1555
    %v1557 = vtanh.pop %v1556
    %v1558 = vmul.f32 %v1557, 0.5
    %v1559 = vadd.f32 %v1558, 0.5
    %v1560 = vsel %vm667, %v1557, %v1559
    %v1561 = vmul.f32 %v1560, %v1369
    %1563 = vrot.lane.b32.xlu0 %v1560, 64
    %v1564 = vpop.permute.xlu0 %1563
    %v1566 = vmul.f32 %v1560, %v1564
    %1568 = vrot.lane.b32.xlu0 %v1566, 32
    %v1569 = vpop.permute.xlu0 %1568
    %v1571 = vadd.f32 %v1561, %v1569
    %v1572 = vtanh.pop %v1571
    %1574 = vrot.lane.b32.xlu0 %v1572, 64
    %v1575 = vpop.permute.xlu0 %1574
    %v1577 = vmul.f32 %v1560, %v1575
    %1579 = vrot.lane.b32.xlu0 %v1577, 32
    %v1580 = vpop.permute.xlu0 %1579
    %1583 = vrot.lane.b32.xlu0 %v1480, 64
    %v1584 = vpop.permute.xlu0 %1583
    %v1586 = vsel %vm669, %v1580, %v1584
    %v1588 = vsel %vm778, %v1586, 0
    %1590 = vmatprep.subr.mxu0 0.0
    %1591 = vmatpush1.msra.mxu0 %v654
    %1592 = vmatprep.subr.mxu0 0.0
    %1593 = vmatpush1.msra.mxu0 %v655
    %1594 = vmatprep.subr.mxu0 0.0
    %1595 = vmatpush1.msra.mxu0 %v656
    %1596 = vmatprep.subr.mxu0 0.0
    %1597 = vmatpush1.msra.mxu0 %v657
    %1598 = vmatprep.subr.mxu0 0.0
    %1599 = vmatpush1.msra.mxu0 %v658
    %1600 = vmatprep.subr.mxu0 0.0
    %1601 = vmatpush1.msra.mxu0 %v659
    %1602 = vmatprep.subr.mxu0 0.0
    %1603 = vmatpush1.msra.mxu0 %v660
    %1604 = vmatprep.subr.mxu0 0.0
    %1605 = vmatpush1.msra.mxu0 %v661
    %1606 = vmatprep.subr.mxu0 0.0
    %1607 = vmatpush1.msra.mxu0 0.0
    %1608 = vmatprep.subr.mxu0 0.0
    %1609 = vmatpush1.msra.mxu0 0.0
    %1610 = vmatprep.subr.mxu0 0.0
    %1611 = vmatpush1.msra.mxu0 0.0
    %1612 = vmatprep.subr.mxu0 0.0
    %1613 = vmatpush1.msra.mxu0 0.0
    %1614 = vmatprep.subr.mxu0 0.0
    %1615 = vmatpush1.msra.mxu0 0.0
    %1616 = vmatprep.subr.mxu0 0.0
    %1617 = vmatpush1.msra.mxu0 0.0
    %1618 = vmatprep.subr.mxu0 0.0
    %1619 = vmatpush1.msra.mxu0 0.0
    %1620 = vmatprep.subr.mxu0 0.0
    %1621 = vmatpush1.msra.mxu0 0.0
    %1622 = vmatprep.subr.mxu0 0.0
    %1623 = vmatpush1.msra.mxu0 0.0
    %1624 = vmatprep.subr.mxu0 0.0
    %1625 = vmatpush1.msra.mxu0 0.0
    %1626 = vmatprep.subr.mxu0 0.0
    %1627 = vmatpush1.msra.mxu0 0.0
    %1628 = vmatprep.subr.mxu0 0.0
    %1629 = vmatpush1.msra.mxu0 0.0
    %1630 = vmatprep.subr.mxu0 0.0
    %1631 = vmatpush1.msra.mxu0 0.0
    %1632 = vmatprep.subr.mxu0 0.0
    %1633 = vmatpush1.msra.mxu0 0.0
    %1634 = vmatprep.subr.mxu0 0.0
    %1635 = vmatpush1.msra.mxu0 0.0
    %1636 = vmatprep.subr.mxu0 0.0
    %1637 = vmatpush1.msra.mxu0 0.0
    %1638 = vmatprep.subr.mxu0 0.0
    %1639 = vmatpush1.msra.mxu0 0.0
    %1640 = vmatprep.subr.mxu0 0.0
    %1641 = vmatpush1.msra.mxu0 0.0
    %1642 = vmatprep.subr.mxu0 0.0
    %1643 = vmatpush1.msra.mxu0 0.0
    %1644 = vmatprep.subr.mxu0 0.0
    %1645 = vmatpush1.msra.mxu0 0.0
    %1646 = vmatprep.subr.mxu0 0.0
    %1647 = vmatpush1.msra.mxu0 0.0
    %1648 = vmatprep.subr.mxu0 0.0
    %1649 = vmatpush1.msra.mxu0 0.0
    %1650 = vmatprep.subr.mxu0 0.0
    %1651 = vmatpush1.msra.mxu0 0.0
    %1652 = vmatprep.subr.mxu0 0.0
    %1653 = vmatpush1.msra.mxu0 0.0
    %1654 = vmatprep.mubr.f32.mxu0 0.0
    %1655 = vmatmul.mubr.f32.gmra.mrb[0].mxu0 %v1588
    %v1656 = vpop.f32.mrb[0].mxu0
    %v1657 = vadd.f32 %v776, %v1656
    %v1658 = vpop.f32.mrb[0].mxu0
    %1659 = vdwg.mxu0
    %v1660 = vmul.f32 %v1657, 0.5
    %v1661 = vsel %vm667, %v1657, %v1660
    %v1662 = vtanh.pop %v1661
    %v1663 = vmul.f32 %v1662, 0.5
    %v1664 = vadd.f32 %v1663, 0.5
    %v1665 = vsel %vm667, %v1662, %v1664
    %v1666 = vmul.f32 %v1665, %v1474
    %1668 = vrot.lane.b32.xlu0 %v1665, 64
    %v1669 = vpop.permute.xlu0 %1668
    %v1671 = vmul.f32 %v1665, %v1669
    %1673 = vrot.lane.b32.xlu0 %v1671, 32
    %v1674 = vpop.permute.xlu0 %1673
    %v1676 = vadd.f32 %v1666, %v1674
    %v1677 = vtanh.pop %v1676
    %1679 = vrot.lane.b32.xlu0 %v1677, 64
    %v1680 = vpop.permute.xlu0 %1679
    %v1682 = vmul.f32 %v1665, %v1680
    %v1683 = vld [vmem:[#allocation2 + $0xa] sm:$0x3]
    %v1684 = vsel %vm669, %v1580, 0
    %1686 = vmatprep.subr.mxu0 0.0
    %1687 = vmatpush1.msra.mxu0 %v650
    %1688 = vmatprep.subr.mxu0 0.0
    %1689 = vmatpush1.msra.mxu0 %v651
    %1690 = vmatprep.subr.mxu0 0.0
    %1691 = vmatpush1.msra.mxu0 %v652
    %1692 = vmatprep.subr.mxu0 0.0
    %1693 = vmatpush1.msra.mxu0 %v653
    %1694 = vmatprep.subr.mxu0 0.0
    %1695 = vmatpush1.msra.mxu0 0.0
    %1696 = vmatprep.subr.mxu0 0.0
    %1697 = vmatpush1.msra.mxu0 0.0
    %1698 = vmatprep.subr.mxu0 0.0
    %1699 = vmatpush1.msra.mxu0 0.0
    %1700 = vmatprep.subr.mxu0 0.0
    %1701 = vmatpush1.msra.mxu0 0.0
    %1702 = vmatprep.subr.mxu0 0.0
    %1703 = vmatpush1.msra.mxu0 0.0
    %1704 = vmatprep.subr.mxu0 0.0
    %1705 = vmatpush1.msra.mxu0 0.0
    %1706 = vmatprep.subr.mxu0 0.0
    %1707 = vmatpush1.msra.mxu0 0.0
    %1708 = vmatprep.subr.mxu0 0.0
    %1709 = vmatpush1.msra.mxu0 0.0
    %1710 = vmatprep.subr.mxu0 0.0
    %1711 = vmatpush1.msra.mxu0 0.0
    %1712 = vmatprep.subr.mxu0 0.0
    %1713 = vmatpush1.msra.mxu0 0.0
    %1714 = vmatprep.subr.mxu0 0.0
    %1715 = vmatpush1.msra.mxu0 0.0
    %1716 = vmatprep.subr.mxu0 0.0
    %1717 = vmatpush1.msra.mxu0 0.0
    %1718 = vmatprep.subr.mxu0 0.0
    %1719 = vmatpush1.msra.mxu0 0.0
    %1720 = vmatprep.subr.mxu0 0.0
    %1721 = vmatpush1.msra.mxu0 0.0
    %1722 = vmatprep.subr.mxu0 0.0
    %1723 = vmatpush1.msra.mxu0 0.0
    %1724 = vmatprep.subr.mxu0 0.0
    %1725 = vmatpush1.msra.mxu0 0.0
    %1726 = vmatprep.subr.mxu0 0.0
    %1727 = vmatpush1.msra.mxu0 0.0
    %1728 = vmatprep.subr.mxu0 0.0
    %1729 = vmatpush1.msra.mxu0 0.0
    %1730 = vmatprep.subr.mxu0 0.0
    %1731 = vmatpush1.msra.mxu0 0.0
    %1732 = vmatprep.subr.mxu0 0.0
    %1733 = vmatpush1.msra.mxu0 0.0
    %1734 = vmatprep.subr.mxu0 0.0
    %1735 = vmatpush1.msra.mxu0 0.0
    %1736 = vmatprep.subr.mxu0 0.0
    %1737 = vmatpush1.msra.mxu0 0.0
    %1738 = vmatprep.subr.mxu0 0.0
    %1739 = vmatpush1.msra.mxu0 0.0
    %1740 = vmatprep.subr.mxu0 0.0
    %1741 = vmatpush1.msra.mxu0 0.0
    %1742 = vmatprep.subr.mxu0 0.0
    %1743 = vmatpush1.msra.mxu0 0.0
    %1744 = vmatprep.subr.mxu0 0.0
    %1745 = vmatpush1.msra.mxu0 0.0
    %1746 = vmatprep.subr.mxu0 0.0
    %1747 = vmatpush1.msra.mxu0 0.0
    %1748 = vmatprep.subr.mxu0 0.0
    %1749 = vmatpush1.msra.mxu0 0.0
    %1750 = vmatprep.mubr.f32.mxu0 0.0
    %1751 = vmatmul.mubr.f32.gmra.mrb[0].mxu0 %v1684
    %v1752 = vpop.f32.mrb[0].mxu0
    %v1753 = vadd.f32 0.0, %v1752
    %v1754 = vpop.f32.mrb[0].mxu0
    %1755 = vdwg.mxu0
    %v1756 = vadd.f32 %v1683, %v1753
    %v1757 = vmul.f32 %v1756, 0.5
    %v1758 = vsel %vm667, %v1756, %v1757
    %v1759 = vtanh.pop %v1758
    %v1760 = vmul.f32 %v1759, 0.5
    %v1761 = vadd.f32 %v1760, 0.5
    %v1762 = vsel %vm667, %v1759, %v1761
    %v1763 = vmul.f32 %v1762, %v1571
    %1765 = vrot.lane.b32.xlu0 %v1762, 64
    %v1766 = vpop.permute.xlu0 %1765
    %v1768 = vmul.f32 %v1762, %v1766
    %1770 = vrot.lane.b32.xlu0 %v1768, 32
    %v1771 = vpop.permute.xlu0 %1770
    %v1773 = vadd.f32 %v1763, %v1771
    %v1774 = vtanh.pop %v1773
    %1776 = vrot.lane.b32.xlu0 %v1774, 64
    %v1777 = vpop.permute.xlu0 %1776
    %v1779 = vmul.f32 %v1762, %v1777
    %1781 = vrot.lane.b32.xlu0 %v1779, 32
    %v1782 = vpop.permute.xlu0 %1781
    %1785 = vrot.lane.b32.xlu0 %v1682, 64
    %v1786 = vpop.permute.xlu0 %1785
    %v1788 = vsel %vm669, %v1782, %v1786
    %v1790 = vsel %vm778, %v1788, 0
    %1792 = vmatprep.subr.mxu0 0.0
    %1793 = vmatpush1.msra.mxu0 %v654
    %1794 = vmatprep.subr.mxu0 0.0
    %1795 = vmatpush1.msra.mxu0 %v655
    %1796 = vmatprep.subr.mxu0 0.0
    %1797 = vmatpush1.msra.mxu0 %v656
    %1798 = vmatprep.subr.mxu0 0.0
    %1799 = vmatpush1.msra.mxu0 %v657
    %1800 = vmatprep.subr.mxu0 0.0
    %1801 = vmatpush1.msra.mxu0 %v658
    %1802 = vmatprep.subr.mxu0 0.0
    %1803 = vmatpush1.msra.mxu0 %v659
    %1804 = vmatprep.subr.mxu0 0.0
    %1805 = vmatpush1.msra.mxu0 %v660
    %1806 = vmatprep.subr.mxu0 0.0
    %1807 = vmatpush1.msra.mxu0 %v661
    %1808 = vmatprep.subr.mxu0 0.0
    %1809 = vmatpush1.msra.mxu0 0.0
    %1810 = vmatprep.subr.mxu0 0.0
    %1811 = vmatpush1.msra.mxu0 0.0
    %1812 = vmatprep.subr.mxu0 0.0
    %1813 = vmatpush1.msra.mxu0 0.0
    %1814 = vmatprep.subr.mxu0 0.0
    %1815 = vmatpush1.msra.mxu0 0.0
    %1816 = vmatprep.subr.mxu0 0.0
    %1817 = vmatpush1.msra.mxu0 0.0
    %1818 = vmatprep.subr.mxu0 0.0
    %1819 = vmatpush1.msra.mxu0 0.0
    %1820 = vmatprep.subr.mxu0 0.0
    %1821 = vmatpush1.msra.mxu0 0.0
    %1822 = vmatprep.subr.mxu0 0.0
    %1823 = vmatpush1.msra.mxu0 0.0
    %1824 = vmatprep.subr.mxu0 0.0
    %1825 = vmatpush1.msra.mxu0 0.0
    %1826 = vmatprep.subr.mxu0 0.0
    %1827 = vmatpush1.msra.mxu0 0.0
    %1828 = vmatprep.subr.mxu0 0.0
    %1829 = vmatpush1.msra.mxu0 0.0
    %1830 = vmatprep.subr.mxu0 0.0
    %1831 = vmatpush1.msra.mxu0 0.0
    %1832 = vmatprep.subr.mxu0 0.0
    %1833 = vmatpush1.msra.mxu0 0.0
    %1834 = vmatprep.subr.mxu0 0.0
    %1835 = vmatpush1.msra.mxu0 0.0
    %1836 = vmatprep.subr.mxu0 0.0
    %1837 = vmatpush1.msra.mxu0 0.0
    %1838 = vmatprep.subr.mxu0 0.0
    %1839 = vmatpush1.msra.mxu0 0.0
    %1840 = vmatprep.subr.mxu0 0.0
    %1841 = vmatpush1.msra.mxu0 0.0
    %1842 = vmatprep.subr.mxu0 0.0
    %1843 = vmatpush1.msra.mxu0 0.0
    %1844 = vmatprep.subr.mxu0 0.0
    %1845 = vmatpush1.msra.mxu0 0.0
    %1846 = vmatprep.subr.mxu0 0.0
    %1847 = vmatpush1.msra.mxu0 0.0
    %1848 = vmatprep.subr.mxu0 0.0
    %1849 = vmatpush1.msra.mxu0 0.0
    %1850 = vmatprep.subr.mxu0 0.0
    %1851 = vmatpush1.msra.mxu0 0.0
    %1852 = vmatprep.subr.mxu0 0.0
    %1853 = vmatpush1.msra.mxu0 0.0
    %1854 = vmatprep.subr.mxu0 0.0
    %1855 = vmatpush1.msra.mxu0 0.0
    %1856 = vmatprep.mubr.f32.mxu0 0.0
    %1857 = vmatmul.mubr.f32.gmra.mrb[0].mxu0 %v1790
    %v1858 = vpop.f32.mrb[0].mxu0
    %v1859 = vadd.f32 %v776, %v1858
    %v1860 = vpop.f32.mrb[0].mxu0
    %1861 = vdwg.mxu0
    %v1862 = vmul.f32 %v1859, 0.5
    %v1863 = vsel %vm667, %v1859, %v1862
    %v1864 = vtanh.pop %v1863
    %v1865 = vmul.f32 %v1864, 0.5
    %v1866 = vadd.f32 %v1865, 0.5
    %v1867 = vsel %vm667, %v1864, %v1866
    %v1868 = vmul.f32 %v1867, %v1676
    %1870 = vrot.lane.b32.xlu0 %v1867, 64
    %v1871 = vpop.permute.xlu0 %1870
    %v1873 = vmul.f32 %v1867, %v1871
    %1875 = vrot.lane.b32.xlu0 %v1873, 32
    %v1876 = vpop.permute.xlu0 %1875
    %v1878 = vadd.f32 %v1868, %v1876
    %v1879 = vtanh.pop %v1878
    %1881 = vrot.lane.b32.xlu0 %v1879, 64
    %v1882 = vpop.permute.xlu0 %1881
    %v1884 = vmul.f32 %v1867, %v1882
    %v1885 = vld [vmem:[#allocation2 + $0xc] sm:$0x3]
    %v1886 = vsel %vm669, %v1782, 0
    %1888 = vmatprep.subr.mxu0 0.0
    %1889 = vmatpush1.msra.mxu0 %v650
    %1890 = vmatprep.subr.mxu0 0.0
    %1891 = vmatpush1.msra.mxu0 %v651
    %1892 = vmatprep.subr.mxu0 0.0
    %1893 = vmatpush1.msra.mxu0 %v652
    %1894 = vmatprep.subr.mxu0 0.0
    %1895 = vmatpush1.msra.mxu0 %v653
    %1896 = vmatprep.subr.mxu0 0.0
    %1897 = vmatpush1.msra.mxu0 0.0
    %1898 = vmatprep.subr.mxu0 0.0
    %1899 = vmatpush1.msra.mxu0 0.0
    %1900 = vmatprep.subr.mxu0 0.0
    %1901 = vmatpush1.msra.mxu0 0.0
    %1902 = vmatprep.subr.mxu0 0.0
    %1903 = vmatpush1.msra.mxu0 0.0
    %1904 = vmatprep.subr.mxu0 0.0
    %1905 = vmatpush1.msra.mxu0 0.0
    %1906 = vmatprep.subr.mxu0 0.0
    %1907 = vmatpush1.msra.mxu0 0.0
    %1908 = vmatprep.subr.mxu0 0.0
    %1909 = vmatpush1.msra.mxu0 0.0
    %1910 = vmatprep.subr.mxu0 0.0
    %1911 = vmatpush1.msra.mxu0 0.0
    %1912 = vmatprep.subr.mxu0 0.0
    %1913 = vmatpush1.msra.mxu0 0.0
    %1914 = vmatprep.subr.mxu0 0.0
    %1915 = vmatpush1.msra.mxu0 0.0
    %1916 = vmatprep.subr.mxu0 0.0
    %1917 = vmatpush1.msra.mxu0 0.0
    %1918 = vmatprep.subr.mxu0 0.0
    %1919 = vmatpush1.msra.mxu0 0.0
    %1920 = vmatprep.subr.mxu0 0.0
    %1921 = vmatpush1.msra.mxu0 0.0
    %1922 = vmatprep.subr.mxu0 0.0
    %1923 = vmatpush1.msra.mxu0 0.0
    %1924 = vmatprep.subr.mxu0 0.0
    %1925 = vmatpush1.msra.mxu0 0.0
    %1926 = vmatprep.subr.mxu0 0.0
    %1927 = vmatpush1.msra.mxu0 0.0
    %1928 = vmatprep.subr.mxu0 0.0
    %1929 = vmatpush1.msra.mxu0 0.0
    %1930 = vmatprep.subr.mxu0 0.0
    %1931 = vmatpush1.msra.mxu0 0.0
    %1932 = vmatprep.subr.mxu0 0.0
    %1933 = vmatpush1.msra.mxu0 0.0
    %1934 = vmatprep.subr.mxu0 0.0
    %1935 = vmatpush1.msra.mxu0 0.0
    %1936 = vmatprep.subr.mxu0 0.0
    %1937 = vmatpush1.msra.mxu0 0.0
    %1938 = vmatprep.subr.mxu0 0.0
    %1939 = vmatpush1.msra.mxu0 0.0
    %1940 = vmatprep.subr.mxu0 0.0
    %1941 = vmatpush1.msra.mxu0 0.0
    %1942 = vmatprep.subr.mxu0 0.0
    %1943 = vmatpush1.msra.mxu0 0.0
    %1944 = vmatprep.subr.mxu0 0.0
    %1945 = vmatpush1.msra.mxu0 0.0
    %1946 = vmatprep.subr.mxu0 0.0
    %1947 = vmatpush1.msra.mxu0 0.0
    %1948 = vmatprep.subr.mxu0 0.0
    %1949 = vmatpush1.msra.mxu0 0.0
    %1950 = vmatprep.subr.mxu0 0.0
    %1951 = vmatpush1.msra.mxu0 0.0
    %1952 = vmatprep.mubr.f32.mxu0 0.0
    %1953 = vmatmul.mubr.f32.gmra.mrb[0].mxu0 %v1886
    %v1954 = vpop.f32.mrb[0].mxu0
    %v1955 = vadd.f32 0.0, %v1954
    %v1956 = vpop.f32.mrb[0].mxu0
    %1957 = vdwg.mxu0
    %v1958 = vadd.f32 %v1885, %v1955
    %v1959 = vmul.f32 %v1958, 0.5
    %v1960 = vsel %vm667, %v1958, %v1959
    %v1961 = vtanh.pop %v1960
    %v1962 = vmul.f32 %v1961, 0.5
    %v1963 = vadd.f32 %v1962, 0.5
    %v1964 = vsel %vm667, %v1961, %v1963
    %v1965 = vmul.f32 %v1964, %v1773
    %1967 = vrot.lane.b32.xlu0 %v1964, 64
    %v1968 = vpop.permute.xlu0 %1967
    %v1970 = vmul.f32 %v1964, %v1968
    %1972 = vrot.lane.b32.xlu0 %v1970, 32
    %v1973 = vpop.permute.xlu0 %1972
    %v1975 = vadd.f32 %v1965, %v1973
    %v1976 = vtanh.pop %v1975
    %1978 = vrot.lane.b32.xlu0 %v1976, 64
    %v1979 = vpop.permute.xlu0 %1978
    %v1981 = vmul.f32 %v1964, %v1979
    %1983 = vrot.lane.b32.xlu0 %v1981, 32
    %v1984 = vpop.permute.xlu0 %1983
    %1987 = vrot.lane.b32.xlu0 %v1884, 64
    %v1988 = vpop.permute.xlu0 %1987
    %v1990 = vsel %vm669, %v1984, %v1988
    %v1992 = vsel %vm778, %v1990, 0
    %1994 = vmatprep.subr.mxu0 0.0
    %1995 = vmatpush1.msra.mxu0 %v654
    %1996 = vmatprep.subr.mxu0 0.0
    %1997 = vmatpush1.msra.mxu0 %v655
    %1998 = vmatprep.subr.mxu0 0.0
    %1999 = vmatpush1.msra.mxu0 %v656
    %2000 = vmatprep.subr.mxu0 0.0
    %2001 = vmatpush1.msra.mxu0 %v657
    %2002 = vmatprep.subr.mxu0 0.0
    %2003 = vmatpush1.msra.mxu0 %v658
    %2004 = vmatprep.subr.mxu0 0.0
    %2005 = vmatpush1.msra.mxu0 %v659
    %2006 = vmatprep.subr.mxu0 0.0
    %2007 = vmatpush1.msra.mxu0 %v660
    %2008 = vmatprep.subr.mxu0 0.0
    %2009 = vmatpush1.msra.mxu0 %v661
    %2010 = vmatprep.subr.mxu0 0.0
    %2011 = vmatpush1.msra.mxu0 0.0
    %2012 = vmatprep.subr.mxu0 0.0
    %2013 = vmatpush1.msra.mxu0 0.0
    %2014 = vmatprep.subr.mxu0 0.0
    %2015 = vmatpush1.msra.mxu0 0.0
    %2016 = vmatprep.subr.mxu0 0.0
    %2017 = vmatpush1.msra.mxu0 0.0
    %2018 = vmatprep.subr.mxu0 0.0
    %2019 = vmatpush1.msra.mxu0 0.0
    %2020 = vmatprep.subr.mxu0 0.0
    %2021 = vmatpush1.msra.mxu0 0.0
    %2022 = vmatprep.subr.mxu0 0.0
    %2023 = vmatpush1.msra.mxu0 0.0
    %2024 = vmatprep.subr.mxu0 0.0
    %2025 = vmatpush1.msra.mxu0 0.0
    %2026 = vmatprep.subr.mxu0 0.0
    %2027 = vmatpush1.msra.mxu0 0.0
    %2028 = vmatprep.subr.mxu0 0.0
    %2029 = vmatpush1.msra.mxu0 0.0
    %2030 = vmatprep.subr.mxu0 0.0
    %2031 = vmatpush1.msra.mxu0 0.0
    %2032 = vmatprep.subr.mxu0 0.0
    %2033 = vmatpush1.msra.mxu0 0.0
    %2034 = vmatprep.subr.mxu0 0.0
    %2035 = vmatpush1.msra.mxu0 0.0
    %2036 = vmatprep.subr.mxu0 0.0
    %2037 = vmatpush1.msra.mxu0 0.0
    %2038 = vmatprep.subr.mxu0 0.0
    %2039 = vmatpush1.msra.mxu0 0.0
    %2040 = vmatprep.subr.mxu0 0.0
    %2041 = vmatpush1.msra.mxu0 0.0
    %2042 = vmatprep.subr.mxu0 0.0
    %2043 = vmatpush1.msra.mxu0 0.0
    %2044 = vmatprep.subr.mxu0 0.0
    %2045 = vmatpush1.msra.mxu0 0.0
    %2046 = vmatprep.subr.mxu0 0.0
    %2047 = vmatpush1.msra.mxu0 0.0
    %2048 = vmatprep.subr.mxu0 0.0
    %2049 = vmatpush1.msra.mxu0 0.0
    %2050 = vmatprep.subr.mxu0 0.0
    %2051 = vmatpush1.msra.mxu0 0.0
    %2052 = vmatprep.subr.mxu0 0.0
    %2053 = vmatpush1.msra.mxu0 0.0
    %2054 = vmatprep.subr.mxu0 0.0
    %2055 = vmatpush1.msra.mxu0 0.0
    %2056 = vmatprep.subr.mxu0 0.0
    %2057 = vmatpush1.msra.mxu0 0.0
    %2058 = vmatprep.mubr.f32.mxu0 0.0
    %2059 = vmatmul.mubr.f32.gmra.mrb[0].mxu0 %v1992
    %v2060 = vpop.f32.mrb[0].mxu0
    %v2061 = vadd.f32 %v776, %v2060
    %v2062 = vpop.f32.mrb[0].mxu0
    %2063 = vdwg.mxu0
    %v2064 = vmul.f32 %v2061, 0.5
    %v2065 = vsel %vm667, %v2061, %v2064
    %v2066 = vtanh.pop %v2065
    %v2067 = vmul.f32 %v2066, 0.5
    %v2068 = vadd.f32 %v2067, 0.5
    %v2069 = vsel %vm667, %v2066, %v2068
    %v2070 = vmul.f32 %v2069, %v1878
    %2072 = vrot.lane.b32.xlu0 %v2069, 64
    %v2073 = vpop.permute.xlu0 %2072
    %v2075 = vmul.f32 %v2069, %v2073
    %2077 = vrot.lane.b32.xlu0 %v2075, 32
    %v2078 = vpop.permute.xlu0 %2077
    %v2080 = vadd.f32 %v2070, %v2078
    %v2081 = vtanh.pop %v2080
    %2083 = vrot.lane.b32.xlu0 %v2081, 64
    %v2084 = vpop.permute.xlu0 %2083
    %v2086 = vmul.f32 %v2069, %v2084
    %v2087 = vld [vmem:[#allocation2 + $0xe] sm:$0x3]
    %v2088 = vsel %vm669, %v1984, 0
    %2090 = vmatprep.subr.mxu0 0.0
    %2091 = vmatpush1.msra.mxu0 %v650
    %2092 = vmatprep.subr.mxu0 0.0
    %2093 = vmatpush1.msra.mxu0 %v651
    %2094 = vmatprep.subr.mxu0 0.0
    %2095 = vmatpush1.msra.mxu0 %v652
    %2096 = vmatprep.subr.mxu0 0.0
    %2097 = vmatpush1.msra.mxu0 %v653
    %2098 = vmatprep.subr.mxu0 0.0
    %2099 = vmatpush1.msra.mxu0 0.0
    %2100 = vmatprep.subr.mxu0 0.0
    %2101 = vmatpush1.msra.mxu0 0.0
    %2102 = vmatprep.subr.mxu0 0.0
    %2103 = vmatpush1.msra.mxu0 0.0
    %2104 = vmatprep.subr.mxu0 0.0
    %2105 = vmatpush1.msra.mxu0 0.0
    %2106 = vmatprep.subr.mxu0 0.0
    %2107 = vmatpush1.msra.mxu0 0.0
    %2108 = vmatprep.subr.mxu0 0.0
    %2109 = vmatpush1.msra.mxu0 0.0
    %2110 = vmatprep.subr.mxu0 0.0
    %2111 = vmatpush1.msra.mxu0 0.0
    %2112 = vmatprep.subr.mxu0 0.0
    %2113 = vmatpush1.msra.mxu0 0.0
    %2114 = vmatprep.subr.mxu0 0.0
    %2115 = vmatpush1.msra.mxu0 0.0
    %2116 = vmatprep.subr.mxu0 0.0
    %2117 = vmatpush1.msra.mxu0 0.0
    %2118 = vmatprep.subr.mxu0 0.0
    %2119 = vmatpush1.msra.mxu0 0.0
    %2120 = vmatprep.subr.mxu0 0.0
    %2121 = vmatpush1.msra.mxu0 0.0
    %2122 = vmatprep.subr.mxu0 0.0
    %2123 = vmatpush1.msra.mxu0 0.0
    %2124 = vmatprep.subr.mxu0 0.0
    %2125 = vmatpush1.msra.mxu0 0.0
    %2126 = vmatprep.subr.mxu0 0.0
    %2127 = vmatpush1.msra.mxu0 0.0
    %2128 = vmatprep.subr.mxu0 0.0
    %2129 = vmatpush1.msra.mxu0 0.0
    %2130 = vmatprep.subr.mxu0 0.0
    %2131 = vmatpush1.msra.mxu0 0.0
    %2132 = vmatprep.subr.mxu0 0.0
    %2133 = vmatpush1.msra.mxu0 0.0
    %2134 = vmatprep.subr.mxu0 0.0
    %2135 = vmatpush1.msra.mxu0 0.0
    %2136 = vmatprep.subr.mxu0 0.0
    %2137 = vmatpush1.msra.mxu0 0.0
    %2138 = vmatprep.subr.mxu0 0.0
    %2139 = vmatpush1.msra.mxu0 0.0
    %2140 = vmatprep.subr.mxu0 0.0
    %2141 = vmatpush1.msra.mxu0 0.0
    %2142 = vmatprep.subr.mxu0 0.0
    %2143 = vmatpush1.msra.mxu0 0.0
    %2144 = vmatprep.subr.mxu0 0.0
    %2145 = vmatpush1.msra.mxu0 0.0
    %2146 = vmatprep.subr.mxu0 0.0
    %2147 = vmatpush1.msra.mxu0 0.0
    %2148 = vmatprep.subr.mxu0 0.0
    %2149 = vmatpush1.msra.mxu0 0.0
    %2150 = vmatprep.subr.mxu0 0.0
    %2151 = vmatpush1.msra.mxu0 0.0
    %2152 = vmatprep.subr.mxu0 0.0
    %2153 = vmatpush1.msra.mxu0 0.0
    %2154 = vmatprep.mubr.f32.mxu0 0.0
    %2155 = vmatmul.mubr.f32.gmra.mrb[0].mxu0 %v2088
    %v2156 = vpop.f32.mrb[0].mxu0
    %v2157 = vadd.f32 0.0, %v2156
    %v2158 = vpop.f32.mrb[0].mxu0
    %2159 = vdwg.mxu0
    %v2160 = vadd.f32 %v2087, %v2157
    %v2161 = vmul.f32 %v2160, 0.5
    %v2162 = vsel %vm667, %v2160, %v2161
    %v2163 = vtanh.pop %v2162
    %v2164 = vmul.f32 %v2163, 0.5
    %v2165 = vadd.f32 %v2164, 0.5
    %v2166 = vsel %vm667, %v2163, %v2165
    %v2167 = vmul.f32 %v2166, %v1975
    %2169 = vrot.lane.b32.xlu0 %v2166, 64
    %v2170 = vpop.permute.xlu0 %2169
    %v2172 = vmul.f32 %v2166, %v2170
    %2174 = vrot.lane.b32.xlu0 %v2172, 32
    %v2175 = vpop.permute.xlu0 %2174
    %v2177 = vadd.f32 %v2167, %v2175
    %v2178 = vtanh.pop %v2177
    %2180 = vrot.lane.b32.xlu0 %v2178, 64
    %v2181 = vpop.permute.xlu0 %2180
    %v2183 = vmul.f32 %v2166, %v2181
    %2185 = vrot.lane.b32.xlu0 %v2183, 32
    %v2186 = vpop.permute.xlu0 %2185
    %2189 = vrot.lane.b32.xlu0 %v2086, 64
    %v2190 = vpop.permute.xlu0 %2189
    %v2192 = vsel %vm669, %v2186, %v2190
    %v2194 = vsel %vm778, %v2192, 0
    %2196 = vmatprep.subr.mxu0 0.0
    %2197 = vmatpush1.msra.mxu0 %v654
    %2198 = vmatprep.subr.mxu0 0.0
    %2199 = vmatpush1.msra.mxu0 %v655
    %2200 = vmatprep.subr.mxu0 0.0
    %2201 = vmatpush1.msra.mxu0 %v656
    %2202 = vmatprep.subr.mxu0 0.0
    %2203 = vmatpush1.msra.mxu0 %v657
    %2204 = vmatprep.subr.mxu0 0.0
    %2205 = vmatpush1.msra.mxu0 %v658
    %2206 = vmatprep.subr.mxu0 0.0
    %2207 = vmatpush1.msra.mxu0 %v659
    %2208 = vmatprep.subr.mxu0 0.0
    %2209 = vmatpush1.msra.mxu0 %v660
    %2210 = vmatprep.subr.mxu0 0.0
    %2211 = vmatpush1.msra.mxu0 %v661
    %2212 = vmatprep.subr.mxu0 0.0
    %2213 = vmatpush1.msra.mxu0 0.0
    %2214 = vmatprep.subr.mxu0 0.0
    %2215 = vmatpush1.msra.mxu0 0.0
    %2216 = vmatprep.subr.mxu0 0.0
    %2217 = vmatpush1.msra.mxu0 0.0
    %2218 = vmatprep.subr.mxu0 0.0
    %2219 = vmatpush1.msra.mxu0 0.0
    %2220 = vmatprep.subr.mxu0 0.0
    %2221 = vmatpush1.msra.mxu0 0.0
    %2222 = vmatprep.subr.mxu0 0.0
    %2223 = vmatpush1.msra.mxu0 0.0
    %2224 = vmatprep.subr.mxu0 0.0
    %2225 = vmatpush1.msra.mxu0 0.0
    %2226 = vmatprep.subr.mxu0 0.0
    %2227 = vmatpush1.msra.mxu0 0.0
    %2228 = vmatprep.subr.mxu0 0.0
    %2229 = vmatpush1.msra.mxu0 0.0
    %2230 = vmatprep.subr.mxu0 0.0
    %2231 = vmatpush1.msra.mxu0 0.0
    %2232 = vmatprep.subr.mxu0 0.0
    %2233 = vmatpush1.msra.mxu0 0.0
    %2234 = vmatprep.subr.mxu0 0.0
    %2235 = vmatpush1.msra.mxu0 0.0
    %2236 = vmatprep.subr.mxu0 0.0
    %2237 = vmatpush1.msra.mxu0 0.0
    %2238 = vmatprep.subr.mxu0 0.0
    %2239 = vmatpush1.msra.mxu0 0.0
    %2240 = vmatprep.subr.mxu0 0.0
    %2241 = vmatpush1.msra.mxu0 0.0
    %2242 = vmatprep.subr.mxu0 0.0
    %2243 = vmatpush1.msra.mxu0 0.0
    %2244 = vmatprep.subr.mxu0 0.0
    %2245 = vmatpush1.msra.mxu0 0.0
    %2246 = vmatprep.subr.mxu0 0.0
    %2247 = vmatpush1.msra.mxu0 0.0
    %2248 = vmatprep.subr.mxu0 0.0
    %2249 = vmatpush1.msra.mxu0 0.0
    %2250 = vmatprep.subr.mxu0 0.0
    %2251 = vmatpush1.msra.mxu0 0.0
    %2252 = vmatprep.subr.mxu0 0.0
    %2253 = vmatpush1.msra.mxu0 0.0
    %2254 = vmatprep.subr.mxu0 0.0
    %2255 = vmatpush1.msra.mxu0 0.0
    %2256 = vmatprep.subr.mxu0 0.0
    %2257 = vmatpush1.msra.mxu0 0.0
    %2258 = vmatprep.subr.mxu0 0.0
    %2259 = vmatpush1.msra.mxu0 0.0
    %2260 = vmatprep.mubr.f32.mxu0 0.0
    %2261 = vmatmul.mubr.f32.gmra.mrb[0].mxu0 %v2194
    %v2262 = vpop.f32.mrb[0].mxu0
    %v2263 = vadd.f32 %v776, %v2262
    %v2264 = vpop.f32.mrb[0].mxu0
    %2265 = vdwg.mxu0
    %v2266 = vmul.f32 %v2263, 0.5
    %v2267 = vsel %vm667, %v2263, %v2266
    %v2268 = vtanh.pop %v2267
    %v2269 = vmul.f32 %v2268, 0.5
    %v2270 = vadd.f32 %v2269, 0.5
    %v2271 = vsel %vm667, %v2268, %v2270
    %v2272 = vmul.f32 %v2271, %v2080
    %2274 = vrot.lane.b32.xlu0 %v2271, 64
    %v2275 = vpop.permute.xlu0 %2274
    %v2277 = vmul.f32 %v2271, %v2275
    %2279 = vrot.lane.b32.xlu0 %v2277, 32
    %v2280 = vpop.permute.xlu0 %2279
    %v2282 = vadd.f32 %v2272, %v2280
    %v2283 = vtanh.pop %v2282
    %2285 = vrot.lane.b32.xlu0 %v2283, 64
    %v2286 = vpop.permute.xlu0 %2285
    %v2288 = vmul.f32 %v2271, %v2286
    %v2289 = vld [vmem:[%s13] sm:$0xff]
    %v2290 = vld [vmem:[%s13 + $0x8] sm:$0xff]
    %v2291 = vld [vmem:[%s13 + $0x10] sm:$0xff]
    %v2292 = vld [vmem:[%s13 + $0x18] sm:$0xff]
    %v2293 = vld [vmem:[%s15] sm:$0x1]
    %v2295 = vlaneseq
    %v2296 = vshrl.u32 %v2295, 7
    %v2297 = vsub.s32 0, %v2296
    %v2298 = vrot.slane %v2293, %v2297
    %v2300 = vsel %vm669, %v2186, 0
    %2302 = vmatprep.subr.mxu0 0.0
    %2303 = vmatpush1.msra.mxu0 %v2289
    %2304 = vmatprep.subr.mxu0 0.0
    %2305 = vmatpush1.msra.mxu0 %v2290
    %2306 = vmatprep.subr.mxu0 0.0
    %2307 = vmatpush1.msra.mxu0 %v2291
    %2308 = vmatprep.subr.mxu0 0.0
    %2309 = vmatpush1.msra.mxu0 %v2292
    %2310 = vmatprep.subr.mxu0 0.0
    %2311 = vmatpush1.msra.mxu0 0.0
    %2312 = vmatprep.subr.mxu0 0.0
    %2313 = vmatpush1.msra.mxu0 0.0
    %2314 = vmatprep.subr.mxu0 0.0
    %2315 = vmatpush1.msra.mxu0 0.0
    %2316 = vmatprep.subr.mxu0 0.0
    %2317 = vmatpush1.msra.mxu0 0.0
    %2318 = vmatprep.subr.mxu0 0.0
    %2319 = vmatpush1.msra.mxu0 0.0
    %2320 = vmatprep.subr.mxu0 0.0
    %2321 = vmatpush1.msra.mxu0 0.0
    %2322 = vmatprep.subr.mxu0 0.0
    %2323 = vmatpush1.msra.mxu0 0.0
    %2324 = vmatprep.subr.mxu0 0.0
    %2325 = vmatpush1.msra.mxu0 0.0
    %2326 = vmatprep.subr.mxu0 0.0
    %2327 = vmatpush1.msra.mxu0 0.0
    %2328 = vmatprep.subr.mxu0 0.0
    %2329 = vmatpush1.msra.mxu0 0.0
    %2330 = vmatprep.subr.mxu0 0.0
    %2331 = vmatpush1.msra.mxu0 0.0
    %2332 = vmatprep.subr.mxu0 0.0
    %2333 = vmatpush1.msra.mxu0 0.0
    %2334 = vmatprep.subr.mxu0 0.0
    %2335 = vmatpush1.msra.mxu0 0.0
    %2336 = vmatprep.subr.mxu0 0.0
    %2337 = vmatpush1.msra.mxu0 0.0
    %2338 = vmatprep.subr.mxu0 0.0
    %2339 = vmatpush1.msra.mxu0 0.0
    %2340 = vmatprep.subr.mxu0 0.0
    %2341 = vmatpush1.msra.mxu0 0.0
    %2342 = vmatprep.subr.mxu0 0.0
    %2343 = vmatpush1.msra.mxu0 0.0
    %2344 = vmatprep.subr.mxu0 0.0
    %2345 = vmatpush1.msra.mxu0 0.0
    %2346 = vmatprep.subr.mxu0 0.0
    %2347 = vmatpush1.msra.mxu0 0.0
    %2348 = vmatprep.subr.mxu0 0.0
    %2349 = vmatpush1.msra.mxu0 0.0
    %2350 = vmatprep.subr.mxu0 0.0
    %2351 = vmatpush1.msra.mxu0 0.0
    %2352 = vmatprep.subr.mxu0 0.0
    %2353 = vmatpush1.msra.mxu0 0.0
    %2354 = vmatprep.subr.mxu0 0.0
    %2355 = vmatpush1.msra.mxu0 0.0
    %2356 = vmatprep.subr.mxu0 0.0
    %2357 = vmatpush1.msra.mxu0 0.0
    %2358 = vmatprep.subr.mxu0 0.0
    %2359 = vmatpush1.msra.mxu0 0.0
    %2360 = vmatprep.subr.mxu0 0.0
    %2361 = vmatpush1.msra.mxu0 0.0
    %2362 = vmatprep.subr.mxu0 0.0
    %2363 = vmatpush1.msra.mxu0 0.0
    %2364 = vmatprep.subr.mxu0 0.0
    %2365 = vmatpush1.msra.mxu0 0.0
    %2366 = vmatprep.mubr.f32.mxu0 0.0
    %2367 = vmatmul.mubr.f32.gmra.mrb[0].mxu0 %v2300
    %v2368 = vpop.f32.mrb[0].mxu0
    %v2369 = vadd.f32 %v2298, %v2368
    %v2370 = vpop.f32.mrb[0].mxu0
    %2371 = vdwg.mxu0
    %2373 = vrot.lane.b32.xlu0 %v2288, 32
    %v2374 = vpop.permute.xlu0 %2373
    %v2375 = vsel %vm669, %v2374, 0
    %2377 = vmatprep.subr.mxu0 0.0
    %2378 = vmatpush1.msra.mxu0 %v2289
    %2379 = vmatprep.subr.mxu0 0.0
    %2380 = vmatpush1.msra.mxu0 %v2290
    %2381 = vmatprep.subr.mxu0 0.0
    %2382 = vmatpush1.msra.mxu0 %v2291
    %2383 = vmatprep.subr.mxu0 0.0
    %2384 = vmatpush1.msra.mxu0 %v2292
    %2385 = vmatprep.subr.mxu0 0.0
    %2386 = vmatpush1.msra.mxu0 0.0
    %2387 = vmatprep.subr.mxu0 0.0
    %2388 = vmatpush1.msra.mxu0 0.0
    %2389 = vmatprep.subr.mxu0 0.0
    %2390 = vmatpush1.msra.mxu0 0.0
    %2391 = vmatprep.subr.mxu0 0.0
    %2392 = vmatpush1.msra.mxu0 0.0
    %2393 = vmatprep.subr.mxu0 0.0
    %2394 = vmatpush1.msra.mxu0 0.0
    %2395 = vmatprep.subr.mxu0 0.0
    %2396 = vmatpush1.msra.mxu0 0.0
    %2397 = vmatprep.subr.mxu0 0.0
    %2398 = vmatpush1.msra.mxu0 0.0
    %2399 = vmatprep.subr.mxu0 0.0
    %2400 = vmatpush1.msra.mxu0 0.0
    %2401 = vmatprep.subr.mxu0 0.0
    %2402 = vmatpush1.msra.mxu0 0.0
    %2403 = vmatprep.subr.mxu0 0.0
    %2404 = vmatpush1.msra.mxu0 0.0
    %2405 = vmatprep.subr.mxu0 0.0
    %2406 = vmatpush1.msra.mxu0 0.0
    %2407 = vmatprep.subr.mxu0 0.0
    %2408 = vmatpush1.msra.mxu0 0.0
    %2409 = vmatprep.subr.mxu0 0.0
    %2410 = vmatpush1.msra.mxu0 0.0
    %2411 = vmatprep.subr.mxu0 0.0
    %2412 = vmatpush1.msra.mxu0 0.0
    %2413 = vmatprep.subr.mxu0 0.0
    %2414 = vmatpush1.msra.mxu0 0.0
    %2415 = vmatprep.subr.mxu0 0.0
    %2416 = vmatpush1.msra.mxu0 0.0
    %2417 = vmatprep.subr.mxu0 0.0
    %2418 = vmatpush1.msra.mxu0 0.0
    %2419 = vmatprep.subr.mxu0 0.0
    %2420 = vmatpush1.msra.mxu0 0.0
    %2421 = vmatprep.subr.mxu0 0.0
    %2422 = vmatpush1.msra.mxu0 0.0
    %2423 = vmatprep.subr.mxu0 0.0
    %2424 = vmatpush1.msra.mxu0 0.0
    %2425 = vmatprep.subr.mxu0 0.0
    %2426 = vmatpush1.msra.mxu0 0.0
    %2427 = vmatprep.subr.mxu0 0.0
    %2428 = vmatpush1.msra.mxu0 0.0
    %2429 = vmatprep.subr.mxu0 0.0
    %2430 = vmatpush1.msra.mxu0 0.0
    %2431 = vmatprep.subr.mxu0 0.0
    %2432 = vmatpush1.msra.mxu0 0.0
    %2433 = vmatprep.subr.mxu0 0.0
    %2434 = vmatpush1.msra.mxu0 0.0
    %2435 = vmatprep.subr.mxu0 0.0
    %2436 = vmatpush1.msra.mxu0 0.0
    %2437 = vmatprep.subr.mxu0 0.0
    %2438 = vmatpush1.msra.mxu0 0.0
    %2439 = vmatprep.subr.mxu0 0.0
    %2440 = vmatpush1.msra.mxu0 0.0
    %2441 = vmatprep.mubr.f32.mxu0 0.0
    %2442 = vmatmul.mubr.f32.gmra.mrb[0].mxu0 %v2375
    %v2443 = vpop.f32.mrb[0].mxu0
    %v2444 = vadd.f32 %v2298, %v2443
    %v2445 = vpop.f32.mrb[0].mxu0
    %2446 = vdwg.mxu0
    %2448 = vrot.lane.b32.xlu0 %v2369, 96
    %v2449 = vpop.permute.xlu0 %2448
    %v2451 = vmul.f32 %v2369, %v2449
    %2453 = vrot.lane.b32.xlu0 %v2444, 96
    %v2454 = vpop.permute.xlu0 %2453
    %v2456 = vmul.f32 %v2369, %v2454
    %v2457 = vmul.f32 %v2444, %v2449
    %v2458 = vmul.f32 %v2444, %v2454
    %2460 = vrot.lane.b32.xlu0 %v2456, 32
    %v2461 = vpop.permute.xlu0 %2460
    %2464 = vrot.lane.b32.xlu0 %v2457, 64
    %v2465 = vpop.permute.xlu0 %2464
    %2468 = vrot.lane.b32.xlu0 %v2458, 96
    %v2469 = vpop.permute.xlu0 %2468
    %v2471 = vsel %vm669, %v2451, %v2461
    %v2472 = vsel %vm778, %v2471, %v2465
    %vm2473 = vcmask 785408
    %v2474 = vsel %vm2473, %v2472, %v2469
    %v2475 = vld [vmem:[%s21] sm:$0xff]
    %v2476 = vld [vmem:[%s21 + $0x8] sm:$0xff]
    %v2477 = vld [vmem:[%s21 + $0x10] sm:$0xff]
    %v2478 = vld [vmem:[%s21 + $0x18] sm:$0xff]
    %v2479 = vld [vmem:[%s21 + $0x20] sm:$0xff]
    %v2480 = vld [vmem:[%s21 + $0x28] sm:$0xff]
    %v2481 = vld [vmem:[%s21 + $0x30] sm:$0xff]
    %v2482 = vld [vmem:[%s21 + $0x38] sm:$0xff]
    %v2483 = vld [vmem:[%s21 + $0x40] sm:$0xff]
    %v2484 = vld [vmem:[%s21 + $0x48] sm:$0xff]
    %v2485 = vld [vmem:[%s21 + $0x50] sm:$0xff]
    %v2486 = vld [vmem:[%s21 + $0x58] sm:$0xff]
    %v2487 = vld [vmem:[%s21 + $0x60] sm:$0xff]
    %v2488 = vld [vmem:[%s21 + $0x68] sm:$0xff]
    %v2489 = vld [vmem:[%s21 + $0x70] sm:$0xff]
    %v2490 = vld [vmem:[%s21 + $0x78] sm:$0xff]
    %2491 = vmatprep.subr.mxu0 0.0
    %2492 = vmatpush1.msra.mxu0 %v2475
    %2493 = vmatprep.subr.mxu0 0.0
    %2494 = vmatpush1.msra.mxu0 %v2476
    %2495 = vmatprep.subr.mxu0 0.0
    %2496 = vmatpush1.msra.mxu0 %v2477
    %2497 = vmatprep.subr.mxu0 0.0
    %2498 = vmatpush1.msra.mxu0 %v2478
    %2499 = vmatprep.subr.mxu0 0.0
    %2500 = vmatpush1.msra.mxu0 %v2479
    %2501 = vmatprep.subr.mxu0 0.0
    %2502 = vmatpush1.msra.mxu0 %v2480
    %2503 = vmatprep.subr.mxu0 0.0
    %2504 = vmatpush1.msra.mxu0 %v2481
    %2505 = vmatprep.subr.mxu0 0.0
    %2506 = vmatpush1.msra.mxu0 %v2482
    %2507 = vmatprep.subr.mxu0 0.0
    %2508 = vmatpush1.msra.mxu0 %v2483
    %2509 = vmatprep.subr.mxu0 0.0
    %2510 = vmatpush1.msra.mxu0 %v2484
    %2511 = vmatprep.subr.mxu0 0.0
    %2512 = vmatpush1.msra.mxu0 %v2485
    %2513 = vmatprep.subr.mxu0 0.0
    %2514 = vmatpush1.msra.mxu0 %v2486
    %2515 = vmatprep.subr.mxu0 0.0
    %2516 = vmatpush1.msra.mxu0 %v2487
    %2517 = vmatprep.subr.mxu0 0.0
    %2518 = vmatpush1.msra.mxu0 %v2488
    %2519 = vmatprep.subr.mxu0 0.0
    %2520 = vmatpush1.msra.mxu0 %v2489
    %2521 = vmatprep.subr.mxu0 0.0
    %2522 = vmatpush1.msra.mxu0 %v2490
    %2523 = vmatprep.subr.mxu0 0.0
    %2524 = vmatpush1.msra.mxu0 0.0
    %2525 = vmatprep.subr.mxu0 0.0
    %2526 = vmatpush1.msra.mxu0 0.0
    %2527 = vmatprep.subr.mxu0 0.0
    %2528 = vmatpush1.msra.mxu0 0.0
    %2529 = vmatprep.subr.mxu0 0.0
    %2530 = vmatpush1.msra.mxu0 0.0
    %2531 = vmatprep.subr.mxu0 0.0
    %2532 = vmatpush1.msra.mxu0 0.0
    %2533 = vmatprep.subr.mxu0 0.0
    %2534 = vmatpush1.msra.mxu0 0.0
    %2535 = vmatprep.subr.mxu0 0.0
    %2536 = vmatpush1.msra.mxu0 0.0
    %2537 = vmatprep.subr.mxu0 0.0
    %2538 = vmatpush1.msra.mxu0 0.0
    %2539 = vmatprep.subr.mxu0 0.0
    %2540 = vmatpush1.msra.mxu0 0.0
    %2541 = vmatprep.subr.mxu0 0.0
    %2542 = vmatpush1.msra.mxu0 0.0
    %2543 = vmatprep.subr.mxu0 0.0
    %2544 = vmatpush1.msra.mxu0 0.0
    %2545 = vmatprep.subr.mxu0 0.0
    %2546 = vmatpush1.msra.mxu0 0.0
    %2547 = vmatprep.subr.mxu0 0.0
    %2548 = vmatpush1.msra.mxu0 0.0
    %2549 = vmatprep.subr.mxu0 0.0
    %2550 = vmatpush1.msra.mxu0 0.0
    %2551 = vmatprep.subr.mxu0 0.0
    %2552 = vmatpush1.msra.mxu0 0.0
    %2553 = vmatprep.subr.mxu0 0.0
    %2554 = vmatpush1.msra.mxu0 0.0
    %2555 = vmatprep.mubr.f32.mxu0 0.0
    %2556 = vmatmul.mubr.f32.gmra.mrb[0].mxu0 %v2474
    %v2557 = vpop.f32.mrb[0].mxu0
    %v2558 = vadd.f32 0.0, %v2557
    %v2559 = vpop.f32.mrb[0].mxu0
    %2560 = vdwg.mxu0
    %2562 = vrot.lane.b32.xlu0 %v2558, 120
    %v2563 = vpop.permute.xlu0 %2562
    %v2565 = vmax.f32 %v2558, %v2563
    %v2566 = vsub.f32 %v2558, %v2565
    %v2567 = vmul.f32 %v2566, 1.442695
    %v2568 = vpow.pop %v2567
    %2570 = vrot.lane.b32.xlu0 %v2565, 8
    %v2571 = vpop.permute.xlu0 %2570
    %v2573 = vsub.f32 %v2558, %v2571
    %v2574 = vmul.f32 %v2573, 1.442695
    %v2575 = vpow.pop %v2574
    %2577 = vrot.lane.b32.xlu0 %v2575, 120
    %v2578 = vpop.permute.xlu0 %2577
    %v2580 = vadd.f32 %v2568, %v2578
    %v2581 = vrcp.pop %v2580
    %v2582 = vmul.f32 1.0, %v2581
    %v2583 = vmul.f32 %v2568, %v2582
    %2585 = vrot.lane.b32.xlu0 %v2582, 8
    %v2586 = vpop.permute.xlu0 %2585
    %v2588 = vmul.f32 %v2575, %v2586
    %vm2589 = vcmask 64512
    %v2590 = vsel %vm2589, %v2583, %v2588
    %vm2591 = vcmask 130048
    %v2592 = vsel %vm2591, %v2590, %v2583
    %vm2593 = vcmask 195584
    %v2594 = vsel %vm2593, %v2592, %v2588
    %v2595 = vld [vmem:[%s23] sm:$0xff]
    %v2596 = vld [vmem:[%s23 + $0x8] sm:$0xff]
    %v2597 = vld [vmem:[%s23 + $0x10] sm:$0xff]
    %v2598 = vld [vmem:[%s23 + $0x18] sm:$0xff]
    %v2600 = vsel %vm669, %v2594, 0
    %2602 = vmatprep.subr.mxu0 0.0
    %2603 = vmatpush1.msra.mxu0 %v2595
    %2604 = vmatprep.subr.mxu0 0.0
    %2605 = vmatpush1.msra.mxu0 %v2596
    %2606 = vmatprep.subr.mxu0 0.0
    %2607 = vmatpush1.msra.mxu0 %v2597
    %2608 = vmatprep.subr.mxu0 0.0
    %2609 = vmatpush1.msra.mxu0 %v2598
    %2610 = vmatprep.subr.mxu0 0.0
    %2611 = vmatpush1.msra.mxu0 0.0
    %2612 = vmatprep.subr.mxu0 0.0
    %2613 = vmatpush1.msra.mxu0 0.0
    %2614 = vmatprep.subr.mxu0 0.0
    %2615 = vmatpush1.msra.mxu0 0.0
    %2616 = vmatprep.subr.mxu0 0.0
    %2617 = vmatpush1.msra.mxu0 0.0
    %2618 = vmatprep.subr.mxu0 0.0
    %2619 = vmatpush1.msra.mxu0 0.0
    %2620 = vmatprep.subr.mxu0 0.0
    %2621 = vmatpush1.msra.mxu0 0.0
    %2622 = vmatprep.subr.mxu0 0.0
    %2623 = vmatpush1.msra.mxu0 0.0
    %2624 = vmatprep.subr.mxu0 0.0
    %2625 = vmatpush1.msra.mxu0 0.0
    %2626 = vmatprep.subr.mxu0 0.0
    %2627 = vmatpush1.msra.mxu0 0.0
    %2628 = vmatprep.subr.mxu0 0.0
    %2629 = vmatpush1.msra.mxu0 0.0
    %2630 = vmatprep.subr.mxu0 0.0
    %2631 = vmatpush1.msra.mxu0 0.0
    %2632 = vmatprep.subr.mxu0 0.0
    %2633 = vmatpush1.msra.mxu0 0.0
    %2634 = vmatprep.subr.mxu0 0.0
    %2635 = vmatpush1.msra.mxu0 0.0
    %2636 = vmatprep.subr.mxu0 0.0
    %2637 = vmatpush1.msra.mxu0 0.0
    %2638 = vmatprep.subr.mxu0 0.0
    %2639 = vmatpush1.msra.mxu0 0.0
    %2640 = vmatprep.subr.mxu0 0.0
    %2641 = vmatpush1.msra.mxu0 0.0
    %2642 = vmatprep.subr.mxu0 0.0
    %2643 = vmatpush1.msra.mxu0 0.0
    %2644 = vmatprep.subr.mxu0 0.0
    %2645 = vmatpush1.msra.mxu0 0.0
    %2646 = vmatprep.subr.mxu0 0.0
    %2647 = vmatpush1.msra.mxu0 0.0
    %2648 = vmatprep.subr.mxu0 0.0
    %2649 = vmatpush1.msra.mxu0 0.0
    %2650 = vmatprep.subr.mxu0 0.0
    %2651 = vmatpush1.msra.mxu0 0.0
    %2652 = vmatprep.subr.mxu0 0.0
    %2653 = vmatpush1.msra.mxu0 0.0
    %2654 = vmatprep.subr.mxu0 0.0
    %2655 = vmatpush1.msra.mxu0 0.0
    %2656 = vmatprep.subr.mxu0 0.0
    %2657 = vmatpush1.msra.mxu0 0.0
    %2658 = vmatprep.subr.mxu0 0.0
    %2659 = vmatpush1.msra.mxu0 0.0
    %2660 = vmatprep.subr.mxu0 0.0
    %2661 = vmatpush1.msra.mxu0 0.0
    %2662 = vmatprep.subr.mxu0 0.0
    %2663 = vmatpush1.msra.mxu0 0.0
    %2664 = vmatprep.subr.mxu0 0.0
    %2665 = vmatpush1.msra.mxu0 0.0
    %2666 = vmatprep.mubr.f32.mxu0 0.0
    %2667 = vmatmul.mubr.f32.gmra.mrb[0].mxu0 %v2600
    %v2668 = vpop.f32.mrb[0].mxu0
    %v2669 = vadd.f32 0.0, %v2668
    %v2670 = vpop.f32.mrb[0].mxu0
    %2671 = vdwg.mxu0
    %2672 = vrot.lane.b32.xlu0 %v2369, 64
    %v2673 = vpop.permute.xlu0 %2672
    %v2675 = vmul.f32 %v2669, %v2673
    %v2676 = vmul.f32 %v2669, %v2454
    %2678 = vrot.lane.b32.xlu0 %v2676, 96
    %v2679 = vpop.permute.xlu0 %2678
    %v2681 = vadd.f32 %v2675, %v2679
    %v2682 = vmul.f32 %v2669, %v2369
    %2683 = vrot.lane.b32.xlu0 %v2444, 32
    %v2684 = vpop.permute.xlu0 %2683
    %v2686 = vmul.f32 %v2669, %v2684
    %2688 = vrot.lane.b32.xlu0 %v2686, 96
    %v2689 = vpop.permute.xlu0 %2688
    %v2691 = vadd.f32 %v2682, %v2689
    %v2692 = vld [vmem:[%s17] sm:$0xff]
    %v2693 = vld [vmem:[%s17 + $0x8] sm:$0xff]
    %v2694 = vld [vmem:[%s17 + $0x10] sm:$0xff]
    %v2695 = vld [vmem:[%s17 + $0x18] sm:$0xff]
    %v2696 = vld [vmem:[%s19] sm:$0x1]
    %v2698 = vlaneseq
    %v2699 = vshrl.u32 %v2698, 7
    %v2700 = vsub.s32 0, %v2699
    %v2701 = vrot.slane %v2696, %v2700
    %v2704 = vsel %vm669, %v2681, 0
    %2706 = vmatprep.subr.mxu0 0.0
    %2707 = vmatpush1.msra.mxu0 %v2692
    %2708 = vmatprep.subr.mxu0 0.0
    %2709 = vmatpush1.msra.mxu0 %v2693
    %2710 = vmatprep.subr.mxu0 0.0
    %2711 = vmatpush1.msra.mxu0 %v2694
    %2712 = vmatprep.subr.mxu0 0.0
    %2713 = vmatpush1.msra.mxu0 %v2695
    %2714 = vmatprep.subr.mxu0 0.0
    %2715 = vmatpush1.msra.mxu0 0.0
    %2716 = vmatprep.subr.mxu0 0.0
    %2717 = vmatpush1.msra.mxu0 0.0
    %2718 = vmatprep.subr.mxu0 0.0
    %2719 = vmatpush1.msra.mxu0 0.0
    %2720 = vmatprep.subr.mxu0 0.0
    %2721 = vmatpush1.msra.mxu0 0.0
    %2722 = vmatprep.subr.mxu0 0.0
    %2723 = vmatpush1.msra.mxu0 0.0
    %2724 = vmatprep.subr.mxu0 0.0
    %2725 = vmatpush1.msra.mxu0 0.0
    %2726 = vmatprep.subr.mxu0 0.0
    %2727 = vmatpush1.msra.mxu0 0.0
    %2728 = vmatprep.subr.mxu0 0.0
    %2729 = vmatpush1.msra.mxu0 0.0
    %2730 = vmatprep.subr.mxu0 0.0
    %2731 = vmatpush1.msra.mxu0 0.0
    %2732 = vmatprep.subr.mxu0 0.0
    %2733 = vmatpush1.msra.mxu0 0.0
    %2734 = vmatprep.subr.mxu0 0.0
    %2735 = vmatpush1.msra.mxu0 0.0
    %2736 = vmatprep.subr.mxu0 0.0
    %2737 = vmatpush1.msra.mxu0 0.0
    %2738 = vmatprep.subr.mxu0 0.0
    %2739 = vmatpush1.msra.mxu0 0.0
    %2740 = vmatprep.subr.mxu0 0.0
    %2741 = vmatpush1.msra.mxu0 0.0
    %2742 = vmatprep.subr.mxu0 0.0
    %2743 = vmatpush1.msra.mxu0 0.0
    %2744 = vmatprep.subr.mxu0 0.0
    %2745 = vmatpush1.msra.mxu0 0.0
    %2746 = vmatprep.subr.mxu0 0.0
    %2747 = vmatpush1.msra.mxu0 0.0
    %2748 = vmatprep.subr.mxu0 0.0
    %2749 = vmatpush1.msra.mxu0 0.0
    %2750 = vmatprep.subr.mxu0 0.0
    %2751 = vmatpush1.msra.mxu0 0.0
    %2752 = vmatprep.subr.mxu0 0.0
    %2753 = vmatpush1.msra.mxu0 0.0
    %2754 = vmatprep.subr.mxu0 0.0
    %2755 = vmatpush1.msra.mxu0 0.0
    %2756 = vmatprep.subr.mxu0 0.0
    %2757 = vmatpush1.msra.mxu0 0.0
    %2758 = vmatprep.subr.mxu0 0.0
    %2759 = vmatpush1.msra.mxu0 0.0
    %2760 = vmatprep.subr.mxu0 0.0
    %2761 = vmatpush1.msra.mxu0 0.0
    %2762 = vmatprep.subr.mxu0 0.0
    %2763 = vmatpush1.msra.mxu0 0.0
    %2764 = vmatprep.subr.mxu0 0.0
    %2765 = vmatpush1.msra.mxu0 0.0
    %2766 = vmatprep.subr.mxu0 0.0
    %2767 = vmatpush1.msra.mxu0 0.0
    %2768 = vmatprep.subr.mxu0 0.0
    %2769 = vmatpush1.msra.mxu0 0.0
    %2770 = vmatprep.mubr.f32.mxu0 0.0
    %2771 = vmatmul.mubr.f32.gmra.mrb[0].mxu0 %v2704
    %v2772 = vpop.f32.mrb[0].mxu0
    %v2773 = vadd.f32 %v2701, %v2772
    %v2774 = vpop.f32.mrb[0].mxu0
    %2775 = vdwg.mxu0
    %2777 = vrot.lane.b32.xlu0 %v2691, 64
    %v2778 = vpop.permute.xlu0 %2777
    %v2779 = vsel %vm669, %v2778, 0
    %2781 = vmatprep.subr.mxu0 0.0
    %2782 = vmatpush1.msra.mxu0 %v2692
    %2783 = vmatprep.subr.mxu0 0.0
    %2784 = vmatpush1.msra.mxu0 %v2693
    %2785 = vmatprep.subr.mxu0 0.0
    %2786 = vmatpush1.msra.mxu0 %v2694
    %2787 = vmatprep.subr.mxu0 0.0
    %2788 = vmatpush1.msra.mxu0 %v2695
    %2789 = vmatprep.subr.mxu0 0.0
    %2790 = vmatpush1.msra.mxu0 0.0
    %2791 = vmatprep.subr.mxu0 0.0
    %2792 = vmatpush1.msra.mxu0 0.0
    %2793 = vmatprep.subr.mxu0 0.0
    %2794 = vmatpush1.msra.mxu0 0.0
    %2795 = vmatprep.subr.mxu0 0.0
    %2796 = vmatpush1.msra.mxu0 0.0
    %2797 = vmatprep.subr.mxu0 0.0
    %2798 = vmatpush1.msra.mxu0 0.0
    %2799 = vmatprep.subr.mxu0 0.0
    %2800 = vmatpush1.msra.mxu0 0.0
    %2801 = vmatprep.subr.mxu0 0.0
    %2802 = vmatpush1.msra.mxu0 0.0
    %2803 = vmatprep.subr.mxu0 0.0
    %2804 = vmatpush1.msra.mxu0 0.0
    %2805 = vmatprep.subr.mxu0 0.0
    %2806 = vmatpush1.msra.mxu0 0.0
    %2807 = vmatprep.subr.mxu0 0.0
    %2808 = vmatpush1.msra.mxu0 0.0
    %2809 = vmatprep.subr.mxu0 0.0
    %2810 = vmatpush1.msra.mxu0 0.0
    %2811 = vmatprep.subr.mxu0 0.0
    %2812 = vmatpush1.msra.mxu0 0.0
    %2813 = vmatprep.subr.mxu0 0.0
    %2814 = vmatpush1.msra.mxu0 0.0
    %2815 = vmatprep.subr.mxu0 0.0
    %2816 = vmatpush1.msra.mxu0 0.0
    %2817 = vmatprep.subr.mxu0 0.0
    %2818 = vmatpush1.msra.mxu0 0.0
    %2819 = vmatprep.subr.mxu0 0.0
    %2820 = vmatpush1.msra.mxu0 0.0
    %2821 = vmatprep.subr.mxu0 0.0
    %2822 = vmatpush1.msra.mxu0 0.0
    %2823 = vmatprep.subr.mxu0 0.0
    %2824 = vmatpush1.msra.mxu0 0.0
    %2825 = vmatprep.subr.mxu0 0.0
    %2826 = vmatpush1.msra.mxu0 0.0
    %2827 = vmatprep.subr.mxu0 0.0
    %2828 = vmatpush1.msra.mxu0 0.0
    %2829 = vmatprep.subr.mxu0 0.0
    %2830 = vmatpush1.msra.mxu0 0.0
    %2831 = vmatprep.subr.mxu0 0.0
    %2832 = vmatpush1.msra.mxu0 0.0
    %2833 = vmatprep.subr.mxu0 0.0
    %2834 = vmatpush1.msra.mxu0 0.0
    %2835 = vmatprep.subr.mxu0 0.0
    %2836 = vmatpush1.msra.mxu0 0.0
    %2837 = vmatprep.subr.mxu0 0.0
    %2838 = vmatpush1.msra.mxu0 0.0
    %2839 = vmatprep.subr.mxu0 0.0
    %2840 = vmatpush1.msra.mxu0 0.0
    %2841 = vmatprep.subr.mxu0 0.0
    %2842 = vmatpush1.msra.mxu0 0.0
    %2843 = vmatprep.subr.mxu0 0.0
    %2844 = vmatpush1.msra.mxu0 0.0
    %2845 = vmatprep.mubr.f32.mxu0 0.0
    %2846 = vmatmul.mubr.f32.gmra.mrb[0].mxu0 %v2779
    %v2847 = vpop.f32.mrb[0].mxu0
    %v2848 = vadd.f32 %v2701, %v2847
    %v2849 = vpop.f32.mrb[0].mxu0
    %2850 = vdwg.mxu0
    %2852 = vrot.lane.b32.xlu0 %v2848, 32
    %v2853 = vpop.permute.xlu0 %2852
    %v2855 = vsel %vm669, %v2773, %v2853
    %v2856 = vld [vmem:[%s25] sm:$0xff]
    %v2857 = vld [vmem:[%s25 + $0x8] sm:$0xff]
    %v2858 = vld [vmem:[%s25 + $0x10] sm:$0xff]
    %v2859 = vld [vmem:[%s25 + $0x18] sm:$0xff]
    %v2860 = vld [vmem:[%s25 + $0x20] sm:$0xff]
    %v2861 = vld [vmem:[%s25 + $0x28] sm:$0xff]
    %v2862 = vld [vmem:[%s25 + $0x30] sm:$0xff]
    %v2863 = vld [vmem:[%s25 + $0x38] sm:$0xff]
    %v2864 = vld [vmem:[%s27] sm:$0x1]
    %v2866 = vlaneseq
    %v2867 = vshrl.u32 %v2866, 7
    %v2868 = vsub.s32 0, %v2867
    %v2869 = vrot.slane %v2864, %v2868
    %v2872 = vsel %vm778, %v2855, 0
    %2874 = vmatprep.subr.mxu0 0.0
    %2875 = vmatpush1.msra.mxu0 %v2856
    %2876 = vmatprep.subr.mxu0 0.0
    %2877 = vmatpush1.msra.mxu0 %v2857
    %2878 = vmatprep.subr.mxu0 0.0
    %2879 = vmatpush1.msra.mxu0 %v2858
    %2880 = vmatprep.subr.mxu0 0.0
    %2881 = vmatpush1.msra.mxu0 %v2859
    %2882 = vmatprep.subr.mxu0 0.0
    %2883 = vmatpush1.msra.mxu0 %v2860
    %2884 = vmatprep.subr.mxu0 0.0
    %2885 = vmatpush1.msra.mxu0 %v2861
    %2886 = vmatprep.subr.mxu0 0.0
    %2887 = vmatpush1.msra.mxu0 %v2862
    %2888 = vmatprep.subr.mxu0 0.0
    %2889 = vmatpush1.msra.mxu0 %v2863
    %2890 = vmatprep.subr.mxu0 0.0
    %2891 = vmatpush1.msra.mxu0 0.0
    %2892 = vmatprep.subr.mxu0 0.0
    %2893 = vmatpush1.msra.mxu0 0.0
    %2894 = vmatprep.subr.mxu0 0.0
    %2895 = vmatpush1.msra.mxu0 0.0
    %2896 = vmatprep.subr.mxu0 0.0
    %2897 = vmatpush1.msra.mxu0 0.0
    %2898 = vmatprep.subr.mxu0 0.0
    %2899 = vmatpush1.msra.mxu0 0.0
    %2900 = vmatprep.subr.mxu0 0.0
    %2901 = vmatpush1.msra.mxu0 0.0
    %2902 = vmatprep.subr.mxu0 0.0
    %2903 = vmatpush1.msra.mxu0 0.0
    %2904 = vmatprep.subr.mxu0 0.0
    %2905 = vmatpush1.msra.mxu0 0.0
    %2906 = vmatprep.subr.mxu0 0.0
    %2907 = vmatpush1.msra.mxu0 0.0
    %2908 = vmatprep.subr.mxu0 0.0
    %2909 = vmatpush1.msra.mxu0 0.0
    %2910 = vmatprep.subr.mxu0 0.0
    %2911 = vmatpush1.msra.mxu0 0.0
    %2912 = vmatprep.subr.mxu0 0.0
    %2913 = vmatpush1.msra.mxu0 0.0
    %2914 = vmatprep.subr.mxu0 0.0
    %2915 = vmatpush1.msra.mxu0 0.0
    %2916 = vmatprep.subr.mxu0 0.0
    %2917 = vmatpush1.msra.mxu0 0.0
    %2918 = vmatprep.subr.mxu0 0.0
    %2919 = vmatpush1.msra.mxu0 0.0
    %2920 = vmatprep.subr.mxu0 0.0
    %2921 = vmatpush1.msra.mxu0 0.0
    %2922 = vmatprep.subr.mxu0 0.0
    %2923 = vmatpush1.msra.mxu0 0.0
    %2924 = vmatprep.subr.mxu0 0.0
    %2925 = vmatpush1.msra.mxu0 0.0
    %2926 = vmatprep.subr.mxu0 0.0
    %2927 = vmatpush1.msra.mxu0 0.0
    %2928 = vmatprep.subr.mxu0 0.0
    %2929 = vmatpush1.msra.mxu0 0.0
    %2930 = vmatprep.subr.mxu0 0.0
    %2931 = vmatpush1.msra.mxu0 0.0
    %2932 = vmatprep.subr.mxu0 0.0
    %2933 = vmatpush1.msra.mxu0 0.0
    %2934 = vmatprep.subr.mxu0 0.0
    %2935 = vmatpush1.msra.mxu0 0.0
    %2936 = vmatprep.subr.mxu0 0.0
    %2937 = vmatpush1.msra.mxu0 0.0
    %2938 = vmatprep.mubr.f32.mxu0 0.0
    %2939 = vmatmul.mubr.f32.gmra.mrb[0].mxu0 %v2872
    %v2940 = vpop.f32.mrb[0].mxu0
    %v2941 = vadd.f32 %v2869, %v2940
    %v2942 = vpop.f32.mrb[0].mxu0
    %2943 = vdwg.mxu0
    %v2944 = vld [vmem:[%s29] sm:$0x3]
    %v2945 = vmul.f32 %v2941, 0.5
    %v2946 = vmul.f32 %v2945, 1.442695
    %v2947 = vpow.pop %v2946
    %2949 = vrot.lane.b32.xlu0 %v2947, 112
    %v2950 = vpop.permute.xlu0 %2949
    %v2952 = vmul.f32 %v2944, %v2950
    %v2953 = vadd.f32 %v2941, %v2952
    %vm2954 = vcmask 123904
    %2955 = vst.msk [vmem:[#allocation16] sm:$0x3] %vm2954, %v2941
    %2957 = vrot.lane.b32.xlu0 %v2941, 112
    %v2958 = vpop.permute.xlu0 %2957
    %2960 = vst.msk [vmem:[#allocation18] sm:$0x3] %vm2954, %v2958
    %s2961 = smul.u32 4, 2
    %s2962 = smul.u32 %s2961, 4
    %s2963 = sshll.u32 %s2962, 4
    %2964 = dma.done [#allocation11], %s2963
    %v2965 = vpack.c.bf16 %v2953, %v2953
    %v2966 = vld [vmem:[#allocation3] sm:$0xff]
    %v2967 = vld [vmem:[#allocation3 + $0x8] sm:$0xff]
    %v2968 = vld [vmem:[#allocation3 + $0x10] sm:$0xff]
    %v2969 = vld [vmem:[#allocation3 + $0x18] sm:$0xff]
    %v2970 = vld [vmem:[#allocation12] sm:$0xf]
    %v2972 = vlaneseq
    %v2973 = vshrl.u32 %v2972, 7
    %v2974 = vsub.s32 0, %v2973
    %v2975 = vrot.slane %v2970, %v2974
    %v2976 = vlaneseq
    %v2977 = vshrl.u32 %v2976, 7
    %v2978 = vsub.s32 1, %v2977
    %v2979 = vrot.slane %v2970, %v2978
    %v2980 = vlaneseq
    %v2981 = vshrl.u32 %v2980, 7
    %v2982 = vsub.s32 2, %v2981
    %v2983 = vrot.slane %v2970, %v2982
    %v2984 = vlaneseq
    %v2985 = vshrl.u32 %v2984, 7
    %v2986 = vsub.s32 3, %v2985
    %v2987 = vrot.slane %v2970, %v2986
    %v2993 = vsel %vm2591, %v2965, 0
    %2995 = vmatprep.subr.bf16.mxu0 %v2967
    %2996 = vmatpush1.bf16.msra.mxu0 %v2966
    %2997 = vmatprep.subr.bf16.mxu0 0
    %2998 = vmatpush1.bf16.msra.mxu0 0
    %2999 = vmatprep.subr.bf16.mxu0 0
    %3000 = vmatpush1.bf16.msra.mxu0 0
    %3001 = vmatprep.subr.bf16.mxu0 0
    %3002 = vmatpush1.bf16.msra.mxu0 0
    %3003 = vmatprep.subr.bf16.mxu0 0
    %3004 = vmatpush1.bf16.msra.mxu0 0
    %3005 = vmatprep.subr.bf16.mxu0 0
    %3006 = vmatpush1.bf16.msra.mxu0 0
    %3007 = vmatprep.subr.bf16.mxu0 0
    %3008 = vmatpush1.bf16.msra.mxu0 0
    %3009 = vmatprep.subr.bf16.mxu0 0
    %3010 = vmatpush1.bf16.msra.mxu0 0
    %3011 = vmatprep.subr.bf16.mxu0 0
    %3012 = vmatpush1.bf16.msra.mxu0 0
    %3013 = vmatprep.subr.bf16.mxu0 0
    %3014 = vmatpush1.bf16.msra.mxu0 0
    %3015 = vmatprep.subr.bf16.mxu0 0
    %3016 = vmatpush1.bf16.msra.mxu0 0
    %3017 = vmatprep.subr.bf16.mxu0 0
    %3018 = vmatpush1.bf16.msra.mxu0 0
    %3019 = vmatprep.subr.bf16.mxu0 0
    %3020 = vmatpush1.bf16.msra.mxu0 0
    %3021 = vmatprep.subr.bf16.mxu0 0
    %3022 = vmatpush1.bf16.msra.mxu0 0
    %3023 = vmatprep.subr.bf16.mxu0 0
    %3024 = vmatpush1.bf16.msra.mxu0 0
    %3025 = vmatprep.subr.bf16.mxu0 0
    %3026 = vmatpush1.bf16.msra.mxu0 0
    %3027 = vmatprep.mubr.bf16.mxu0 0
    %3028 = vmatmul.mubr.bf16.gmra.mrb[0].mxu0 %v2993
    %v3029 = vpop.f32.mrb[0].mxu0
    %v3030 = vadd.f32 %v2975, %v3029
    %v3031 = vpop.f32.mrb[0].mxu0
    %v3032 = vadd.f32 %v2979, %v3031
    %v3033 = vpop.f32.mrb[0].mxu0
    %v3034 = vpop.f32.mrb[0].mxu0
    %3035 = vdwg.mxu0
    %3036 = vmatprep.subr.bf16.mxu0 %v2969
    %3037 = vmatpush1.bf16.msra.mxu0 %v2968
    %3038 = vmatprep.subr.bf16.mxu0 0
    %3039 = vmatpush1.bf16.msra.mxu0 0
    %3040 = vmatprep.subr.bf16.mxu0 0
    %3041 = vmatpush1.bf16.msra.mxu0 0
    %3042 = vmatprep.subr.bf16.mxu0 0
    %3043 = vmatpush1.bf16.msra.mxu0 0
    %3044 = vmatprep.subr.bf16.mxu0 0
    %3045 = vmatpush1.bf16.msra.mxu0 0
    %3046 = vmatprep.subr.bf16.mxu0 0
    %3047 = vmatpush1.bf16.msra.mxu0 0
    %3048 = vmatprep.subr.bf16.mxu0 0
    %3049 = vmatpush1.bf16.msra.mxu0 0
    %3050 = vmatprep.subr.bf16.mxu0 0
    %3051 = vmatpush1.bf16.msra.mxu0 0
    %3052 = vmatprep.subr.bf16.mxu0 0
    %3053 = vmatpush1.bf16.msra.mxu0 0
    %3054 = vmatprep.subr.bf16.mxu0 0
    %3055 = vmatpush1.bf16.msra.mxu0 0
    %3056 = vmatprep.subr.bf16.mxu0 0
    %3057 = vmatpush1.bf16.msra.mxu0 0
    %3058 = vmatprep.subr.bf16.mxu0 0
    %3059 = vmatpush1.bf16.msra.mxu0 0
    %3060 = vmatprep.subr.bf16.mxu0 0
    %3061 = vmatpush1.bf16.msra.mxu0 0
    %3062 = vmatprep.subr.bf16.mxu0 0
    %3063 = vmatpush1.bf16.msra.mxu0 0
    %3064 = vmatprep.subr.bf16.mxu0 0
    %3065 = vmatpush1.bf16.msra.mxu0 0
    %3066 = vmatprep.subr.bf16.mxu0 0
    %3067 = vmatpush1.bf16.msra.mxu0 0
    %3068 = vmatprep.mubr.bf16.mxu0 0
    %3069 = vmatmul.mubr.bf16.gmra.mrb[0].mxu0 %v2993
    %v3070 = vpop.f32.mrb[0].mxu0
    %v3071 = vadd.f32 %v2983, %v3070
    %v3072 = vpop.f32.mrb[0].mxu0
    %v3073 = vadd.f32 %v2987, %v3072
    %v3074 = vpop.f32.mrb[0].mxu0
    %v3075 = vpop.f32.mrb[0].mxu0
    %3076 = vdwg.mxu0
    %v3077 = vmax.f32 %v3030, 0.0
    %v3078 = vmax.f32 %v3032, 0.0
    %v3079 = vmax.f32 %v3071, 0.0
    %v3080 = vmax.f32 %v3073, 0.0
    %s3081 = smul.u32 4, 64
    %s3082 = smul.u32 %s3081, 4
    %s3083 = sshll.u32 %s3082, 4
    %3084 = dma.done %s214, %s3083
    %v3085 = vpack.c.bf16 %v3077, %v3077
    %v3086 = vpack.c.bf16 %v3078, %v3078
    %v3087 = vpack.c.bf16 %v3079, %v3079
    %v3088 = vpack.c.bf16 %v3080, %v3080
    %v3089 = vld [vmem:[#allocation4] sm:$0xff]
    %v3090 = vld [vmem:[#allocation4 + $0x8] sm:$0xff]
    %v3091 = vld [vmem:[#allocation4 + $0x10] sm:$0xff]
    %v3092 = vld [vmem:[#allocation4 + $0x18] sm:$0xff]
    %v3093 = vld [vmem:[#allocation4 + $0x20] sm:$0xff]
    %v3094 = vld [vmem:[#allocation4 + $0x28] sm:$0xff]
    %v3095 = vld [vmem:[#allocation4 + $0x30] sm:$0xff]
    %v3096 = vld [vmem:[#allocation4 + $0x38] sm:$0xff]
    %v3097 = vld [vmem:[#allocation4 + $0x40] sm:$0xff]
    %v3098 = vld [vmem:[#allocation4 + $0x48] sm:$0xff]
    %v3099 = vld [vmem:[#allocation4 + $0x50] sm:$0xff]
    %v3100 = vld [vmem:[#allocation4 + $0x58] sm:$0xff]
    %v3101 = vld [vmem:[#allocation4 + $0x60] sm:$0xff]
    %v3102 = vld [vmem:[#allocation4 + $0x68] sm:$0xff]
    %v3103 = vld [vmem:[#allocation4 + $0x70] sm:$0xff]
    %v3104 = vld [vmem:[#allocation4 + $0x78] sm:$0xff]
    %v3105 = vld [vmem:[#allocation4 + $0x80] sm:$0xff]
    %v3106 = vld [vmem:[#allocation4 + $0x88] sm:$0xff]
    %v3107 = vld [vmem:[#allocation4 + $0x90] sm:$0xff]
    %v3108 = vld [vmem:[#allocation4 + $0x98] sm:$0xff]
    %v3109 = vld [vmem:[#allocation4 + $0xa0] sm:$0xff]
    %v3110 = vld [vmem:[#allocation4 + $0xa8] sm:$0xff]
    %v3111 = vld [vmem:[#allocation4 + $0xb0] sm:$0xff]
    %v3112 = vld [vmem:[#allocation4 + $0xb8] sm:$0xff]
    %v3113 = vld [vmem:[#allocation4 + $0xc0] sm:$0xff]
    %v3114 = vld [vmem:[#allocation4 + $0xc8] sm:$0xff]
    %v3115 = vld [vmem:[#allocation4 + $0xd0] sm:$0xff]
    %v3116 = vld [vmem:[#allocation4 + $0xd8] sm:$0xff]
    %v3117 = vld [vmem:[#allocation4 + $0xe0] sm:$0xff]
    %v3118 = vld [vmem:[#allocation4 + $0xe8] sm:$0xff]
    %v3119 = vld [vmem:[#allocation4 + $0xf0] sm:$0xff]
    %v3120 = vld [vmem:[#allocation4 + $0xf8] sm:$0xff]
    %v3121 = vld [vmem:[#allocation4 + $0x100] sm:$0xff]
    %v3122 = vld [vmem:[#allocation4 + $0x108] sm:$0xff]
    %v3123 = vld [vmem:[#allocation4 + $0x110] sm:$0xff]
    %v3124 = vld [vmem:[#allocation4 + $0x118] sm:$0xff]
    %v3125 = vld [vmem:[#allocation4 + $0x120] sm:$0xff]
    %v3126 = vld [vmem:[#allocation4 + $0x128] sm:$0xff]
    %v3127 = vld [vmem:[#allocation4 + $0x130] sm:$0xff]
    %v3128 = vld [vmem:[#allocation4 + $0x138] sm:$0xff]
    %v3129 = vld [vmem:[#allocation4 + $0x140] sm:$0xff]
    %v3130 = vld [vmem:[#allocation4 + $0x148] sm:$0xff]
    %v3131 = vld [vmem:[#allocation4 + $0x150] sm:$0xff]
    %v3132 = vld [vmem:[#allocation4 + $0x158] sm:$0xff]
    %v3133 = vld [vmem:[#allocation4 + $0x160] sm:$0xff]
    %v3134 = vld [vmem:[#allocation4 + $0x168] sm:$0xff]
    %v3135 = vld [vmem:[#allocation4 + $0x170] sm:$0xff]
    %v3136 = vld [vmem:[#allocation4 + $0x178] sm:$0xff]
    %v3137 = vld [vmem:[#allocation4 + $0x180] sm:$0xff]
    %v3138 = vld [vmem:[#allocation4 + $0x188] sm:$0xff]
    %v3139 = vld [vmem:[#allocation4 + $0x190] sm:$0xff]
    %v3140 = vld [vmem:[#allocation4 + $0x198] sm:$0xff]
    %v3141 = vld [vmem:[#allocation4 + $0x1a0] sm:$0xff]
    %v3142 = vld [vmem:[#allocation4 + $0x1a8] sm:$0xff]
    %v3143 = vld [vmem:[#allocation4 + $0x1b0] sm:$0xff]
    %v3144 = vld [vmem:[#allocation4 + $0x1b8] sm:$0xff]
    %v3145 = vld [vmem:[#allocation4 + $0x1c0] sm:$0xff]
    %v3146 = vld [vmem:[#allocation4 + $0x1c8] sm:$0xff]
    %v3147 = vld [vmem:[#allocation4 + $0x1d0] sm:$0xff]
    %v3148 = vld [vmem:[#allocation4 + $0x1d8] sm:$0xff]
    %v3149 = vld [vmem:[#allocation4 + $0x1e0] sm:$0xff]
    %v3150 = vld [vmem:[#allocation4 + $0x1e8] sm:$0xff]
    %v3151 = vld [vmem:[#allocation4 + $0x1f0] sm:$0xff]
    %v3152 = vld [vmem:[#allocation4 + $0x1f8] sm:$0xff]
    %v3153 = vld [vmem:[#allocation4 + $0x200] sm:$0xff]
    %v3154 = vld [vmem:[#allocation4 + $0x208] sm:$0xff]
    %v3155 = vld [vmem:[#allocation4 + $0x210] sm:$0xff]
    %v3156 = vld [vmem:[#allocation4 + $0x218] sm:$0xff]
    %v3157 = vld [vmem:[#allocation4 + $0x220] sm:$0xff]
    %v3158 = vld [vmem:[#allocation4 + $0x228] sm:$0xff]
    %v3159 = vld [vmem:[#allocation4 + $0x230] sm:$0xff]
    %v3160 = vld [vmem:[#allocation4 + $0x238] sm:$0xff]
    %v3161 = vld [vmem:[#allocation4 + $0x240] sm:$0xff]
    %v3162 = vld [vmem:[#allocation4 + $0x248] sm:$0xff]
    %v3163 = vld [vmem:[#allocation4 + $0x250] sm:$0xff]
    %v3164 = vld [vmem:[#allocation4 + $0x258] sm:$0xff]
    %v3165 = vld [vmem:[#allocation4 + $0x260] sm:$0xff]
    %v3166 = vld [vmem:[#allocation4 + $0x268] sm:$0xff]
    %v3167 = vld [vmem:[#allocation4 + $0x270] sm:$0xff]
    %v3168 = vld [vmem:[#allocation4 + $0x278] sm:$0xff]
    %v3169 = vld [vmem:[#allocation4 + $0x280] sm:$0xff]
    %v3170 = vld [vmem:[#allocation4 + $0x288] sm:$0xff]
    %v3171 = vld [vmem:[#allocation4 + $0x290] sm:$0xff]
    %v3172 = vld [vmem:[#allocation4 + $0x298] sm:$0xff]
    %v3173 = vld [vmem:[#allocation4 + $0x2a0] sm:$0xff]
    %v3174 = vld [vmem:[#allocation4 + $0x2a8] sm:$0xff]
    %v3175 = vld [vmem:[#allocation4 + $0x2b0] sm:$0xff]
    %v3176 = vld [vmem:[#allocation4 + $0x2b8] sm:$0xff]
    %v3177 = vld [vmem:[#allocation4 + $0x2c0] sm:$0xff]
    %v3178 = vld [vmem:[#allocation4 + $0x2c8] sm:$0xff]
    %v3179 = vld [vmem:[#allocation4 + $0x2d0] sm:$0xff]
    %v3180 = vld [vmem:[#allocation4 + $0x2d8] sm:$0xff]
    %v3181 = vld [vmem:[#allocation4 + $0x2e0] sm:$0xff]
    %v3182 = vld [vmem:[#allocation4 + $0x2e8] sm:$0xff]
    %v3183 = vld [vmem:[#allocation4 + $0x2f0] sm:$0xff]
    %v3184 = vld [vmem:[#allocation4 + $0x2f8] sm:$0xff]
    %v3185 = vld [vmem:[#allocation4 + $0x300] sm:$0xff]
    %v3186 = vld [vmem:[#allocation4 + $0x308] sm:$0xff]
    %v3187 = vld [vmem:[#allocation4 + $0x310] sm:$0xff]
    %v3188 = vld [vmem:[#allocation4 + $0x318] sm:$0xff]
    %v3189 = vld [vmem:[#allocation4 + $0x320] sm:$0xff]
    %v3190 = vld [vmem:[#allocation4 + $0x328] sm:$0xff]
    %v3191 = vld [vmem:[#allocation4 + $0x330] sm:$0xff]
    %v3192 = vld [vmem:[#allocation4 + $0x338] sm:$0xff]
    %v3193 = vld [vmem:[#allocation4 + $0x340] sm:$0xff]
    %v3194 = vld [vmem:[#allocation4 + $0x348] sm:$0xff]
    %v3195 = vld [vmem:[#allocation4 + $0x350] sm:$0xff]
    %v3196 = vld [vmem:[#allocation4 + $0x358] sm:$0xff]
    %v3197 = vld [vmem:[#allocation4 + $0x360] sm:$0xff]
    %v3198 = vld [vmem:[#allocation4 + $0x368] sm:$0xff]
    %v3199 = vld [vmem:[#allocation4 + $0x370] sm:$0xff]
    %v3200 = vld [vmem:[#allocation4 + $0x378] sm:$0xff]
    %v3201 = vld [vmem:[#allocation4 + $0x380] sm:$0xff]
    %v3202 = vld [vmem:[#allocation4 + $0x388] sm:$0xff]
    %v3203 = vld [vmem:[#allocation4 + $0x390] sm:$0xff]
    %v3204 = vld [vmem:[#allocation4 + $0x398] sm:$0xff]
    %v3205 = vld [vmem:[#allocation4 + $0x3a0] sm:$0xff]
    %v3206 = vld [vmem:[#allocation4 + $0x3a8] sm:$0xff]
    %v3207 = vld [vmem:[#allocation4 + $0x3b0] sm:$0xff]
    %v3208 = vld [vmem:[#allocation4 + $0x3b8] sm:$0xff]
    %v3209 = vld [vmem:[#allocation4 + $0x3c0] sm:$0xff]
    %v3210 = vld [vmem:[#allocation4 + $0x3c8] sm:$0xff]
    %v3211 = vld [vmem:[#allocation4 + $0x3d0] sm:$0xff]
    %v3212 = vld [vmem:[#allocation4 + $0x3d8] sm:$0xff]
    %v3213 = vld [vmem:[#allocation4 + $0x3e0] sm:$0xff]
    %v3214 = vld [vmem:[#allocation4 + $0x3e8] sm:$0xff]
    %v3215 = vld [vmem:[#allocation4 + $0x3f0] sm:$0xff]
    %v3216 = vld [vmem:[#allocation4 + $0x3f8] sm:$0xff]
    %v3217 = vld [vmem:[%s33] sm:$0xf]
    %v3219 = vlaneseq
    %v3220 = vshrl.u32 %v3219, 7
    %v3221 = vsub.s32 0, %v3220
    %v3222 = vrot.slane %v3217, %v3221
    %v3223 = vlaneseq
    %v3224 = vshrl.u32 %v3223, 7
    %v3225 = vsub.s32 1, %v3224
    %v3226 = vrot.slane %v3217, %v3225
    %v3227 = vlaneseq
    %v3228 = vshrl.u32 %v3227, 7
    %v3229 = vsub.s32 2, %v3228
    %v3230 = vrot.slane %v3217, %v3229
    %v3231 = vlaneseq
    %v3232 = vshrl.u32 %v3231, 7
    %v3233 = vsub.s32 3, %v3232
    %v3234 = vrot.slane %v3217, %v3233
    %3239 = vmatprep.subr.bf16.mxu0 %v3090
    %3240 = vmatpush1.bf16.msra.mxu0 %v3089
    %3241 = vmatprep.subr.bf16.mxu0 %v3094
    %3242 = vmatpush1.bf16.msra.mxu0 %v3093
    %3243 = vmatprep.subr.bf16.mxu0 %v3098
    %3244 = vmatpush1.bf16.msra.mxu0 %v3097
    %3245 = vmatprep.subr.bf16.mxu0 %v3102
    %3246 = vmatpush1.bf16.msra.mxu0 %v3101
    %3247 = vmatprep.subr.bf16.mxu0 %v3106
    %3248 = vmatpush1.bf16.msra.mxu0 %v3105
    %3249 = vmatprep.subr.bf16.mxu0 %v3110
    %3250 = vmatpush1.bf16.msra.mxu0 %v3109
    %3251 = vmatprep.subr.bf16.mxu0 %v3114
    %3252 = vmatpush1.bf16.msra.mxu0 %v3113
    %3253 = vmatprep.subr.bf16.mxu0 %v3118
    %3254 = vmatpush1.bf16.msra.mxu0 %v3117
    %3255 = vmatprep.subr.bf16.mxu0 %v3122
    %3256 = vmatpush1.bf16.msra.mxu0 %v3121
    %3257 = vmatprep.subr.bf16.mxu0 %v3126
    %3258 = vmatpush1.bf16.msra.mxu0 %v3125
    %3259 = vmatprep.subr.bf16.mxu0 %v3130
    %3260 = vmatpush1.bf16.msra.mxu0 %v3129
    %3261 = vmatprep.subr.bf16.mxu0 %v3134
    %3262 = vmatpush1.bf16.msra.mxu0 %v3133
    %3263 = vmatprep.subr.bf16.mxu0 %v3138
    %3264 = vmatpush1.bf16.msra.mxu0 %v3137
    %3265 = vmatprep.subr.bf16.mxu0 %v3142
    %3266 = vmatpush1.bf16.msra.mxu0 %v3141
    %3267 = vmatprep.subr.bf16.mxu0 %v3146
    %3268 = vmatpush1.bf16.msra.mxu0 %v3145
    %3269 = vmatprep.subr.bf16.mxu0 %v3150
    %3270 = vmatpush1.bf16.msra.mxu0 %v3149
    %3271 = vmatprep.mubr.bf16.mxu0 %v3086
    %3272 = vmatmul.mubr.bf16.gmra.mrb[0].mxu0 %v3085
    %v3273 = vpop.f32.mrb[0].mxu0
    %v3274 = vadd.f32 %v3222, %v3273
    %v3275 = vpop.f32.mrb[0].mxu0
    %v3276 = vadd.f32 %v3226, %v3275
    %v3277 = vpop.f32.mrb[0].mxu0
    %v3278 = vpop.f32.mrb[0].mxu0
    %3279 = vdwg.mxu0
    %3280 = vmatprep.subr.bf16.mxu0 %v3154
    %3281 = vmatpush1.bf16.msra.mxu0 %v3153
    %3282 = vmatprep.subr.bf16.mxu0 %v3158
    %3283 = vmatpush1.bf16.msra.mxu0 %v3157
    %3284 = vmatprep.subr.bf16.mxu0 %v3162
    %3285 = vmatpush1.bf16.msra.mxu0 %v3161
    %3286 = vmatprep.subr.bf16.mxu0 %v3166
    %3287 = vmatpush1.bf16.msra.mxu0 %v3165
    %3288 = vmatprep.subr.bf16.mxu0 %v3170
    %3289 = vmatpush1.bf16.msra.mxu0 %v3169
    %3290 = vmatprep.subr.bf16.mxu0 %v3174
    %3291 = vmatpush1.bf16.msra.mxu0 %v3173
    %3292 = vmatprep.subr.bf16.mxu0 %v3178
    %3293 = vmatpush1.bf16.msra.mxu0 %v3177
    %3294 = vmatprep.subr.bf16.mxu0 %v3182
    %3295 = vmatpush1.bf16.msra.mxu0 %v3181
    %3296 = vmatprep.subr.bf16.mxu0 %v3186
    %3297 = vmatpush1.bf16.msra.mxu0 %v3185
    %3298 = vmatprep.subr.bf16.mxu0 %v3190
    %3299 = vmatpush1.bf16.msra.mxu0 %v3189
    %3300 = vmatprep.subr.bf16.mxu0 %v3194
    %3301 = vmatpush1.bf16.msra.mxu0 %v3193
    %3302 = vmatprep.subr.bf16.mxu0 %v3198
    %3303 = vmatpush1.bf16.msra.mxu0 %v3197
    %3304 = vmatprep.subr.bf16.mxu0 %v3202
    %3305 = vmatpush1.bf16.msra.mxu0 %v3201
    %3306 = vmatprep.subr.bf16.mxu0 %v3206
    %3307 = vmatpush1.bf16.msra.mxu0 %v3205
    %3308 = vmatprep.subr.bf16.mxu0 %v3210
    %3309 = vmatpush1.bf16.msra.mxu0 %v3209
    %3310 = vmatprep.subr.bf16.mxu0 %v3214
    %3311 = vmatpush1.bf16.msra.mxu0 %v3213
    %3312 = vmatprep.mubr.bf16.mxu0 %v3088
    %3313 = vmatmul.mubr.bf16.gmra.mrb[0].mxu0 %v3087
    %v3314 = vpop.f32.mrb[0].mxu0
    %v3315 = vadd.f32 %v3274, %v3314
    %v3316 = vpop.f32.mrb[0].mxu0
    %v3317 = vadd.f32 %v3276, %v3316
    %v3318 = vpop.f32.mrb[0].mxu0
    %v3319 = vpop.f32.mrb[0].mxu0
    %3320 = vdwg.mxu0
    %3321 = vmatprep.subr.bf16.mxu0 %v3092
    %3322 = vmatpush1.bf16.msra.mxu0 %v3091
    %3323 = vmatprep.subr.bf16.mxu0 %v3096
    %3324 = vmatpush1.bf16.msra.mxu0 %v3095
    %3325 = vmatprep.subr.bf16.mxu0 %v3100
    %3326 = vmatpush1.bf16.msra.mxu0 %v3099
    %3327 = vmatprep.subr.bf16.mxu0 %v3104
    %3328 = vmatpush1.bf16.msra.mxu0 %v3103
    %3329 = vmatprep.subr.bf16.mxu0 %v3108
    %3330 = vmatpush1.bf16.msra.mxu0 %v3107
    %3331 = vmatprep.subr.bf16.mxu0 %v3112
    %3332 = vmatpush1.bf16.msra.mxu0 %v3111
    %3333 = vmatprep.subr.bf16.mxu0 %v3116
    %3334 = vmatpush1.bf16.msra.mxu0 %v3115
    %3335 = vmatprep.subr.bf16.mxu0 %v3120
    %3336 = vmatpush1.bf16.msra.mxu0 %v3119
    %3337 = vmatprep.subr.bf16.mxu0 %v3124
    %3338 = vmatpush1.bf16.msra.mxu0 %v3123
    %3339 = vmatprep.subr.bf16.mxu0 %v3128
    %3340 = vmatpush1.bf16.msra.mxu0 %v3127
    %3341 = vmatprep.subr.bf16.mxu0 %v3132
    %3342 = vmatpush1.bf16.msra.mxu0 %v3131
    %3343 = vmatprep.subr.bf16.mxu0 %v3136
    %3344 = vmatpush1.bf16.msra.mxu0 %v3135
    %3345 = vmatprep.subr.bf16.mxu0 %v3140
    %3346 = vmatpush1.bf16.msra.mxu0 %v3139
    %3347 = vmatprep.subr.bf16.mxu0 %v3144
    %3348 = vmatpush1.bf16.msra.mxu0 %v3143
    %3349 = vmatprep.subr.bf16.mxu0 %v3148
    %3350 = vmatpush1.bf16.msra.mxu0 %v3147
    %3351 = vmatprep.subr.bf16.mxu0 %v3152
    %3352 = vmatpush1.bf16.msra.mxu0 %v3151
    %3353 = vmatprep.mubr.bf16.mxu0 %v3086
    %3354 = vmatmul.mubr.bf16.gmra.mrb[0].mxu0 %v3085
    %v3355 = vpop.f32.mrb[0].mxu0
    %v3356 = vadd.f32 %v3230, %v3355
    %v3357 = vpop.f32.mrb[0].mxu0
    %v3358 = vadd.f32 %v3234, %v3357
    %v3359 = vpop.f32.mrb[0].mxu0
    %v3360 = vpop.f32.mrb[0].mxu0
    %3361 = vdwg.mxu0
    %3362 = vmatprep.subr.bf16.mxu0 %v3156
    %3363 = vmatpush1.bf16.msra.mxu0 %v3155
    %3364 = vmatprep.subr.bf16.mxu0 %v3160
    %3365 = vmatpush1.bf16.msra.mxu0 %v3159
    %3366 = vmatprep.subr.bf16.mxu0 %v3164
    %3367 = vmatpush1.bf16.msra.mxu0 %v3163
    %3368 = vmatprep.subr.bf16.mxu0 %v3168
    %3369 = vmatpush1.bf16.msra.mxu0 %v3167
    %3370 = vmatprep.subr.bf16.mxu0 %v3172
    %3371 = vmatpush1.bf16.msra.mxu0 %v3171
    %3372 = vmatprep.subr.bf16.mxu0 %v3176
    %3373 = vmatpush1.bf16.msra.mxu0 %v3175
    %3374 = vmatprep.subr.bf16.mxu0 %v3180
    %3375 = vmatpush1.bf16.msra.mxu0 %v3179
    %3376 = vmatprep.subr.bf16.mxu0 %v3184
    %3377 = vmatpush1.bf16.msra.mxu0 %v3183
    %3378 = vmatprep.subr.bf16.mxu0 %v3188
    %3379 = vmatpush1.bf16.msra.mxu0 %v3187
    %3380 = vmatprep.subr.bf16.mxu0 %v3192
    %3381 = vmatpush1.bf16.msra.mxu0 %v3191
    %3382 = vmatprep.subr.bf16.mxu0 %v3196
    %3383 = vmatpush1.bf16.msra.mxu0 %v3195
    %3384 = vmatprep.subr.bf16.mxu0 %v3200
    %3385 = vmatpush1.bf16.msra.mxu0 %v3199
    %3386 = vmatprep.subr.bf16.mxu0 %v3204
    %3387 = vmatpush1.bf16.msra.mxu0 %v3203
    %3388 = vmatprep.subr.bf16.mxu0 %v3208
    %3389 = vmatpush1.bf16.msra.mxu0 %v3207
    %3390 = vmatprep.subr.bf16.mxu0 %v3212
    %3391 = vmatpush1.bf16.msra.mxu0 %v3211
    %3392 = vmatprep.subr.bf16.mxu0 %v3216
    %3393 = vmatpush1.bf16.msra.mxu0 %v3215
    %3394 = vmatprep.mubr.bf16.mxu0 %v3088
    %3395 = vmatmul.mubr.bf16.gmra.mrb[0].mxu0 %v3087
    %v3396 = vpop.f32.mrb[0].mxu0
    %v3397 = vadd.f32 %v3356, %v3396
    %v3398 = vpop.f32.mrb[0].mxu0
    %v3399 = vadd.f32 %v3358, %v3398
    %v3400 = vpop.f32.mrb[0].mxu0
    %v3401 = vpop.f32.mrb[0].mxu0
    %3402 = vdwg.mxu0
    %v3403 = vmax.f32 %v3315, 0.0
    %v3404 = vmax.f32 %v3317, 0.0
    %v3405 = vmax.f32 %v3397, 0.0
    %v3406 = vmax.f32 %v3399, 0.0
    %s3407 = smul.u32 %s3081, 2
    %s3408 = sshll.u32 %s3407, 4
    %3409 = dma.done %s250, %s3408
    %v3410 = vpack.c.bf16 %v3403, %v3403
    %v3411 = vpack.c.bf16 %v3404, %v3404
    %v3412 = vpack.c.bf16 %v3405, %v3405
    %v3413 = vpack.c.bf16 %v3406, %v3406
    %v3414 = vld [vmem:[#allocation5] sm:$0xff]
    %v3415 = vld [vmem:[#allocation5 + $0x8] sm:$0xff]
    %v3416 = vld [vmem:[#allocation5 + $0x10] sm:$0xff]
    %v3417 = vld [vmem:[#allocation5 + $0x18] sm:$0xff]
    %v3418 = vld [vmem:[#allocation5 + $0x20] sm:$0xff]
    %v3419 = vld [vmem:[#allocation5 + $0x28] sm:$0xff]
    %v3420 = vld [vmem:[#allocation5 + $0x30] sm:$0xff]
    %v3421 = vld [vmem:[#allocation5 + $0x38] sm:$0xff]
    %v3422 = vld [vmem:[#allocation5 + $0x40] sm:$0xff]
    %v3423 = vld [vmem:[#allocation5 + $0x48] sm:$0xff]
    %v3424 = vld [vmem:[#allocation5 + $0x50] sm:$0xff]
    %v3425 = vld [vmem:[#allocation5 + $0x58] sm:$0xff]
    %v3426 = vld [vmem:[#allocation5 + $0x60] sm:$0xff]
    %v3427 = vld [vmem:[#allocation5 + $0x68] sm:$0xff]
    %v3428 = vld [vmem:[#allocation5 + $0x70] sm:$0xff]
    %v3429 = vld [vmem:[#allocation5 + $0x78] sm:$0xff]
    %v3430 = vld [vmem:[#allocation5 + $0x80] sm:$0xff]
    %v3431 = vld [vmem:[#allocation5 + $0x88] sm:$0xff]
    %v3432 = vld [vmem:[#allocation5 + $0x90] sm:$0xff]
    %v3433 = vld [vmem:[#allocation5 + $0x98] sm:$0xff]
    %v3434 = vld [vmem:[#allocation5 + $0xa0] sm:$0xff]
    %v3435 = vld [vmem:[#allocation5 + $0xa8] sm:$0xff]
    %v3436 = vld [vmem:[#allocation5 + $0xb0] sm:$0xff]
    %v3437 = vld [vmem:[#allocation5 + $0xb8] sm:$0xff]
    %v3438 = vld [vmem:[#allocation5 + $0xc0] sm:$0xff]
    %v3439 = vld [vmem:[#allocation5 + $0xc8] sm:$0xff]
    %v3440 = vld [vmem:[#allocation5 + $0xd0] sm:$0xff]
    %v3441 = vld [vmem:[#allocation5 + $0xd8] sm:$0xff]
    %v3442 = vld [vmem:[#allocation5 + $0xe0] sm:$0xff]
    %v3443 = vld [vmem:[#allocation5 + $0xe8] sm:$0xff]
    %v3444 = vld [vmem:[#allocation5 + $0xf0] sm:$0xff]
    %v3445 = vld [vmem:[#allocation5 + $0xf8] sm:$0xff]
    %v3446 = vld [vmem:[#allocation5 + $0x100] sm:$0xff]
    %v3447 = vld [vmem:[#allocation5 + $0x108] sm:$0xff]
    %v3448 = vld [vmem:[#allocation5 + $0x110] sm:$0xff]
    %v3449 = vld [vmem:[#allocation5 + $0x118] sm:$0xff]
    %v3450 = vld [vmem:[#allocation5 + $0x120] sm:$0xff]
    %v3451 = vld [vmem:[#allocation5 + $0x128] sm:$0xff]
    %v3452 = vld [vmem:[#allocation5 + $0x130] sm:$0xff]
    %v3453 = vld [vmem:[#allocation5 + $0x138] sm:$0xff]
    %v3454 = vld [vmem:[#allocation5 + $0x140] sm:$0xff]
    %v3455 = vld [vmem:[#allocation5 + $0x148] sm:$0xff]
    %v3456 = vld [vmem:[#allocation5 + $0x150] sm:$0xff]
    %v3457 = vld [vmem:[#allocation5 + $0x158] sm:$0xff]
    %v3458 = vld [vmem:[#allocation5 + $0x160] sm:$0xff]
    %v3459 = vld [vmem:[#allocation5 + $0x168] sm:$0xff]
    %v3460 = vld [vmem:[#allocation5 + $0x170] sm:$0xff]
    %v3461 = vld [vmem:[#allocation5 + $0x178] sm:$0xff]
    %v3462 = vld [vmem:[#allocation5 + $0x180] sm:$0xff]
    %v3463 = vld [vmem:[#allocation5 + $0x188] sm:$0xff]
    %v3464 = vld [vmem:[#allocation5 + $0x190] sm:$0xff]
    %v3465 = vld [vmem:[#allocation5 + $0x198] sm:$0xff]
    %v3466 = vld [vmem:[#allocation5 + $0x1a0] sm:$0xff]
    %v3467 = vld [vmem:[#allocation5 + $0x1a8] sm:$0xff]
    %v3468 = vld [vmem:[#allocation5 + $0x1b0] sm:$0xff]
    %v3469 = vld [vmem:[#allocation5 + $0x1b8] sm:$0xff]
    %v3470 = vld [vmem:[#allocation5 + $0x1c0] sm:$0xff]
    %v3471 = vld [vmem:[#allocation5 + $0x1c8] sm:$0xff]
    %v3472 = vld [vmem:[#allocation5 + $0x1d0] sm:$0xff]
    %v3473 = vld [vmem:[#allocation5 + $0x1d8] sm:$0xff]
    %v3474 = vld [vmem:[#allocation5 + $0x1e0] sm:$0xff]
    %v3475 = vld [vmem:[#allocation5 + $0x1e8] sm:$0xff]
    %v3476 = vld [vmem:[#allocation5 + $0x1f0] sm:$0xff]
    %v3477 = vld [vmem:[#allocation5 + $0x1f8] sm:$0xff]
    %v3478 = vld [vmem:[%s35] sm:$0x3]
    %v3480 = vlaneseq
    %v3481 = vshrl.u32 %v3480, 7
    %v3482 = vsub.s32 0, %v3481
    %v3483 = vrot.slane %v3478, %v3482
    %v3484 = vlaneseq
    %v3485 = vshrl.u32 %v3484, 7
    %v3486 = vsub.s32 1, %v3485
    %v3487 = vrot.slane %v3478, %v3486
    %3490 = vmatprep.subr.bf16.mxu0 %v3415
    %3491 = vmatpush1.bf16.msra.mxu0 %v3414
    %3492 = vmatprep.subr.bf16.mxu0 %v3417
    %3493 = vmatpush1.bf16.msra.mxu0 %v3416
    %3494 = vmatprep.subr.bf16.mxu0 %v3419
    %3495 = vmatpush1.bf16.msra.mxu0 %v3418
    %3496 = vmatprep.subr.bf16.mxu0 %v3421
    %3497 = vmatpush1.bf16.msra.mxu0 %v3420
    %3498 = vmatprep.subr.bf16.mxu0 %v3423
    %3499 = vmatpush1.bf16.msra.mxu0 %v3422
    %3500 = vmatprep.subr.bf16.mxu0 %v3425
    %3501 = vmatpush1.bf16.msra.mxu0 %v3424
    %3502 = vmatprep.subr.bf16.mxu0 %v3427
    %3503 = vmatpush1.bf16.msra.mxu0 %v3426
    %3504 = vmatprep.subr.bf16.mxu0 %v3429
    %3505 = vmatpush1.bf16.msra.mxu0 %v3428
    %3506 = vmatprep.subr.bf16.mxu0 %v3431
    %3507 = vmatpush1.bf16.msra.mxu0 %v3430
    %3508 = vmatprep.subr.bf16.mxu0 %v3433
    %3509 = vmatpush1.bf16.msra.mxu0 %v3432
    %3510 = vmatprep.subr.bf16.mxu0 %v3435
    %3511 = vmatpush1.bf16.msra.mxu0 %v3434
    %3512 = vmatprep.subr.bf16.mxu0 %v3437
    %3513 = vmatpush1.bf16.msra.mxu0 %v3436
    %3514 = vmatprep.subr.bf16.mxu0 %v3439
    %3515 = vmatpush1.bf16.msra.mxu0 %v3438
    %3516 = vmatprep.subr.bf16.mxu0 %v3441
    %3517 = vmatpush1.bf16.msra.mxu0 %v3440
    %3518 = vmatprep.subr.bf16.mxu0 %v3443
    %3519 = vmatpush1.bf16.msra.mxu0 %v3442
    %3520 = vmatprep.subr.bf16.mxu0 %v3445
    %3521 = vmatpush1.bf16.msra.mxu0 %v3444
    %3522 = vmatprep.mubr.bf16.mxu0 %v3411
    %3523 = vmatmul.mubr.bf16.gmra.mrb[0].mxu0 %v3410
    %v3524 = vpop.f32.mrb[0].mxu0
    %v3525 = vadd.f32 %v3483, %v3524
    %v3526 = vpop.f32.mrb[0].mxu0
    %v3527 = vadd.f32 %v3487, %v3526
    %v3528 = vpop.f32.mrb[0].mxu0
    %v3529 = vpop.f32.mrb[0].mxu0
    %3530 = vdwg.mxu0
    %3531 = vmatprep.subr.bf16.mxu0 %v3447
    %3532 = vmatpush1.bf16.msra.mxu0 %v3446
    %3533 = vmatprep.subr.bf16.mxu0 %v3449
    %3534 = vmatpush1.bf16.msra.mxu0 %v3448
    %3535 = vmatprep.subr.bf16.mxu0 %v3451
    %3536 = vmatpush1.bf16.msra.mxu0 %v3450
    %3537 = vmatprep.subr.bf16.mxu0 %v3453
    %3538 = vmatpush1.bf16.msra.mxu0 %v3452
    %3539 = vmatprep.subr.bf16.mxu0 %v3455
    %3540 = vmatpush1.bf16.msra.mxu0 %v3454
    %3541 = vmatprep.subr.bf16.mxu0 %v3457
    %3542 = vmatpush1.bf16.msra.mxu0 %v3456
    %3543 = vmatprep.subr.bf16.mxu0 %v3459
    %3544 = vmatpush1.bf16.msra.mxu0 %v3458
    %3545 = vmatprep.subr.bf16.mxu0 %v3461
    %3546 = vmatpush1.bf16.msra.mxu0 %v3460
    %3547 = vmatprep.subr.bf16.mxu0 %v3463
    %3548 = vmatpush1.bf16.msra.mxu0 %v3462
    %3549 = vmatprep.subr.bf16.mxu0 %v3465
    %3550 = vmatpush1.bf16.msra.mxu0 %v3464
    %3551 = vmatprep.subr.bf16.mxu0 %v3467
    %3552 = vmatpush1.bf16.msra.mxu0 %v3466
    %3553 = vmatprep.subr.bf16.mxu0 %v3469
    %3554 = vmatpush1.bf16.msra.mxu0 %v3468
    %3555 = vmatprep.subr.bf16.mxu0 %v3471
    %3556 = vmatpush1.bf16.msra.mxu0 %v3470
    %3557 = vmatprep.subr.bf16.mxu0 %v3473
    %3558 = vmatpush1.bf16.msra.mxu0 %v3472
    %3559 = vmatprep.subr.bf16.mxu0 %v3475
    %3560 = vmatpush1.bf16.msra.mxu0 %v3474
    %3561 = vmatprep.subr.bf16.mxu0 %v3477
    %3562 = vmatpush1.bf16.msra.mxu0 %v3476
    %3563 = vmatprep.mubr.bf16.mxu0 %v3413
    %3564 = vmatmul.mubr.bf16.gmra.mrb[0].mxu0 %v3412
    %v3565 = vpop.f32.mrb[0].mxu0
    %v3566 = vadd.f32 %v3525, %v3565
    %v3567 = vpop.f32.mrb[0].mxu0
    %v3568 = vadd.f32 %v3527, %v3567
    %v3569 = vpop.f32.mrb[0].mxu0
    %v3570 = vpop.f32.mrb[0].mxu0
    %3571 = vdwg.mxu0
    %v3572 = vmax.f32 %v3566, 0.0
    %v3573 = vmax.f32 %v3568, 0.0
    %s3574 = smul.u32 4, 32
    %s3575 = smul.u32 %s3574, 1
    %s3576 = sshll.u32 %s3575, 4
    %3577 = dma.done %s285, %s3576
    %v3578 = vpack.c.bf16 %v3572, %v3572
    %v3579 = vpack.c.bf16 %v3573, %v3573
    %v3580 = vld [vmem:[#allocation6] sm:$0xff]
    %v3581 = vld [vmem:[#allocation6 + $0x8] sm:$0xff]
    %v3582 = vld [vmem:[#allocation6 + $0x10] sm:$0xff]
    %v3583 = vld [vmem:[#allocation6 + $0x18] sm:$0xff]
    %v3584 = vld [vmem:[#allocation6 + $0x20] sm:$0xff]
    %v3585 = vld [vmem:[#allocation6 + $0x28] sm:$0xff]
    %v3586 = vld [vmem:[#allocation6 + $0x30] sm:$0xff]
    %v3587 = vld [vmem:[#allocation6 + $0x38] sm:$0xff]
    %v3588 = vld [vmem:[#allocation6 + $0x40] sm:$0xff]
    %v3589 = vld [vmem:[#allocation6 + $0x48] sm:$0xff]
    %v3590 = vld [vmem:[#allocation6 + $0x50] sm:$0xff]
    %v3591 = vld [vmem:[#allocation6 + $0x58] sm:$0xff]
    %v3592 = vld [vmem:[#allocation6 + $0x60] sm:$0xff]
    %v3593 = vld [vmem:[#allocation6 + $0x68] sm:$0xff]
    %v3594 = vld [vmem:[#allocation6 + $0x70] sm:$0xff]
    %v3595 = vld [vmem:[#allocation6 + $0x78] sm:$0xff]
    %v3596 = vld [vmem:[%s37] sm:$0x1]
    %v3598 = vlaneseq
    %v3599 = vshrl.u32 %v3598, 7
    %v3600 = vsub.s32 0, %v3599
    %v3601 = vrot.slane %v3596, %v3600
    %3603 = vmatprep.subr.bf16.mxu0 0
    %3604 = vmatpush1.bf16.msra.mxu0 %v3580
    %3605 = vmatprep.subr.bf16.mxu0 0
    %3606 = vmatpush1.bf16.msra.mxu0 %v3581
    %3607 = vmatprep.subr.bf16.mxu0 0
    %3608 = vmatpush1.bf16.msra.mxu0 %v3582
    %3609 = vmatprep.subr.bf16.mxu0 0
    %3610 = vmatpush1.bf16.msra.mxu0 %v3583
    %3611 = vmatprep.subr.bf16.mxu0 0
    %3612 = vmatpush1.bf16.msra.mxu0 %v3584
    %3613 = vmatprep.subr.bf16.mxu0 0
    %3614 = vmatpush1.bf16.msra.mxu0 %v3585
    %3615 = vmatprep.subr.bf16.mxu0 0
    %3616 = vmatpush1.bf16.msra.mxu0 %v3586
    %3617 = vmatprep.subr.bf16.mxu0 0
    %3618 = vmatpush1.bf16.msra.mxu0 %v3587
    %3619 = vmatprep.subr.bf16.mxu0 0
    %3620 = vmatpush1.bf16.msra.mxu0 %v3588
    %3621 = vmatprep.subr.bf16.mxu0 0
    %3622 = vmatpush1.bf16.msra.mxu0 %v3589
    %3623 = vmatprep.subr.bf16.mxu0 0
    %3624 = vmatpush1.bf16.msra.mxu0 %v3590
    %3625 = vmatprep.subr.bf16.mxu0 0
    %3626 = vmatpush1.bf16.msra.mxu0 %v3591
    %3627 = vmatprep.subr.bf16.mxu0 0
    %3628 = vmatpush1.bf16.msra.mxu0 %v3592
    %3629 = vmatprep.subr.bf16.mxu0 0
    %3630 = vmatpush1.bf16.msra.mxu0 %v3593
    %3631 = vmatprep.subr.bf16.mxu0 0
    %3632 = vmatpush1.bf16.msra.mxu0 %v3594
    %3633 = vmatprep.subr.bf16.mxu0 0
    %3634 = vmatpush1.bf16.msra.mxu0 %v3595
    %3635 = vmatprep.mubr.bf16.mxu0 %v3579
    %3636 = vmatmul.mubr.bf16.gmra.mrb[0].mxu0 %v3578
    %v3637 = vpop.f32.mrb[0].mxu0
    %v3638 = vadd.f32 %v3601, %v3637
    %v3639 = vpop.f32.mrb[0].mxu0
    %v3640 = vpop.f32.mrb[0].mxu0
    %v3641 = vpop.f32.mrb[0].mxu0
    %3642 = vdwg.mxu0
    %v3643 = vmax.f32 %v3638, 0.0
    %s3644 = smul.u32 4, 16
    %s3645 = smul.u32 %s3644, 1
    %s3646 = sshll.u32 %s3645, 4
    %3647 = dma.done %s358, %s3646
    %v3648 = vpack.c.bf16 %v3643, %v3643
    %v3649 = vld [vmem:[#allocation7] sm:$0xff]
    %v3650 = vld [vmem:[#allocation7 + $0x8] sm:$0xff]
    %v3651 = vld [vmem:[#allocation7 + $0x10] sm:$0xff]
    %v3652 = vld [vmem:[#allocation7 + $0x18] sm:$0xff]
    %v3653 = vld [vmem:[#allocation7 + $0x20] sm:$0xff]
    %v3654 = vld [vmem:[#allocation7 + $0x28] sm:$0xff]
    %v3655 = vld [vmem:[#allocation7 + $0x30] sm:$0xff]
    %v3656 = vld [vmem:[#allocation7 + $0x38] sm:$0xff]
    %v3657 = vld [vmem:[%s39] sm:$0x1]
    %v3659 = vlaneseq
    %v3660 = vshrl.u32 %v3659, 7
    %v3661 = vsub.s32 0, %v3660
    %v3662 = vrot.slane %v3657, %v3661
    %3664 = vmatprep.subr.bf16.mxu0 0
    %3665 = vmatpush1.bf16.msra.mxu0 %v3649
    %3666 = vmatprep.subr.bf16.mxu0 0
    %3667 = vmatpush1.bf16.msra.mxu0 %v3650
    %3668 = vmatprep.subr.bf16.mxu0 0
    %3669 = vmatpush1.bf16.msra.mxu0 %v3651
    %3670 = vmatprep.subr.bf16.mxu0 0
    %3671 = vmatpush1.bf16.msra.mxu0 %v3652
    %3672 = vmatprep.subr.bf16.mxu0 0
    %3673 = vmatpush1.bf16.msra.mxu0 %v3653
    %3674 = vmatprep.subr.bf16.mxu0 0
    %3675 = vmatpush1.bf16.msra.mxu0 %v3654
    %3676 = vmatprep.subr.bf16.mxu0 0
    %3677 = vmatpush1.bf16.msra.mxu0 %v3655
    %3678 = vmatprep.subr.bf16.mxu0 0
    %3679 = vmatpush1.bf16.msra.mxu0 %v3656
    %3680 = vmatprep.subr.bf16.mxu0 0
    %3681 = vmatpush1.bf16.msra.mxu0 0
    %3682 = vmatprep.subr.bf16.mxu0 0
    %3683 = vmatpush1.bf16.msra.mxu0 0
    %3684 = vmatprep.subr.bf16.mxu0 0
    %3685 = vmatpush1.bf16.msra.mxu0 0
    %3686 = vmatprep.subr.bf16.mxu0 0
    %3687 = vmatpush1.bf16.msra.mxu0 0
    %3688 = vmatprep.subr.bf16.mxu0 0
    %3689 = vmatpush1.bf16.msra.mxu0 0
    %3690 = vmatprep.subr.bf16.mxu0 0
    %3691 = vmatpush1.bf16.msra.mxu0 0
    %3692 = vmatprep.subr.bf16.mxu0 0
    %3693 = vmatpush1.bf16.msra.mxu0 0
    %3694 = vmatprep.subr.bf16.mxu0 0
    %3695 = vmatpush1.bf16.msra.mxu0 0
    %3696 = vmatprep.mubr.bf16.mxu0 0
    %3697 = vmatmul.mubr.bf16.gmra.mrb[0].mxu0 %v3648
    %v3698 = vpop.f32.mrb[0].mxu0
    %v3699 = vadd.f32 %v3662, %v3698
    %v3700 = vpop.f32.mrb[0].mxu0
    %v3701 = vpop.f32.mrb[0].mxu0
    %v3702 = vpop.f32.mrb[0].mxu0
    %3703 = vdwg.mxu0
    %v3704 = vmax.f32 %v3699, 0.0
    %s3705 = smul.u32 4, 8
    %s3706 = smul.u32 %s3705, 1
    %s3707 = sshll.u32 %s3706, 4
    %3708 = dma.done %s415, %s3707
    %v3709 = vpack.c.bf16 %v3704, %v3704
    %v3710 = vld [vmem:[#allocation8] sm:$0xff]
    %v3711 = vld [vmem:[#allocation8 + $0x8] sm:$0xff]
    %v3712 = vld [vmem:[#allocation8 + $0x10] sm:$0xff]
    %v3713 = vld [vmem:[#allocation8 + $0x18] sm:$0xff]
    %v3714 = vld [vmem:[%s41] sm:$0x1]
    %v3716 = vlaneseq
    %v3717 = vshrl.u32 %v3716, 7
    %v3718 = vsub.s32 0, %v3717
    %v3719 = vrot.slane %v3714, %v3718
    %v3722 = vsel %vm778, %v3709, 0
    %3724 = vmatprep.subr.bf16.mxu0 0
    %3725 = vmatpush1.bf16.msra.mxu0 %v3710
    %3726 = vmatprep.subr.bf16.mxu0 0
    %3727 = vmatpush1.bf16.msra.mxu0 %v3711
    %3728 = vmatprep.subr.bf16.mxu0 0
    %3729 = vmatpush1.bf16.msra.mxu0 %v3712
    %3730 = vmatprep.subr.bf16.mxu0 0
    %3731 = vmatpush1.bf16.msra.mxu0 %v3713
    %3732 = vmatprep.subr.bf16.mxu0 0
    %3733 = vmatpush1.bf16.msra.mxu0 0
    %3734 = vmatprep.subr.bf16.mxu0 0
    %3735 = vmatpush1.bf16.msra.mxu0 0
    %3736 = vmatprep.subr.bf16.mxu0 0
    %3737 = vmatpush1.bf16.msra.mxu0 0
    %3738 = vmatprep.subr.bf16.mxu0 0
    %3739 = vmatpush1.bf16.msra.mxu0 0
    %3740 = vmatprep.subr.bf16.mxu0 0
    %3741 = vmatpush1.bf16.msra.mxu0 0
    %3742 = vmatprep.subr.bf16.mxu0 0
    %3743 = vmatpush1.bf16.msra.mxu0 0
    %3744 = vmatprep.subr.bf16.mxu0 0
    %3745 = vmatpush1.bf16.msra.mxu0 0
    %3746 = vmatprep.subr.bf16.mxu0 0
    %3747 = vmatpush1.bf16.msra.mxu0 0
    %3748 = vmatprep.subr.bf16.mxu0 0
    %3749 = vmatpush1.bf16.msra.mxu0 0
    %3750 = vmatprep.subr.bf16.mxu0 0
    %3751 = vmatpush1.bf16.msra.mxu0 0
    %3752 = vmatprep.subr.bf16.mxu0 0
    %3753 = vmatpush1.bf16.msra.mxu0 0
    %3754 = vmatprep.subr.bf16.mxu0 0
    %3755 = vmatpush1.bf16.msra.mxu0 0
    %3756 = vmatprep.mubr.bf16.mxu0 0
    %3757 = vmatmul.mubr.bf16.gmra.mrb[0].mxu0 %v3722
    %v3758 = vpop.f32.mrb[0].mxu0
    %v3759 = vadd.f32 %v3719, %v3758
    %v3760 = vpop.f32.mrb[0].mxu0
    %v3761 = vpop.f32.mrb[0].mxu0
    %v3762 = vpop.f32.mrb[0].mxu0
    %3763 = vdwg.mxu0
    %v3764 = vmax.f32 %v3759, 0.0
    %s3765 = smul.u32 4, 4
    %s3766 = smul.u32 %s3765, 1
    %s3767 = sshll.u32 %s3766, 4
    %3768 = dma.done %s464, %s3767
    %v3769 = vpack.c.bf16 %v3764, %v3764
    %v3770 = vld [vmem:[#allocation9] sm:$0xff]
    %v3771 = vld [vmem:[#allocation9 + $0x8] sm:$0xff]
    %v3772 = vld [vmem:[%s43] sm:$0x1]
    %v3774 = vlaneseq
    %v3775 = vshrl.u32 %v3774, 7
    %v3776 = vsub.s32 0, %v3775
    %v3777 = vrot.slane %v3772, %v3776
    %v3780 = vsel %vm669, %v3769, 0
    %3782 = vmatprep.subr.bf16.mxu0 0
    %3783 = vmatpush1.bf16.msra.mxu0 %v3770
    %3784 = vmatprep.subr.bf16.mxu0 0
    %3785 = vmatpush1.bf16.msra.mxu0 %v3771
    %3786 = vmatprep.subr.bf16.mxu0 0
    %3787 = vmatpush1.bf16.msra.mxu0 0
    %3788 = vmatprep.subr.bf16.mxu0 0
    %3789 = vmatpush1.bf16.msra.mxu0 0
    %3790 = vmatprep.subr.bf16.mxu0 0
    %3791 = vmatpush1.bf16.msra.mxu0 0
    %3792 = vmatprep.subr.bf16.mxu0 0
    %3793 = vmatpush1.bf16.msra.mxu0 0
    %3794 = vmatprep.subr.bf16.mxu0 0
    %3795 = vmatpush1.bf16.msra.mxu0 0
    %3796 = vmatprep.subr.bf16.mxu0 0
    %3797 = vmatpush1.bf16.msra.mxu0 0
    %3798 = vmatprep.subr.bf16.mxu0 0
    %3799 = vmatpush1.bf16.msra.mxu0 0
    %3800 = vmatprep.subr.bf16.mxu0 0
    %3801 = vmatpush1.bf16.msra.mxu0 0
    %3802 = vmatprep.subr.bf16.mxu0 0
    %3803 = vmatpush1.bf16.msra.mxu0 0
    %3804 = vmatprep.subr.bf16.mxu0 0
    %3805 = vmatpush1.bf16.msra.mxu0 0
    %3806 = vmatprep.subr.bf16.mxu0 0
    %3807 = vmatpush1.bf16.msra.mxu0 0
    %3808 = vmatprep.subr.bf16.mxu0 0
    %3809 = vmatpush1.bf16.msra.mxu0 0
    %3810 = vmatprep.subr.bf16.mxu0 0
    %3811 = vmatpush1.bf16.msra.mxu0 0
    %3812 = vmatprep.subr.bf16.mxu0 0
    %3813 = vmatpush1.bf16.msra.mxu0 0
    %3814 = vmatprep.mubr.bf16.mxu0 0
    %3815 = vmatmul.mubr.bf16.gmra.mrb[0].mxu0 %v3780
    %v3816 = vpop.f32.mrb[0].mxu0
    %v3817 = vadd.f32 %v3777, %v3816
    %v3818 = vpop.f32.mrb[0].mxu0
    %v3819 = vpop.f32.mrb[0].mxu0
    %v3820 = vpop.f32.mrb[0].mxu0
    %3821 = vdwg.mxu0
    %v3822 = vmax.f32 %v3817, 0.0
    %s3823 = smul.u32 %s2961, 1
    %s3824 = sshll.u32 %s3823, 4
    %3825 = dma.done %s509, %s3824
    %v3826 = vpack.c.bf16 %v3822, %v3822
    %v3827 = vld [vmem:[#allocation10] sm:$0xff]
    %v3828 = vld [vmem:[%s45] sm:$0x1]
    %v3830 = vlaneseq
    %v3831 = vshrl.u32 %v3830, 7
    %v3832 = vsub.s32 0, %v3831
    %v3833 = vrot.slane %v3828, %v3832
    %v3836 = vsel %vm2591, %v3826, 0
    %3838 = vmatprep.subr.bf16.mxu0 0
    %3839 = vmatpush1.bf16.msra.mxu0 %v3827
    %3840 = vmatprep.subr.bf16.mxu0 0
    %3841 = vmatpush1.bf16.msra.mxu0 0
    %3842 = vmatprep.subr.bf16.mxu0 0
    %3843 = vmatpush1.bf16.msra.mxu0 0
    %3844 = vmatprep.subr.bf16.mxu0 0
    %3845 = vmatpush1.bf16.msra.mxu0 0
    %3846 = vmatprep.subr.bf16.mxu0 0
    %3847 = vmatpush1.bf16.msra.mxu0 0
    %3848 = vmatprep.subr.bf16.mxu0 0
    %3849 = vmatpush1.bf16.msra.mxu0 0
    %3850 = vmatprep.subr.bf16.mxu0 0
    %3851 = vmatpush1.bf16.msra.mxu0 0
    %3852 = vmatprep.subr.bf16.mxu0 0
    %3853 = vmatpush1.bf16.msra.mxu0 0
    %3854 = vmatprep.subr.bf16.mxu0 0
    %3855 = vmatpush1.bf16.msra.mxu0 0
    %3856 = vmatprep.subr.bf16.mxu0 0
    %3857 = vmatpush1.bf16.msra.mxu0 0
    %3858 = vmatprep.subr.bf16.mxu0 0
    %3859 = vmatpush1.bf16.msra.mxu0 0
    %3860 = vmatprep.subr.bf16.mxu0 0
    %3861 = vmatpush1.bf16.msra.mxu0 0
    %3862 = vmatprep.subr.bf16.mxu0 0
    %3863 = vmatpush1.bf16.msra.mxu0 0
    %3864 = vmatprep.subr.bf16.mxu0 0
    %3865 = vmatpush1.bf16.msra.mxu0 0
    %3866 = vmatprep.subr.bf16.mxu0 0
    %3867 = vmatpush1.bf16.msra.mxu0 0
    %3868 = vmatprep.subr.bf16.mxu0 0
    %3869 = vmatpush1.bf16.msra.mxu0 0
    %3870 = vmatprep.mubr.bf16.mxu0 0
    %3871 = vmatmul.mubr.bf16.gmra.mrb[0].mxu0 %v3836
    %v3872 = vpop.f32.mrb[0].mxu0
    %v3873 = vadd.f32 %v3833, %v3872
    %v3874 = vpop.f32.mrb[0].mxu0
    %v3875 = vpop.f32.mrb[0].mxu0
    %v3876 = vpop.f32.mrb[0].mxu0
    %3877 = vdwg.mxu0
    %vm3878 = vcmask 58368
    %3879 = vst.msk [vmem:[#allocation15] sm:$0x3] %vm3878, %v3873
    // Predicated region
    $region305: #{lstm_vae_instance_forward.1} parent=1 // pred_check
      _
    $region306: #{lstm_vae_instance_forward.1} parent=1 // pred_check_branch
      %3881 = sbr.rel (0) target = $region308
    $region307: #{lstm_vae_instance_forward.1} parent=1 // pred_region
      %s3883 = ssub.s32 32, 32
      %3884 = vsyncadd [#allocation14], %s3883
      %s3886 = sshll.u32 [#allocation15], 4
      %s3887 = int_to_ptr.vmem [resolvable:$true] %s3886
      %3889 = dma.vmem_to_hbm [thread:$0]  %s3887, 32, %s63, [#allocation14]
    $region308: #{lstm_vae_instance_forward.1} parent=1 // pred_fallthru
      _
    // Predicated region
    $region309: #{lstm_vae_instance_forward.1} parent=1 // pred_check
      _
    $region310: #{lstm_vae_instance_forward.1} parent=1 // pred_check_branch
      %3891 = sbr.rel (0) target = $region312
    $region311: #{lstm_vae_instance_forward.1} parent=1 // pred_region
      %s3893 = ssub.s32 32, 32
      %3894 = vsyncadd [#allocation17], %s3893
      %s3896 = sshll.u32 [#allocation16], 4
      %s3897 = int_to_ptr.vmem [resolvable:$true] %s3896
      %3899 = dma.vmem_to_hbm [thread:$0]  %s3897, 32, %s65, [#allocation17]
    $region312: #{lstm_vae_instance_forward.1} parent=1 // pred_fallthru
      _
    // Predicated region
    $region313: #{lstm_vae_instance_forward.1} parent=1 // pred_check
      _
    $region314: #{lstm_vae_instance_forward.1} parent=1 // pred_check_branch
      %3901 = sbr.rel (0) target = $region316
    $region315: #{lstm_vae_instance_forward.1} parent=1 // pred_region
      %s3903 = ssub.s32 32, 32
      %3904 = vsyncadd [#allocation17], %s3903
      %s3906 = sshll.u32 [#allocation18], 4
      %s3907 = int_to_ptr.vmem [resolvable:$true] %s3906
      %3909 = dma.vmem_to_hbm [thread:$0]  %s3907, 32, %s67, [#allocation17]
    $region316: #{lstm_vae_instance_forward.1} parent=1 // pred_fallthru
      _
    // Predicated region
    $region317: #{lstm_vae_instance_forward.1} parent=1 // pred_check
      _
    $region318: #{lstm_vae_instance_forward.1} parent=1 // pred_check_branch
      %3911 = sbr.rel (0) target = $region320
    $region319: #{lstm_vae_instance_forward.1} parent=1 // pred_region
      %3912 = dma.done [#allocation14], 32
    $region320: #{lstm_vae_instance_forward.1} parent=1 // pred_fallthru
      _
    // Predicated region
    $region321: #{lstm_vae_instance_forward.1} parent=1 // pred_check
      _
    $region322: #{lstm_vae_instance_forward.1} parent=1 // pred_check_branch
      %3914 = sbr.rel (0) target = $region324
    $region323: #{lstm_vae_instance_forward.1} parent=1 // pred_region
      %3915 = dma.done [#allocation17], 32
    $region324: #{lstm_vae_instance_forward.1} parent=1 // pred_fallthru
      _
    // Predicated region
    $region325: #{lstm_vae_instance_forward.1} parent=1 // pred_check
      _
    $region326: #{lstm_vae_instance_forward.1} parent=1 // pred_check_branch
      %3917 = sbr.rel (0) target = $region328
    $region327: #{lstm_vae_instance_forward.1} parent=1 // pred_region
      %3918 = dma.done [#allocation17], 32
    $region328: #{lstm_vae_instance_forward.1} parent=1 // pred_fallthru
      _
    %3919 = vsyncpa [#allocation13], 1
    %3920 = vsyncpa [#allocation14], 1
    %3921 = vsyncpa [#allocation17], 1
  %3922 = vsyncmov [#allocation11]
  %s3923 = vpop.sfrf %3922
  %p3924 = scmp.eq.s32.totalorder %s3923, 0
  %p3925 = pneg %p3924
  %3927 = shalt.err (%p3925)
  %s3928 = scalar_lea.sflag [#allocation11], 1
  %3929 = vsyncmov %s3928
  %s3930 = vpop.sfrf %3929
  %p3931 = scmp.eq.s32.totalorder %s3930, 0
  %p3932 = pneg %p3931
  %3934 = shalt.err (%p3932)
  %s3935 = scalar_lea.sflag [#allocation11], 2
  %3936 = vsyncmov %s3935
  %s3937 = vpop.sfrf %3936
  %p3938 = scmp.eq.s32.totalorder %s3937, 0
  %p3939 = pneg %p3938
  %3941 = shalt.err (%p3939)
  %s3942 = scalar_lea.sflag [#allocation11], 3
  %3943 = vsyncmov %s3942
  %s3944 = vpop.sfrf %3943
  %p3945 = scmp.eq.s32.totalorder %s3944, 0
  %p3946 = pneg %p3945
  %3948 = shalt.err (%p3946)
  %s3949 = scalar_lea.sflag [#allocation11], 4
  %3950 = vsyncmov %s3949
  %s3951 = vpop.sfrf %3950
  %p3952 = scmp.eq.s32.totalorder %s3951, 0
  %p3953 = pneg %p3952
  %3955 = shalt.err (%p3953)
  %s3956 = scalar_lea.sflag [#allocation11], 5
  %3957 = vsyncmov %s3956
  %s3958 = vpop.sfrf %3957
  %p3959 = scmp.eq.s32.totalorder %s3958, 0
  %p3960 = pneg %p3959
  %3962 = shalt.err (%p3960)
  %s3963 = scalar_lea.sflag [#allocation11], 6
  %3964 = vsyncmov %s3963
  %s3965 = vpop.sfrf %3964
  %p3966 = scmp.eq.s32.totalorder %s3965, 0
  %p3967 = pneg %p3966
  %3969 = shalt.err (%p3967)
  %s3970 = scalar_lea.sflag [#allocation11], 7
  %3971 = vsyncmov %s3970
  %s3972 = vpop.sfrf %3971
  %p3973 = scmp.eq.s32.totalorder %s3972, 0
  %p3974 = pneg %p3973
  %3976 = shalt.err (%p3974)

</llo_original>
